<compile_context>
chip_gen: v6e
topology: v6e:2x2x1
jax: 0.10.0
libtpu: 0.0.40
codegen_flags: <defaults>
</compile_context>

<pallas_src>
import functools

import jax
import jax.numpy as jnp
from jax.experimental import pallas as pl
from jax.experimental.pallas import tpu as pltpu


def _round_up(x, m):
    return (x + m - 1) // m * m


def _vmem_limit(block_bytes):
    """Explicit scoped-VMEM limit: block footprint + headroom, clamped to a
    budget that is safe on every generation (v7x only has 64 MiB physical)."""
    return int(min(max(2 * block_bytes + (8 << 20), 32 << 20), 48 << 20))


def _invariant_spec(block_shape, index_map):
    """BlockSpec for a grid-invariant operand: single-buffer it (double
    buffering a constant window is pure VMEM waste)."""
    try:
        return pl.BlockSpec(block_shape, index_map, pipeline_mode=pl.Buffered(1))
    except Exception:  # older jax without pipeline_mode: plain (double-buffered)
        return pl.BlockSpec(block_shape, index_map)


# ----------------------------------------------------------------------------
# Kernel 1: serial LSTM recurrence.  Only h @ W_hh^T is on the critical path;
# the block-level emb @ W_ih^T projection overlaps with it.
# ----------------------------------------------------------------------------
def _lstm_recurrent_kernel(emb_ref,    # (TB, BB, Ep)   f32 embeddings
                           wih_ref,    # (Ep, 4*Hp)     bf16 W_ih^T (gate-padded)
                           whh_ref,    # (Hp, 4*Hp)     bf16 W_hh^T (gate-padded)
                           bias_ref,   # (1, 4*Hp)      f32  b_ih + b_hh
                           hs_ref,     # (TB, BB, Hp)   f32 output h states
                           gx_ref,     # scratch (TB, BB, 4*Hp) f32
                           h_ref,      # scratch (BB, Hp) f32
                           c_ref,      # scratch (BB, Hp) f32
                           *, hp, tb, bb):
    bf16 = jnp.bfloat16
    t_blk = pl.program_id(1)

    @pl.when(t_blk == 0)
    def _():
        h_ref[...] = jnp.zeros_like(h_ref)
        c_ref[...] = jnp.zeros_like(c_ref)

    # Input projection for the whole TB-step block (off the critical path):
    # bf16 operands, f32 accumulation, bias folded in once per block.
    ep = emb_ref.shape[-1]
    emb_blk = emb_ref[...].reshape(tb * bb, ep).astype(bf16)
    gx = jnp.dot(emb_blk, wih_ref[...], preferred_element_type=jnp.float32)
    gx_ref[...] = (gx + bias_ref[...]).reshape(tb, bb, 4 * hp)

    def step(s, carry):
        h, c = carry
        gates = (jnp.dot(h.astype(bf16), whh_ref[...],
                         preferred_element_type=jnp.float32) + gx_ref[s])
        # PyTorch gate order i, f, g, o; each slice is a whole 128-lane tile.
        i_g = jax.nn.sigmoid(gates[:, 0 * hp:1 * hp])
        f_g = jax.nn.sigmoid(gates[:, 1 * hp:2 * hp])
        g_g = jnp.tanh(gates[:, 2 * hp:3 * hp])
        o_g = jax.nn.sigmoid(gates[:, 3 * hp:4 * hp])
        c_new = f_g * c + i_g * g_g
        h_new = o_g * jnp.tanh(c_new)
        hs_ref[s] = h_new
        return h_new, c_new

    h_fin, c_fin = jax.lax.fori_loop(
        0, tb, step, (h_ref[...], c_ref[...]), unroll=True)
    h_ref[...] = h_fin
    c_ref[...] = c_fin


# ----------------------------------------------------------------------------
# Kernel 2: vocab projection + log_softmax, parallel over row tiles of (B*T).
# ----------------------------------------------------------------------------
def _proj_logsoftmax_kernel(h_ref,      # (RT, Hp)  f32
                            wlin_ref,   # (Hp, Vp)  bf16
                            blin_ref,   # (1, Vp)   f32, padded lanes = -1e30
                            out_ref):   # (RT, Vp)  f32
    logits = (jnp.dot(h_ref[...].astype(jnp.bfloat16), wlin_ref[...],
                      preferred_element_type=jnp.float32) + blin_ref[...])
    m = jnp.max(logits, axis=-1, keepdims=True)
    z = logits - m
    lse = jnp.log(jnp.sum(jnp.exp(z), axis=-1, keepdims=True))
    out_ref[...] = z - lse


# ----------------------------------------------------------------------------
# Wrapper
# ----------------------------------------------------------------------------
def target_lstm_forward(x_tokens, params):
    """x_tokens: (B, T) int32.  Returns (B*T, num_emb) float32 log-probs."""
    emb_table, w_ih, w_hh, b_ih, b_hh, w_lin, b_lin = params
    B, T = x_tokens.shape
    V, E = emb_table.shape
    H = w_hh.shape[1]

    f32, bf16 = jnp.float32, jnp.bfloat16

    # Padded dims: lanes (last dim) multiples of 128, sublanes multiples of 8.
    Hp = _round_up(H, 128)
    Ep = _round_up(E, 128)
    Vp = _round_up(V, 128)
    TB = 8                                   # timesteps per recurrent grid step
    Tp = _round_up(T, TB)
    # Batch tiling: two batch blocks when B > 8 so the serial recurrence can be
    # megacore-sharded across TensorCores (v7x); one block otherwise.
    if B <= 8:
        Bp = _round_up(B, 8)
        BB = Bp
    else:
        Bp = _round_up(B, 16)
        BB = Bp // 2

    # --- gate-padded weights (per-gate H -> Hp keeps i|f|g|o lane-tile slices) --
    wih_t = jnp.pad(jnp.transpose(w_ih).reshape(E, 4, H),
                    ((0, Ep - E), (0, 0), (0, Hp - H))).reshape(Ep, 4 * Hp)
    whh_t = jnp.pad(jnp.transpose(w_hh).reshape(H, 4, H),
                    ((0, Hp - H), (0, 0), (0, Hp - H))).reshape(Hp, 4 * Hp)
    bias = jnp.pad((b_ih + b_hh).reshape(4, H),
                   ((0, 0), (0, Hp - H))).reshape(1, 4 * Hp).astype(f32)
    wlin_t = jnp.pad(jnp.transpose(w_lin), ((0, Hp - H), (0, Vp - V)))
    blin = jnp.pad(b_lin, (0, Vp - V),
                   constant_values=-1e30)[None, :].astype(f32)
    # bf16 MXU operands (all accumulation / elementwise math stays f32).
    wih_t = wih_t.astype(bf16)
    whh_t = whh_t.astype(bf16)
    wlin_t = wlin_t.astype(bf16)

    # --- embeddings produced directly in time-major (Tp, Bp, Ep) layout --------
    # Only the tiny int token array is transposed/padded; the table is lane-
    # padded once.  No gates_x materialization, no float transposes.
    xT = jnp.pad(jnp.transpose(x_tokens), ((0, Tp - T), (0, Bp - B)))
    emb = jnp.pad(emb_table, ((0, 0), (0, Ep - E))).astype(f32)[xT]

    # --- serial recurrence over time (batch-parallel outer grid axis) ----------
    rec_kernel = functools.partial(_lstm_recurrent_kernel, hp=Hp, tb=TB, bb=BB)
    rec_vmem = (2 * TB * BB * Ep * 4        # emb blocks (double-buffered)
                + Ep * 4 * Hp * 2           # W_ih^T (bf16, single-buffered)
                + Hp * 4 * Hp * 2           # W_hh^T (bf16, single-buffered)
                + 4 * Hp * 4                # bias
                + 2 * TB * BB * Hp * 4      # hs output blocks (double-buffered)
                + TB * BB * 4 * Hp * 4      # gates_x scratch
                + 2 * BB * Hp * 4)          # h / c scratch
    hs_tm = pl.pallas_call(
        rec_kernel,
        out_shape=jax.ShapeDtypeStruct((Tp, Bp, Hp), f32),
        grid_spec=pltpu.PrefetchScalarGridSpec(
            num_scalar_prefetch=0,
            grid=(Bp // BB, Tp // TB),
            in_specs=[
                pl.BlockSpec((TB, BB, Ep), lambda b, t: (t, b, 0)),    # emb
                _invariant_spec((Ep, 4 * Hp), lambda b, t: (0, 0)),    # W_ih^T
                _invariant_spec((Hp, 4 * Hp), lambda b, t: (0, 0)),    # W_hh^T
                _invariant_spec((1, 4 * Hp), lambda b, t: (0, 0)),     # bias
            ],
            out_specs=pl.BlockSpec((TB, BB, Hp), lambda b, t: (t, b, 0)),
            scratch_shapes=[
                pltpu.VMEM((TB, BB, 4 * Hp), f32),   # gates_x for the block
                pltpu.VMEM((BB, Hp), f32),           # h state
                pltpu.VMEM((BB, Hp), f32),           # c state
            ],
        ),
        compiler_params=pltpu.CompilerParams(
            dimension_semantics=("parallel", "arbitrary"),
            vmem_limit_bytes=_vmem_limit(rec_vmem),
        ),
    )(emb, wih_t, whh_t, bias)

    # (Tp,Bp,Hp) -> (B*T, Hp) in PyTorch row order (b*T + t); small XLA glue.
    hs = jnp.transpose(hs_tm[:T, :B], (1, 0, 2)).reshape(B * T, Hp)

    # --- vocab projection + log_softmax, parallel over row tiles ---------------
    BT = B * T
    if BT < 256:
        RT = _round_up(BT, 8)                       # single block
    else:
        RT = 512 if BT >= 1024 else 256
        while RT > 128 and 2 * RT * Vp * 4 + Hp * Vp * 2 > (28 << 20):
            RT //= 2
    BTp = _round_up(BT, RT)
    hs_p = jnp.pad(hs, ((0, BTp - BT), (0, 0)))

    proj_vmem = (2 * RT * Hp * 4                # hs blocks (double-buffered)
                 + Hp * Vp * 2 + Vp * 4         # weights / bias (single-buffered)
                 + 2 * RT * Vp * 4)             # output blocks (double-buffered)
    out_p = pl.pallas_call(
        _proj_logsoftmax_kernel,
        out_shape=jax.ShapeDtypeStruct((BTp, Vp), f32),
        grid_spec=pltpu.PrefetchScalarGridSpec(
            num_scalar_prefetch=0,
            grid=(BTp // RT,),
            in_specs=[
                pl.BlockSpec((RT, Hp), lambda r: (r, 0)),
                _invariant_spec((Hp, Vp), lambda r: (0, 0)),
                _invariant_spec((1, Vp), lambda r: (0, 0)),
            ],
            out_specs=pl.BlockSpec((RT, Vp), lambda r: (r, 0)),
        ),
        compiler_params=pltpu.CompilerParams(
            dimension_semantics=("parallel",),
            vmem_limit_bytes=_vmem_limit(proj_vmem),
        ),
    )(hs_p, wlin_t, blin)

    return out_p[:BT, :V]


# ----------------------------------------------------------------------------
# Pure-JAX reference (module forward; mxu_dtype mirrors the kernel's precision
# policy: matmul operands cast, f32 accumulation and elementwise math).
# ----------------------------------------------------------------------------
def _reference_forward(x_tokens, params, mxu_dtype=jnp.bfloat16):
    emb_table, w_ih, w_hh, b_ih, b_hh, w_lin, b_lin = params
    B, T = x_tokens.shape
    H = w_hh.shape[1]
    f32 = jnp.float32
    cast = lambda a: a.astype(mxu_dtype)
    emb = emb_table[x_tokens]                      # (B, T, E)

    def step(carry, x_t):
        h, c = carry
        gates = (jnp.dot(cast(x_t), cast(w_ih.T), preferred_element_type=f32)
                 + b_ih
                 + jnp.dot(cast(h), cast(w_hh.T), preferred_element_type=f32)
                 + b_hh)
        i = jax.nn.sigmoid(gates[:, 0 * H:1 * H])
        f = jax.nn.sigmoid(gates[:, 1 * H:2 * H])
        g = jnp.tanh(gates[:, 2 * H:3 * H])
        o = jax.nn.sigmoid(gates[:, 3 * H:4 * H])
        c_new = f * c + i * g
        h_new = o * jnp.tanh(c_new)
        return (h_new, c_new), h_new

    h0 = jnp.zeros((B, H), f32)
    c0 = jnp.zeros((B, H), f32)
    _, hs = jax.lax.scan(step, (h0, c0), jnp.transpose(emb, (1, 0, 2)))
    outs = jnp.transpose(hs, (1, 0, 2)).reshape(B * T, H)
    logits = (jnp.dot(cast(outs), cast(w_lin.T), preferred_element_type=f32)
              + b_lin)
    return jax.nn.log_softmax(logits, axis=1)


if __name__ == "__main__":
    # Small, module-consistent shapes.
    num_emb, emb_dim, hidden_dim = 16, 32, 32
    batch, seq_len = 2, 8

    key = jax.random.PRNGKey(0)
    ks = jax.random.split(key, 8)

    # init_params(): all parameters ~ N(0, 1), deterministic in-script.
    emb_table = jax.random.normal(ks[0], (num_emb, emb_dim), jnp.float32)
    w_ih = jax.random.normal(ks[1], (4 * hidden_dim, emb_dim), jnp.float32)
    w_hh = jax.random.normal(ks[2], (4 * hidden_dim, hidden_dim), jnp.float32)
    b_ih = jax.random.normal(ks[3], (4 * hidden_dim,), jnp.float32)
    b_hh = jax.random.normal(ks[4], (4 * hidden_dim,), jnp.float32)
    w_lin = jax.random.normal(ks[5], (num_emb, hidden_dim), jnp.float32)
    b_lin = jax.random.normal(ks[6], (num_emb,), jnp.float32)
    params = (emb_table, w_ih, w_hh, b_ih, b_hh, w_lin, b_lin)

    x = jax.random.randint(ks[7], (batch, seq_len), 0, num_emb, jnp.int32)

    pred = jax.block_until_ready(target_lstm_forward(x, params))
    ref = jax.block_until_ready(_reference_forward(x, params))

    assert pred.shape == (batch * seq_len, num_emb), pred.shape
    assert jnp.allclose(pred, ref, atol=2e-3, rtol=2e-3), \
        f"max abs err {jnp.max(jnp.abs(pred - ref))}"
    print("KERNEL_OK")
</pallas_src>

<mosaic_0001>
module attributes {stable_mosaic.version = 11 : i64} {
  func.func @_lstm_recurrent_kernel(%arg0: i32, %arg1: i32, %arg2: memref<8x8x128xf32, #tpu.memory_space<vmem>>, %arg3: memref<128x512xbf16, #tpu.memory_space<vmem>>, %arg4: memref<128x512xbf16, #tpu.memory_space<vmem>>, %arg5: memref<1x512xf32, #tpu.memory_space<vmem>>, %arg6: memref<8x8x128xf32, #tpu.memory_space<vmem>>, %arg7: memref<8x8x512xf32, #tpu.memory_space<vmem>>, %arg8: memref<8x128xf32, #tpu.memory_space<vmem>>, %arg9: memref<8x128xf32, #tpu.memory_space<vmem>>) attributes {dimension_semantics = [#tpu.dimension_semantics<parallel>, #tpu.dimension_semantics<arbitrary>], iteration_bounds = array<i64: 1, 1>, scalar_prefetch = 0 : i64, scratch_operands = 3 : i64, tpu.core_type = #tpu.core_type<tc>, window_params = [{transform_indices = @transform_0, window_bounds = array<i64: 8, 8, 128>}, {pipeline_mode = #tpu.pipeline_mode<synchronous>, transform_indices = @transform_1, window_bounds = array<i64: 128, 512>}, {pipeline_mode = #tpu.pipeline_mode<synchronous>, transform_indices = @transform_2, window_bounds = array<i64: 128, 512>}, {pipeline_mode = #tpu.pipeline_mode<synchronous>, transform_indices = @transform_3, window_bounds = array<i64: 1, 512>}, {transform_indices = @transform_4, window_bounds = array<i64: 8, 8, 128>}]} {
    %c0_i32 = arith.constant 0 : i32
    %0 = arith.cmpi eq, %arg1, %c0_i32 : i32
    %1 = arith.extui %0 : i1 to i32
    %c0_i32_0 = arith.constant 0 : i32
    %2 = arith.cmpi ne, %1, %c0_i32_0 : i32
    scf.if %2 {
      %cst_99 = arith.constant 0.000000e+00 : f32
      %305 = vector.broadcast %cst_99 : f32 to vector<8x128xf32>
      %c0_100 = arith.constant 0 : index
      %c0_101 = arith.constant 0 : index
      %306 = vector.load %arg8[%c0_100, %c0_101] : memref<8x128xf32, #tpu.memory_space<vmem>>, vector<8x128xf32>
      tpu.vector_store %arg8[%c0_100, %c0_101], %305 {strides = array<i32>} : memref<8x128xf32, #tpu.memory_space<vmem>>, vector<8x128xf32>,
      %cst_102 = arith.constant 0.000000e+00 : f32
      %307 = vector.broadcast %cst_102 : f32 to vector<8x128xf32>
      %c0_103 = arith.constant 0 : index
      %c0_104 = arith.constant 0 : index
      %308 = vector.load %arg9[%c0_103, %c0_104] : memref<8x128xf32, #tpu.memory_space<vmem>>, vector<8x128xf32>
      tpu.vector_store %arg9[%c0_103, %c0_104], %307 {strides = array<i32>} : memref<8x128xf32, #tpu.memory_space<vmem>>, vector<8x128xf32>,
    } else {
    }
    %c0 = arith.constant 0 : index
    %c0_1 = arith.constant 0 : index
    %c0_2 = arith.constant 0 : index
    %3 = vector.load %arg2[%c0, %c0_1, %c0_2] : memref<8x8x128xf32, #tpu.memory_space<vmem>>, vector<8x8x128xf32>
    %4 = vector.shape_cast %3 : vector<8x8x128xf32> to vector<64x128xf32>
    %5 = arith.truncf %4 : vector<64x128xf32> to vector<64x128xbf16>
    %c0_3 = arith.constant 0 : index
    %c0_4 = arith.constant 0 : index
    %6 = vector.load %arg3[%c0_3, %c0_4] : memref<128x512xbf16, #tpu.memory_space<vmem>>, vector<128x512xbf16>
    %cst = arith.constant dense<0.000000e+00> : vector<64x512xf32>
    %7 = tpu.matmul %5, %6, %cst {dimension_numbers = #tpu.dot_dimension_numbers<[1], [0], [0], [1], [0, 0, 1, 1], [], []>} : vector<64x128xbf16>, vector<128x512xbf16>, vector<64x512xf32> -> vector<64x512xf32>
    %c0_5 = arith.constant 0 : index
    %c0_6 = arith.constant 0 : index
    %8 = vector.load %arg5[%c0_5, %c0_6] : memref<1x512xf32, #tpu.memory_space<vmem>>, vector<1x512xf32>
    %9 = vector.broadcast %8 : vector<1x512xf32> to vector<64x512xf32>
    %10 = arith.addf %7, %9 : vector<64x512xf32>
    %11 = vector.shape_cast %10 : vector<64x512xf32> to vector<8x8x512xf32>
    %c0_7 = arith.constant 0 : index
    %c0_8 = arith.constant 0 : index
    %c0_9 = arith.constant 0 : index
    %12 = vector.load %arg7[%c0_7, %c0_8, %c0_9] : memref<8x8x512xf32, #tpu.memory_space<vmem>>, vector<8x8x512xf32>
    tpu.vector_store %arg7[%c0_7, %c0_8, %c0_9], %11 {strides = array<i32>} : memref<8x8x512xf32, #tpu.memory_space<vmem>>, vector<8x8x512xf32>,
    %c0_10 = arith.constant 0 : index
    %c0_11 = arith.constant 0 : index
    %13 = vector.load %arg8[%c0_10, %c0_11] : memref<8x128xf32, #tpu.memory_space<vmem>>, vector<8x128xf32>
    %c0_12 = arith.constant 0 : index
    %c0_13 = arith.constant 0 : index
    %14 = vector.load %arg9[%c0_12, %c0_13] : memref<8x128xf32, #tpu.memory_space<vmem>>, vector<8x128xf32>
    %c0_i32_14 = arith.constant 0 : i32
    %15 = arith.truncf %13 : vector<8x128xf32> to vector<8x128xbf16>
    %c0_15 = arith.constant 0 : index
    %c0_16 = arith.constant 0 : index
    %16 = vector.load %arg4[%c0_15, %c0_16] : memref<128x512xbf16, #tpu.memory_space<vmem>>, vector<128x512xbf16>
    %cst_17 = arith.constant dense<0.000000e+00> : vector<8x512xf32>
    %17 = tpu.matmul %15, %16, %cst_17 {dimension_numbers = #tpu.dot_dimension_numbers<[1], [0], [0], [1], [0, 0, 1, 1], [], []>} : vector<8x128xbf16>, vector<128x512xbf16>, vector<8x512xf32> -> vector<8x512xf32>
    %18 = arith.index_cast %c0_i32_14 : i32 to index
    %c0_18 = arith.constant 0 : index
    %c0_19 = arith.constant 0 : index
    %19 = vector.load %arg7[%18, %c0_18, %c0_19] : memref<8x8x512xf32, #tpu.memory_space<vmem>>, vector<1x8x512xf32>
    %20 = vector.shape_cast %19 : vector<1x8x512xf32> to vector<8x512xf32>
    %21 = arith.addf %17, %20 : vector<8x512xf32>
    %22 = vector.extract_strided_slice %21 {offsets = [0, 0], sizes = [8, 128], strides = [1, 1]} : vector<8x512xf32> to vector<8x128xf32>
    %23 = arith.negf %22 : vector<8x128xf32>
    %24 = math.exp %23 : vector<8x128xf32>
    %cst_20 = arith.constant 1.000000e+00 : f32
    %25 = vector.broadcast %cst_20 : f32 to vector<8x128xf32>
    %26 = arith.addf %25, %24 : vector<8x128xf32>
    %27 = arith.divf %25, %26 : vector<8x128xf32>
    %28 = vector.extract_strided_slice %21 {offsets = [0, 128], sizes = [8, 128], strides = [1, 1]} : vector<8x512xf32> to vector<8x128xf32>
    %29 = arith.negf %28 : vector<8x128xf32>
    %30 = math.exp %29 : vector<8x128xf32>
    %cst_21 = arith.constant 1.000000e+00 : f32
    %31 = vector.broadcast %cst_21 : f32 to vector<8x128xf32>
    %32 = arith.addf %31, %30 : vector<8x128xf32>
    %33 = arith.divf %31, %32 : vector<8x128xf32>
    %34 = vector.extract_strided_slice %21 {offsets = [0, 256], sizes = [8, 128], strides = [1, 1]} : vector<8x512xf32> to vector<8x128xf32>
    %35 = math.tanh %34 : vector<8x128xf32>
    %36 = vector.extract_strided_slice %21 {offsets = [0, 384], sizes = [8, 128], strides = [1, 1]} : vector<8x512xf32> to vector<8x128xf32>
    %37 = arith.negf %36 : vector<8x128xf32>
    %38 = math.exp %37 : vector<8x128xf32>
    %cst_22 = arith.constant 1.000000e+00 : f32
    %39 = vector.broadcast %cst_22 : f32 to vector<8x128xf32>
    %40 = arith.addf %39, %38 : vector<8x128xf32>
    %41 = arith.divf %39, %40 : vector<8x128xf32>
    %42 = arith.mulf %33, %14 : vector<8x128xf32>
    %43 = arith.mulf %27, %35 : vector<8x128xf32>
    %44 = arith.addf %42, %43 : vector<8x128xf32>
    %45 = math.tanh %44 : vector<8x128xf32>
    %46 = arith.mulf %41, %45 : vector<8x128xf32>
    %47 = arith.index_cast %c0_i32_14 : i32 to index
    %c0_23 = arith.constant 0 : index
    %c0_24 = arith.constant 0 : index
    %48 = vector.load %arg6[%47, %c0_23, %c0_24] : memref<8x8x128xf32, #tpu.memory_space<vmem>>, vector<1x8x128xf32>
    %49 = vector.shape_cast %48 : vector<1x8x128xf32> to vector<8x128xf32>
    %50 = vector.shape_cast %46 : vector<8x128xf32> to vector<1x8x128xf32>
    tpu.vector_store %arg6[%47, %c0_23, %c0_24], %50 {strides = array<i32>} : memref<8x8x128xf32, #tpu.memory_space<vmem>>, vector<1x8x128xf32>,
    %c1_i32 = arith.constant 1 : i32
    %51 = arith.truncf %46 : vector<8x128xf32> to vector<8x128xbf16>
    %c0_25 = arith.constant 0 : index
    %c0_26 = arith.constant 0 : index
    %52 = vector.load %arg4[%c0_25, %c0_26] : memref<128x512xbf16, #tpu.memory_space<vmem>>, vector<128x512xbf16>
    %cst_27 = arith.constant dense<0.000000e+00> : vector<8x512xf32>
    %53 = tpu.matmul %51, %52, %cst_27 {dimension_numbers = #tpu.dot_dimension_numbers<[1], [0], [0], [1], [0, 0, 1, 1], [], []>} : vector<8x128xbf16>, vector<128x512xbf16>, vector<8x512xf32> -> vector<8x512xf32>
    %54 = arith.index_cast %c1_i32 : i32 to index
    %c0_28 = arith.constant 0 : index
    %c0_29 = arith.constant 0 : index
    %55 = vector.load %arg7[%54, %c0_28, %c0_29] : memref<8x8x512xf32, #tpu.memory_space<vmem>>, vector<1x8x512xf32>
    %56 = vector.shape_cast %55 : vector<1x8x512xf32> to vector<8x512xf32>
    %57 = arith.addf %53, %56 : vector<8x512xf32>
    %58 = vector.extract_strided_slice %57 {offsets = [0, 0], sizes = [8, 128], strides = [1, 1]} : vector<8x512xf32> to vector<8x128xf32>
    %59 = arith.negf %58 : vector<8x128xf32>
    %60 = math.exp %59 : vector<8x128xf32>
    %cst_30 = arith.constant 1.000000e+00 : f32
    %61 = vector.broadcast %cst_30 : f32 to vector<8x128xf32>
    %62 = arith.addf %61, %60 : vector<8x128xf32>
    %63 = arith.divf %61, %62 : vector<8x128xf32>
    %64 = vector.extract_strided_slice %57 {offsets = [0, 128], sizes = [8, 128], strides = [1, 1]} : vector<8x512xf32> to vector<8x128xf32>
    %65 = arith.negf %64 : vector<8x128xf32>
    %66 = math.exp %65 : vector<8x128xf32>
    %cst_31 = arith.constant 1.000000e+00 : f32
    %67 = vector.broadcast %cst_31 : f32 to vector<8x128xf32>
    %68 = arith.addf %67, %66 : vector<8x128xf32>
    %69 = arith.divf %67, %68 : vector<8x128xf32>
    %70 = vector.extract_strided_slice %57 {offsets = [0, 256], sizes = [8, 128], strides = [1, 1]} : vector<8x512xf32> to vector<8x128xf32>
    %71 = math.tanh %70 : vector<8x128xf32>
    %72 = vector.extract_strided_slice %57 {offsets = [0, 384], sizes = [8, 128], strides = [1, 1]} : vector<8x512xf32> to vector<8x128xf32>
    %73 = arith.negf %72 : vector<8x128xf32>
    %74 = math.exp %73 : vector<8x128xf32>
    %cst_32 = arith.constant 1.000000e+00 : f32
    %75 = vector.broadcast %cst_32 : f32 to vector<8x128xf32>
    %76 = arith.addf %75, %74 : vector<8x128xf32>
    %77 = arith.divf %75, %76 : vector<8x128xf32>
    %78 = arith.mulf %69, %44 : vector<8x128xf32>
    %79 = arith.mulf %63, %71 : vector<8x128xf32>
    %80 = arith.addf %78, %79 : vector<8x128xf32>
    %81 = math.tanh %80 : vector<8x128xf32>
    %82 = arith.mulf %77, %81 : vector<8x128xf32>
    %83 = arith.index_cast %c1_i32 : i32 to index
    %c0_33 = arith.constant 0 : index
    %c0_34 = arith.constant 0 : index
    %84 = vector.load %arg6[%83, %c0_33, %c0_34] : memref<8x8x128xf32, #tpu.memory_space<vmem>>, vector<1x8x128xf32>
    %85 = vector.shape_cast %84 : vector<1x8x128xf32> to vector<8x128xf32>
    %86 = vector.shape_cast %82 : vector<8x128xf32> to vector<1x8x128xf32>
    tpu.vector_store %arg6[%83, %c0_33, %c0_34], %86 {strides = array<i32>} : memref<8x8x128xf32, #tpu.memory_space<vmem>>, vector<1x8x128xf32>,
    %c2_i32 = arith.constant 2 : i32
    %87 = arith.truncf %82 : vector<8x128xf32> to vector<8x128xbf16>
    %c0_35 = arith.constant 0 : index
    %c0_36 = arith.constant 0 : index
    %88 = vector.load %arg4[%c0_35, %c0_36] : memref<128x512xbf16, #tpu.memory_space<vmem>>, vector<128x512xbf16>
    %cst_37 = arith.constant dense<0.000000e+00> : vector<8x512xf32>
    %89 = tpu.matmul %87, %88, %cst_37 {dimension_numbers = #tpu.dot_dimension_numbers<[1], [0], [0], [1], [0, 0, 1, 1], [], []>} : vector<8x128xbf16>, vector<128x512xbf16>, vector<8x512xf32> -> vector<8x512xf32>
    %90 = arith.index_cast %c2_i32 : i32 to index
    %c0_38 = arith.constant 0 : index
    %c0_39 = arith.constant 0 : index
    %91 = vector.load %arg7[%90, %c0_38, %c0_39] : memref<8x8x512xf32, #tpu.memory_space<vmem>>, vector<1x8x512xf32>
    %92 = vector.shape_cast %91 : vector<1x8x512xf32> to vector<8x512xf32>
    %93 = arith.addf %89, %92 : vector<8x512xf32>
    %94 = vector.extract_strided_slice %93 {offsets = [0, 0], sizes = [8, 128], strides = [1, 1]} : vector<8x512xf32> to vector<8x128xf32>
    %95 = arith.negf %94 : vector<8x128xf32>
    %96 = math.exp %95 : vector<8x128xf32>
    %cst_40 = arith.constant 1.000000e+00 : f32
    %97 = vector.broadcast %cst_40 : f32 to vector<8x128xf32>
    %98 = arith.addf %97, %96 : vector<8x128xf32>
    %99 = arith.divf %97, %98 : vector<8x128xf32>
    %100 = vector.extract_strided_slice %93 {offsets = [0, 128], sizes = [8, 128], strides = [1, 1]} : vector<8x512xf32> to vector<8x128xf32>
    %101 = arith.negf %100 : vector<8x128xf32>
    %102 = math.exp %101 : vector<8x128xf32>
    %cst_41 = arith.constant 1.000000e+00 : f32
    %103 = vector.broadcast %cst_41 : f32 to vector<8x128xf32>
    %104 = arith.addf %103, %102 : vector<8x128xf32>
    %105 = arith.divf %103, %104 : vector<8x128xf32>
    %106 = vector.extract_strided_slice %93 {offsets = [0, 256], sizes = [8, 128], strides = [1, 1]} : vector<8x512xf32> to vector<8x128xf32>
    %107 = math.tanh %106 : vector<8x128xf32>
    %108 = vector.extract_strided_slice %93 {offsets = [0, 384], sizes = [8, 128], strides = [1, 1]} : vector<8x512xf32> to vector<8x128xf32>
    %109 = arith.negf %108 : vector<8x128xf32>
    %110 = math.exp %109 : vector<8x128xf32>
    %cst_42 = arith.constant 1.000000e+00 : f32
    %111 = vector.broadcast %cst_42 : f32 to vector<8x128xf32>
    %112 = arith.addf %111, %110 : vector<8x128xf32>
    %113 = arith.divf %111, %112 : vector<8x128xf32>
    %114 = arith.mulf %105, %80 : vector<8x128xf32>
    %115 = arith.mulf %99, %107 : vector<8x128xf32>
    %116 = arith.addf %114, %115 : vector<8x128xf32>
    %117 = math.tanh %116 : vector<8x128xf32>
    %118 = arith.mulf %113, %117 : vector<8x128xf32>
    %119 = arith.index_cast %c2_i32 : i32 to index
    %c0_43 = arith.constant 0 : index
    %c0_44 = arith.constant 0 : index
    %120 = vector.load %arg6[%119, %c0_43, %c0_44] : memref<8x8x128xf32, #tpu.memory_space<vmem>>, vector<1x8x128xf32>
    %121 = vector.shape_cast %120 : vector<1x8x128xf32> to vector<8x128xf32>
    %122 = vector.shape_cast %118 : vector<8x128xf32> to vector<1x8x128xf32>
    tpu.vector_store %arg6[%119, %c0_43, %c0_44], %122 {strides = array<i32>} : memref<8x8x128xf32, #tpu.memory_space<vmem>>, vector<1x8x128xf32>,
    %c3_i32 = arith.constant 3 : i32
    %123 = arith.truncf %118 : vector<8x128xf32> to vector<8x128xbf16>
    %c0_45 = arith.constant 0 : index
    %c0_46 = arith.constant 0 : index
    %124 = vector.load %arg4[%c0_45, %c0_46] : memref<128x512xbf16, #tpu.memory_space<vmem>>, vector<128x512xbf16>
    %cst_47 = arith.constant dense<0.000000e+00> : vector<8x512xf32>
    %125 = tpu.matmul %123, %124, %cst_47 {dimension_numbers = #tpu.dot_dimension_numbers<[1], [0], [0], [1], [0, 0, 1, 1], [], []>} : vector<8x128xbf16>, vector<128x512xbf16>, vector<8x512xf32> -> vector<8x512xf32>
    %126 = arith.index_cast %c3_i32 : i32 to index
    %c0_48 = arith.constant 0 : index
    %c0_49 = arith.constant 0 : index
    %127 = vector.load %arg7[%126, %c0_48, %c0_49] : memref<8x8x512xf32, #tpu.memory_space<vmem>>, vector<1x8x512xf32>
    %128 = vector.shape_cast %127 : vector<1x8x512xf32> to vector<8x512xf32>
    %129 = arith.addf %125, %128 : vector<8x512xf32>
    %130 = vector.extract_strided_slice %129 {offsets = [0, 0], sizes = [8, 128], strides = [1, 1]} : vector<8x512xf32> to vector<8x128xf32>
    %131 = arith.negf %130 : vector<8x128xf32>
    %132 = math.exp %131 : vector<8x128xf32>
    %cst_50 = arith.constant 1.000000e+00 : f32
    %133 = vector.broadcast %cst_50 : f32 to vector<8x128xf32>
    %134 = arith.addf %133, %132 : vector<8x128xf32>
    %135 = arith.divf %133, %134 : vector<8x128xf32>
    %136 = vector.extract_strided_slice %129 {offsets = [0, 128], sizes = [8, 128], strides = [1, 1]} : vector<8x512xf32> to vector<8x128xf32>
    %137 = arith.negf %136 : vector<8x128xf32>
    %138 = math.exp %137 : vector<8x128xf32>
    %cst_51 = arith.constant 1.000000e+00 : f32
    %139 = vector.broadcast %cst_51 : f32 to vector<8x128xf32>
    %140 = arith.addf %139, %138 : vector<8x128xf32>
    %141 = arith.divf %139, %140 : vector<8x128xf32>
    %142 = vector.extract_strided_slice %129 {offsets = [0, 256], sizes = [8, 128], strides = [1, 1]} : vector<8x512xf32> to vector<8x128xf32>
    %143 = math.tanh %142 : vector<8x128xf32>
    %144 = vector.extract_strided_slice %129 {offsets = [0, 384], sizes = [8, 128], strides = [1, 1]} : vector<8x512xf32> to vector<8x128xf32>
    %145 = arith.negf %144 : vector<8x128xf32>
    %146 = math.exp %145 : vector<8x128xf32>
    %cst_52 = arith.constant 1.000000e+00 : f32
    %147 = vector.broadcast %cst_52 : f32 to vector<8x128xf32>
    %148 = arith.addf %147, %146 : vector<8x128xf32>
    %149 = arith.divf %147, %148 : vector<8x128xf32>
    %150 = arith.mulf %141, %116 : vector<8x128xf32>
    %151 = arith.mulf %135, %143 : vector<8x128xf32>
    %152 = arith.addf %150, %151 : vector<8x128xf32>
    %153 = math.tanh %152 : vector<8x128xf32>
    %154 = arith.mulf %149, %153 : vector<8x128xf32>
    %155 = arith.index_cast %c3_i32 : i32 to index
    %c0_53 = arith.constant 0 : index
    %c0_54 = arith.constant 0 : index
    %156 = vector.load %arg6[%155, %c0_53, %c0_54] : memref<8x8x128xf32, #tpu.memory_space<vmem>>, vector<1x8x128xf32>
    %157 = vector.shape_cast %156 : vector<1x8x128xf32> to vector<8x128xf32>
    %158 = vector.shape_cast %154 : vector<8x128xf32> to vector<1x8x128xf32>
    tpu.vector_store %arg6[%155, %c0_53, %c0_54], %158 {strides = array<i32>} : memref<8x8x128xf32, #tpu.memory_space<vmem>>, vector<1x8x128xf32>,
    %c4_i32 = arith.constant 4 : i32
    %159 = arith.truncf %154 : vector<8x128xf32> to vector<8x128xbf16>
    %c0_55 = arith.constant 0 : index
    %c0_56 = arith.constant 0 : index
    %160 = vector.load %arg4[%c0_55, %c0_56] : memref<128x512xbf16, #tpu.memory_space<vmem>>, vector<128x512xbf16>
    %cst_57 = arith.constant dense<0.000000e+00> : vector<8x512xf32>
    %161 = tpu.matmul %159, %160, %cst_57 {dimension_numbers = #tpu.dot_dimension_numbers<[1], [0], [0], [1], [0, 0, 1, 1], [], []>} : vector<8x128xbf16>, vector<128x512xbf16>, vector<8x512xf32> -> vector<8x512xf32>
    %162 = arith.index_cast %c4_i32 : i32 to index
    %c0_58 = arith.constant 0 : index
    %c0_59 = arith.constant 0 : index
    %163 = vector.load %arg7[%162, %c0_58, %c0_59] : memref<8x8x512xf32, #tpu.memory_space<vmem>>, vector<1x8x512xf32>
    %164 = vector.shape_cast %163 : vector<1x8x512xf32> to vector<8x512xf32>
    %165 = arith.addf %161, %164 : vector<8x512xf32>
    %166 = vector.extract_strided_slice %165 {offsets = [0, 0], sizes = [8, 128], strides = [1, 1]} : vector<8x512xf32> to vector<8x128xf32>
    %167 = arith.negf %166 : vector<8x128xf32>
    %168 = math.exp %167 : vector<8x128xf32>
    %cst_60 = arith.constant 1.000000e+00 : f32
    %169 = vector.broadcast %cst_60 : f32 to vector<8x128xf32>
    %170 = arith.addf %169, %168 : vector<8x128xf32>
    %171 = arith.divf %169, %170 : vector<8x128xf32>
    %172 = vector.extract_strided_slice %165 {offsets = [0, 128], sizes = [8, 128], strides = [1, 1]} : vector<8x512xf32> to vector<8x128xf32>
    %173 = arith.negf %172 : vector<8x128xf32>
    %174 = math.exp %173 : vector<8x128xf32>
    %cst_61 = arith.constant 1.000000e+00 : f32
    %175 = vector.broadcast %cst_61 : f32 to vector<8x128xf32>
    %176 = arith.addf %175, %174 : vector<8x128xf32>
    %177 = arith.divf %175, %176 : vector<8x128xf32>
    %178 = vector.extract_strided_slice %165 {offsets = [0, 256], sizes = [8, 128], strides = [1, 1]} : vector<8x512xf32> to vector<8x128xf32>
    %179 = math.tanh %178 : vector<8x128xf32>
    %180 = vector.extract_strided_slice %165 {offsets = [0, 384], sizes = [8, 128], strides = [1, 1]} : vector<8x512xf32> to vector<8x128xf32>
    %181 = arith.negf %180 : vector<8x128xf32>
    %182 = math.exp %181 : vector<8x128xf32>
    %cst_62 = arith.constant 1.000000e+00 : f32
    %183 = vector.broadcast %cst_62 : f32 to vector<8x128xf32>
    %184 = arith.addf %183, %182 : vector<8x128xf32>
    %185 = arith.divf %183, %184 : vector<8x128xf32>
    %186 = arith.mulf %177, %152 : vector<8x128xf32>
    %187 = arith.mulf %171, %179 : vector<8x128xf32>
    %188 = arith.addf %186, %187 : vector<8x128xf32>
    %189 = math.tanh %188 : vector<8x128xf32>
    %190 = arith.mulf %185, %189 : vector<8x128xf32>
    %191 = arith.index_cast %c4_i32 : i32 to index
    %c0_63 = arith.constant 0 : index
    %c0_64 = arith.constant 0 : index
    %192 = vector.load %arg6[%191, %c0_63, %c0_64] : memref<8x8x128xf32, #tpu.memory_space<vmem>>, vector<1x8x128xf32>
    %193 = vector.shape_cast %192 : vector<1x8x128xf32> to vector<8x128xf32>
    %194 = vector.shape_cast %190 : vector<8x128xf32> to vector<1x8x128xf32>
    tpu.vector_store %arg6[%191, %c0_63, %c0_64], %194 {strides = array<i32>} : memref<8x8x128xf32, #tpu.memory_space<vmem>>, vector<1x8x128xf32>,
    %c5_i32 = arith.constant 5 : i32
    %195 = arith.truncf %190 : vector<8x128xf32> to vector<8x128xbf16>
    %c0_65 = arith.constant 0 : index
    %c0_66 = arith.constant 0 : index
    %196 = vector.load %arg4[%c0_65, %c0_66] : memref<128x512xbf16, #tpu.memory_space<vmem>>, vector<128x512xbf16>
    %cst_67 = arith.constant dense<0.000000e+00> : vector<8x512xf32>
    %197 = tpu.matmul %195, %196, %cst_67 {dimension_numbers = #tpu.dot_dimension_numbers<[1], [0], [0], [1], [0, 0, 1, 1], [], []>} : vector<8x128xbf16>, vector<128x512xbf16>, vector<8x512xf32> -> vector<8x512xf32>
    %198 = arith.index_cast %c5_i32 : i32 to index
    %c0_68 = arith.constant 0 : index
    %c0_69 = arith.constant 0 : index
    %199 = vector.load %arg7[%198, %c0_68, %c0_69] : memref<8x8x512xf32, #tpu.memory_space<vmem>>, vector<1x8x512xf32>
    %200 = vector.shape_cast %199 : vector<1x8x512xf32> to vector<8x512xf32>
    %201 = arith.addf %197, %200 : vector<8x512xf32>
    %202 = vector.extract_strided_slice %201 {offsets = [0, 0], sizes = [8, 128], strides = [1, 1]} : vector<8x512xf32> to vector<8x128xf32>
    %203 = arith.negf %202 : vector<8x128xf32>
    %204 = math.exp %203 : vector<8x128xf32>
    %cst_70 = arith.constant 1.000000e+00 : f32
    %205 = vector.broadcast %cst_70 : f32 to vector<8x128xf32>
    %206 = arith.addf %205, %204 : vector<8x128xf32>
    %207 = arith.divf %205, %206 : vector<8x128xf32>
    %208 = vector.extract_strided_slice %201 {offsets = [0, 128], sizes = [8, 128], strides = [1, 1]} : vector<8x512xf32> to vector<8x128xf32>
    %209 = arith.negf %208 : vector<8x128xf32>
    %210 = math.exp %209 : vector<8x128xf32>
    %cst_71 = arith.constant 1.000000e+00 : f32
    %211 = vector.broadcast %cst_71 : f32 to vector<8x128xf32>
    %212 = arith.addf %211, %210 : vector<8x128xf32>
    %213 = arith.divf %211, %212 : vector<8x128xf32>
    %214 = vector.extract_strided_slice %201 {offsets = [0, 256], sizes = [8, 128], strides = [1, 1]} : vector<8x512xf32> to vector<8x128xf32>
    %215 = math.tanh %214 : vector<8x128xf32>
    %216 = vector.extract_strided_slice %201 {offsets = [0, 384], sizes = [8, 128], strides = [1, 1]} : vector<8x512xf32> to vector<8x128xf32>
    %217 = arith.negf %216 : vector<8x128xf32>
    %218 = math.exp %217 : vector<8x128xf32>
    %cst_72 = arith.constant 1.000000e+00 : f32
    %219 = vector.broadcast %cst_72 : f32 to vector<8x128xf32>
    %220 = arith.addf %219, %218 : vector<8x128xf32>
    %221 = arith.divf %219, %220 : vector<8x128xf32>
    %222 = arith.mulf %213, %188 : vector<8x128xf32>
    %223 = arith.mulf %207, %215 : vector<8x128xf32>
    %224 = arith.addf %222, %223 : vector<8x128xf32>
    %225 = math.tanh %224 : vector<8x128xf32>
    %226 = arith.mulf %221, %225 : vector<8x128xf32>
    %227 = arith.index_cast %c5_i32 : i32 to index
    %c0_73 = arith.constant 0 : index
    %c0_74 = arith.constant 0 : index
    %228 = vector.load %arg6[%227, %c0_73, %c0_74] : memref<8x8x128xf32, #tpu.memory_space<vmem>>, vector<1x8x128xf32>
    %229 = vector.shape_cast %228 : vector<1x8x128xf32> to vector<8x128xf32>
    %230 = vector.shape_cast %226 : vector<8x128xf32> to vector<1x8x128xf32>
    tpu.vector_store %arg6[%227, %c0_73, %c0_74], %230 {strides = array<i32>} : memref<8x8x128xf32, #tpu.memory_space<vmem>>, vector<1x8x128xf32>,
    %c6_i32 = arith.constant 6 : i32
    %231 = arith.truncf %226 : vector<8x128xf32> to vector<8x128xbf16>
    %c0_75 = arith.constant 0 : index
    %c0_76 = arith.constant 0 : index
    %232 = vector.load %arg4[%c0_75, %c0_76] : memref<128x512xbf16, #tpu.memory_space<vmem>>, vector<128x512xbf16>
    %cst_77 = arith.constant dense<0.000000e+00> : vector<8x512xf32>
    %233 = tpu.matmul %231, %232, %cst_77 {dimension_numbers = #tpu.dot_dimension_numbers<[1], [0], [0], [1], [0, 0, 1, 1], [], []>} : vector<8x128xbf16>, vector<128x512xbf16>, vector<8x512xf32> -> vector<8x512xf32>
    %234 = arith.index_cast %c6_i32 : i32 to index
    %c0_78 = arith.constant 0 : index
    %c0_79 = arith.constant 0 : index
    %235 = vector.load %arg7[%234, %c0_78, %c0_79] : memref<8x8x512xf32, #tpu.memory_space<vmem>>, vector<1x8x512xf32>
    %236 = vector.shape_cast %235 : vector<1x8x512xf32> to vector<8x512xf32>
    %237 = arith.addf %233, %236 : vector<8x512xf32>
    %238 = vector.extract_strided_slice %237 {offsets = [0, 0], sizes = [8, 128], strides = [1, 1]} : vector<8x512xf32> to vector<8x128xf32>
    %239 = arith.negf %238 : vector<8x128xf32>
    %240 = math.exp %239 : vector<8x128xf32>
    %cst_80 = arith.constant 1.000000e+00 : f32
    %241 = vector.broadcast %cst_80 : f32 to vector<8x128xf32>
    %242 = arith.addf %241, %240 : vector<8x128xf32>
    %243 = arith.divf %241, %242 : vector<8x128xf32>
    %244 = vector.extract_strided_slice %237 {offsets = [0, 128], sizes = [8, 128], strides = [1, 1]} : vector<8x512xf32> to vector<8x128xf32>
    %245 = arith.negf %244 : vector<8x128xf32>
    %246 = math.exp %245 : vector<8x128xf32>
    %cst_81 = arith.constant 1.000000e+00 : f32
    %247 = vector.broadcast %cst_81 : f32 to vector<8x128xf32>
    %248 = arith.addf %247, %246 : vector<8x128xf32>
    %249 = arith.divf %247, %248 : vector<8x128xf32>
    %250 = vector.extract_strided_slice %237 {offsets = [0, 256], sizes = [8, 128], strides = [1, 1]} : vector<8x512xf32> to vector<8x128xf32>
    %251 = math.tanh %250 : vector<8x128xf32>
    %252 = vector.extract_strided_slice %237 {offsets = [0, 384], sizes = [8, 128], strides = [1, 1]} : vector<8x512xf32> to vector<8x128xf32>
    %253 = arith.negf %252 : vector<8x128xf32>
    %254 = math.exp %253 : vector<8x128xf32>
    %cst_82 = arith.constant 1.000000e+00 : f32
    %255 = vector.broadcast %cst_82 : f32 to vector<8x128xf32>
    %256 = arith.addf %255, %254 : vector<8x128xf32>
    %257 = arith.divf %255, %256 : vector<8x128xf32>
    %258 = arith.mulf %249, %224 : vector<8x128xf32>
    %259 = arith.mulf %243, %251 : vector<8x128xf32>
    %260 = arith.addf %258, %259 : vector<8x128xf32>
    %261 = math.tanh %260 : vector<8x128xf32>
    %262 = arith.mulf %257, %261 : vector<8x128xf32>
    %263 = arith.index_cast %c6_i32 : i32 to index
    %c0_83 = arith.constant 0 : index
    %c0_84 = arith.constant 0 : index
    %264 = vector.load %arg6[%263, %c0_83, %c0_84] : memref<8x8x128xf32, #tpu.memory_space<vmem>>, vector<1x8x128xf32>
    %265 = vector.shape_cast %264 : vector<1x8x128xf32> to vector<8x128xf32>
    %266 = vector.shape_cast %262 : vector<8x128xf32> to vector<1x8x128xf32>
    tpu.vector_store %arg6[%263, %c0_83, %c0_84], %266 {strides = array<i32>} : memref<8x8x128xf32, #tpu.memory_space<vmem>>, vector<1x8x128xf32>,
    %c7_i32 = arith.constant 7 : i32
    %267 = arith.truncf %262 : vector<8x128xf32> to vector<8x128xbf16>
    %c0_85 = arith.constant 0 : index
    %c0_86 = arith.constant 0 : index
    %268 = vector.load %arg4[%c0_85, %c0_86] : memref<128x512xbf16, #tpu.memory_space<vmem>>, vector<128x512xbf16>
    %cst_87 = arith.constant dense<0.000000e+00> : vector<8x512xf32>
    %269 = tpu.matmul %267, %268, %cst_87 {dimension_numbers = #tpu.dot_dimension_numbers<[1], [0], [0], [1], [0, 0, 1, 1], [], []>} : vector<8x128xbf16>, vector<128x512xbf16>, vector<8x512xf32> -> vector<8x512xf32>
    %270 = arith.index_cast %c7_i32 : i32 to index
    %c0_88 = arith.constant 0 : index
    %c0_89 = arith.constant 0 : index
    %271 = vector.load %arg7[%270, %c0_88, %c0_89] : memref<8x8x512xf32, #tpu.memory_space<vmem>>, vector<1x8x512xf32>
    %272 = vector.shape_cast %271 : vector<1x8x512xf32> to vector<8x512xf32>
    %273 = arith.addf %269, %272 : vector<8x512xf32>
    %274 = vector.extract_strided_slice %273 {offsets = [0, 0], sizes = [8, 128], strides = [1, 1]} : vector<8x512xf32> to vector<8x128xf32>
    %275 = arith.negf %274 : vector<8x128xf32>
    %276 = math.exp %275 : vector<8x128xf32>
    %cst_90 = arith.constant 1.000000e+00 : f32
    %277 = vector.broadcast %cst_90 : f32 to vector<8x128xf32>
    %278 = arith.addf %277, %276 : vector<8x128xf32>
    %279 = arith.divf %277, %278 : vector<8x128xf32>
    %280 = vector.extract_strided_slice %273 {offsets = [0, 128], sizes = [8, 128], strides = [1, 1]} : vector<8x512xf32> to vector<8x128xf32>
    %281 = arith.negf %280 : vector<8x128xf32>
    %282 = math.exp %281 : vector<8x128xf32>
    %cst_91 = arith.constant 1.000000e+00 : f32
    %283 = vector.broadcast %cst_91 : f32 to vector<8x128xf32>
    %284 = arith.addf %283, %282 : vector<8x128xf32>
    %285 = arith.divf %283, %284 : vector<8x128xf32>
    %286 = vector.extract_strided_slice %273 {offsets = [0, 256], sizes = [8, 128], strides = [1, 1]} : vector<8x512xf32> to vector<8x128xf32>
    %287 = math.tanh %286 : vector<8x128xf32>
    %288 = vector.extract_strided_slice %273 {offsets = [0, 384], sizes = [8, 128], strides = [1, 1]} : vector<8x512xf32> to vector<8x128xf32>
    %289 = arith.negf %288 : vector<8x128xf32>
    %290 = math.exp %289 : vector<8x128xf32>
    %cst_92 = arith.constant 1.000000e+00 : f32
    %291 = vector.broadcast %cst_92 : f32 to vector<8x128xf32>
    %292 = arith.addf %291, %290 : vector<8x128xf32>
    %293 = arith.divf %291, %292 : vector<8x128xf32>
    %294 = arith.mulf %285, %260 : vector<8x128xf32>
    %295 = arith.mulf %279, %287 : vector<8x128xf32>
    %296 = arith.addf %294, %295 : vector<8x128xf32>
    %297 = math.tanh %296 : vector<8x128xf32>
    %298 = arith.mulf %293, %297 : vector<8x128xf32>
    %299 = arith.index_cast %c7_i32 : i32 to index
    %c0_93 = arith.constant 0 : index
    %c0_94 = arith.constant 0 : index
    %300 = vector.load %arg6[%299, %c0_93, %c0_94] : memref<8x8x128xf32, #tpu.memory_space<vmem>>, vector<1x8x128xf32>
    %301 = vector.shape_cast %300 : vector<1x8x128xf32> to vector<8x128xf32>
    %302 = vector.shape_cast %298 : vector<8x128xf32> to vector<1x8x128xf32>
    tpu.vector_store %arg6[%299, %c0_93, %c0_94], %302 {strides = array<i32>} : memref<8x8x128xf32, #tpu.memory_space<vmem>>, vector<1x8x128xf32>,
    %c8_i32 = arith.constant 8 : i32
    %c0_95 = arith.constant 0 : index
    %c0_96 = arith.constant 0 : index
    %303 = vector.load %arg8[%c0_95, %c0_96] : memref<8x128xf32, #tpu.memory_space<vmem>>, vector<8x128xf32>
    tpu.vector_store %arg8[%c0_95, %c0_96], %298 {strides = array<i32>} : memref<8x128xf32, #tpu.memory_space<vmem>>, vector<8x128xf32>,
    %c0_97 = arith.constant 0 : index
    %c0_98 = arith.constant 0 : index
    %304 = vector.load %arg9[%c0_97, %c0_98] : memref<8x128xf32, #tpu.memory_space<vmem>>, vector<8x128xf32>
    tpu.vector_store %arg9[%c0_97, %c0_98], %296 {strides = array<i32>} : memref<8x128xf32, #tpu.memory_space<vmem>>, vector<8x128xf32>,
    return
  }
  func.func @transform_0(%arg0: i32, %arg1: i32) -> (i32, i32, i32) {
    %c0_i32 = arith.constant 0 : i32
    %c0_i32_0 = arith.constant 0 : i32
    return %arg1, %arg0, %c0_i32 : i32, i32, i32
  }
  func.func @transform_1(%arg0: i32, %arg1: i32) -> (i32, i32) {
    %c0_i32 = arith.constant 0 : i32
    %c0_i32_0 = arith.constant 0 : i32
    %c0_i32_1 = arith.constant 0 : i32
    return %c0_i32, %c0_i32_0 : i32, i32
  }
  func.func @transform_2(%arg0: i32, %arg1: i32) -> (i32, i32) {
    %c0_i32 = arith.constant 0 : i32
    %c0_i32_0 = arith.constant 0 : i32
    %c0_i32_1 = arith.constant 0 : i32
    return %c0_i32, %c0_i32_0 : i32, i32
  }
  func.func @transform_3(%arg0: i32, %arg1: i32) -> (i32, i32) {
    %c0_i32 = arith.constant 0 : i32
    %c0_i32_0 = arith.constant 0 : i32
    %c0_i32_1 = arith.constant 0 : i32
    return %c0_i32, %c0_i32_0 : i32, i32
  }
  func.func @transform_4(%arg0: i32, %arg1: i32) -> (i32, i32, i32) {
    %c0_i32 = arith.constant 0 : i32
    %c0_i32_0 = arith.constant 0 : i32
    return %arg1, %arg0, %c0_i32 : i32, i32, i32
  }
}

</mosaic_0001>

<llo_original>
// kernel: tpu_custom_call.1
$region0: #{tpu_custom_call.1}
  #allocation0 [shape = 'u32[]', space=smem, size = 0x4, offset = 0x4, fixed_abs, tag = 'smem constant byte address 0x4 - core index']
  #allocation1 [shape = 'u32[144,128]{1,0:T(1,128)}', space=vmem, size = 0x12000, scoped, tag = 'internal scratch']
  #allocation2 [shape = 'f32[8,8,512]{2,1,0:T(8,128)}', space=vmem, size = 0x20000, scoped, tag = 'scratch operand']
  #allocation3 [shape = 'f32[8,128]{1,0:T(8,128)}', space=vmem, size = 0x1000, scoped, tag = 'scratch operand']
  #allocation4 [shape = 'f32[8,128]{1,0:T(8,128)}', space=vmem, size = 0x1000, scoped, tag = 'scratch operand']
  %s0 = inlined_call_operand.hbm [shape: f32[8,8,128], index: 0, kind: input, shape index: {}]
  %s1 = inlined_call_operand.hbm [shape: bf16[128,512], index: 1, kind: input, shape index: {}]
  %s2 = inlined_call_operand.hbm [shape: bf16[128,512], index: 2, kind: input, shape index: {}]
  %s3 = inlined_call_operand.vmem [shape: f32[1,512], index: 3, kind: input, shape index: {}]
  %s4 = inlined_call_operand.hbm [shape: f32[8,8,128], index: 4, kind: output, shape index: {}]
  %s5 = sld [smem:[#allocation0]]
  $region42: #{tpu_custom_call.1} parent=0
    _
  %s7 = ssub.s32 1, %s5
  %s8 = scalar_select 0, %s7, %s5
  $region1: #{tpu_custom_call.1} parent=0
    #allocation5 [shape = 'u8[32768]{0}', space=vmem, size = 0x8000, scoped, tag = 'input window, operand 0, single buffered']
    #allocation6 [shape = 's32[1]{0}', space=sflag, size = 0x4, scoped, tag = 'scoped memory for tpu_custom_call.1']
    #allocation7 [shape = 's32[1]{0}', space=sflag, size = 0x4, scoped, tag = 'scoped memory for tpu_custom_call.1']
    #allocation8 [shape = 'u8[131072]{0}', space=vmem, size = 0x20000, scoped, tag = 'input window, operand 1, single buffered']
    #allocation9 [shape = 's32[1]{0}', space=sflag, size = 0x4, scoped, tag = 'scoped memory for tpu_custom_call.1']
    #allocation10 [shape = 'u8[131072]{0}', space=vmem, size = 0x20000, scoped, tag = 'input window, operand 2, single buffered']
    #allocation11 [shape = 'u8[32768]{0}', space=vmem, size = 0x8000, scoped, tag = 'output window, operand 0, single buffered']
    %9 = vsyncpa [#allocation6], 0
    %10 = vsyncpa [#allocation9], 0
    %11 = vsyncpa [#allocation7], 0
    // Predicated region
    $region2: #{tpu_custom_call.1} parent=1 // pred_check
      _
    $region3: #{tpu_custom_call.1} parent=1 // pred_check_branch
      %13 = sbr.rel (0) target = $region5
    $region4: #{tpu_custom_call.1} parent=1 // pred_region
      %s15 = ssub.s32 1024, 1024
      %16 = vsyncadd [#allocation6], %s15
      %s17 = sshll.u32 [#allocation5], 4
      %s18 = int_to_ptr.vmem [resolvable:$true] %s17
      %23 = dma.hbm_to_vmem [thread:$0]  %s0, 1024, %s18, [#allocation6], 128, 128, 8
    $region5: #{tpu_custom_call.1} parent=1 // pred_fallthru
      _
    // Predicated region
    $region6: #{tpu_custom_call.1} parent=1 // pred_check
      _
    $region7: #{tpu_custom_call.1} parent=1 // pred_check_branch
      %25 = sbr.rel (0) target = $region9
    $region8: #{tpu_custom_call.1} parent=1 // pred_region
      %s27 = ssub.s32 4096, 4096
      %28 = vsyncadd [#allocation9], %s27
      %s29 = sshll.u32 [#allocation8], 4
      %s30 = int_to_ptr.vmem [resolvable:$true] %s29
      %35 = dma.hbm_to_vmem [thread:$0]  %s1, 4096, %s30, [#allocation9], 256, 256, 16
    $region9: #{tpu_custom_call.1} parent=1 // pred_fallthru
      _
    // Predicated region
    $region10: #{tpu_custom_call.1} parent=1 // pred_check
      _
    $region11: #{tpu_custom_call.1} parent=1 // pred_check_branch
      %37 = sbr.rel (0) target = $region13
    $region12: #{tpu_custom_call.1} parent=1 // pred_region
      %s39 = ssub.s32 4096, 4096
      %40 = vsyncadd [#allocation9], %s39
      %s41 = sshll.u32 [#allocation10], 4
      %s42 = int_to_ptr.vmem [resolvable:$true] %s41
      %47 = dma.hbm_to_vmem [thread:$0]  %s2, 4096, %s42, [#allocation9], 256, 256, 16
    $region13: #{tpu_custom_call.1} parent=1 // pred_fallthru
      _
    // Predicated region
    $region14: #{tpu_custom_call.1} parent=1 // pred_check
      _
    $region15: #{tpu_custom_call.1} parent=1 // pred_check_branch
      %49 = sbr.rel (0) target = $region17
    $region16: #{tpu_custom_call.1} parent=1 // pred_region
      _
    $region17: #{tpu_custom_call.1} parent=1 // pred_fallthru
      _
    // Predicated region
    $region18: #{tpu_custom_call.1} parent=1 // pred_check
      _
    $region19: #{tpu_custom_call.1} parent=1 // pred_check_branch
      %51 = sbr.rel (0) target = $region21
    $region20: #{tpu_custom_call.1} parent=1 // pred_region
      %52 = dma.done [#allocation6], 1024
    $region21: #{tpu_custom_call.1} parent=1 // pred_fallthru
      _
    // Predicated region
    $region22: #{tpu_custom_call.1} parent=1 // pred_check
      _
    $region23: #{tpu_custom_call.1} parent=1 // pred_check_branch
      %54 = sbr.rel (0) target = $region25
    $region24: #{tpu_custom_call.1} parent=1 // pred_region
      %55 = dma.done [#allocation9], 4096
    $region25: #{tpu_custom_call.1} parent=1 // pred_fallthru
      _
    // Predicated region
    $region26: #{tpu_custom_call.1} parent=1 // pred_check
      _
    $region27: #{tpu_custom_call.1} parent=1 // pred_check_branch
      %57 = sbr.rel (0) target = $region29
    $region28: #{tpu_custom_call.1} parent=1 // pred_region
      %58 = dma.done [#allocation9], 4096
    $region29: #{tpu_custom_call.1} parent=1 // pred_fallthru
      _
    %p60 = scmp.eq.s32.totalorder 0, 0
    // Predicated region
    $region30: #{tpu_custom_call.1} parent=1 // pred_check
      %p61 = pneg %p60
    $region31: #{tpu_custom_call.1} parent=1 // pred_check_branch
      %63 = sbr.rel (%p61) target = $region33
    $region32: #{tpu_custom_call.1} parent=1 // pred_region
      %64 = vst [vmem:[#allocation3] sm:$0xff] 0.0
      %65 = vst [vmem:[#allocation4] sm:$0xff] 0.0
    $region33: #{tpu_custom_call.1} parent=1 // pred_fallthru
      _
    %v66 = vld [vmem:[#allocation5] sm:$0xff]
    %v67 = vld [vmem:[#allocation5 + $0x8] sm:$0xff]
    %v68 = vld [vmem:[#allocation5 + $0x10] sm:$0xff]
    %v69 = vld [vmem:[#allocation5 + $0x18] sm:$0xff]
    %v70 = vld [vmem:[#allocation5 + $0x20] sm:$0xff]
    %v71 = vld [vmem:[#allocation5 + $0x28] sm:$0xff]
    %v72 = vld [vmem:[#allocation5 + $0x30] sm:$0xff]
    %v73 = vld [vmem:[#allocation5 + $0x38] sm:$0xff]
    %v74 = vpack.c.bf16 %v67, %v66
    %v75 = vpack.c.bf16 %v69, %v68
    %v76 = vpack.c.bf16 %v71, %v70
    %v77 = vpack.c.bf16 %v73, %v72
    %v78 = vld [vmem:[#allocation8] sm:$0xff]
    %v79 = vld [vmem:[#allocation8 + $0x8] sm:$0xff]
    %v80 = vld [vmem:[#allocation8 + $0x10] sm:$0xff]
    %v81 = vld [vmem:[#allocation8 + $0x18] sm:$0xff]
    %v82 = vld [vmem:[#allocation8 + $0x20] sm:$0xff]
    %v83 = vld [vmem:[#allocation8 + $0x28] sm:$0xff]
    %v84 = vld [vmem:[#allocation8 + $0x30] sm:$0xff]
    %v85 = vld [vmem:[#allocation8 + $0x38] sm:$0xff]
    %v86 = vld [vmem:[#allocation8 + $0x40] sm:$0xff]
    %v87 = vld [vmem:[#allocation8 + $0x48] sm:$0xff]
    %v88 = vld [vmem:[#allocation8 + $0x50] sm:$0xff]
    %v89 = vld [vmem:[#allocation8 + $0x58] sm:$0xff]
    %v90 = vld [vmem:[#allocation8 + $0x60] sm:$0xff]
    %v91 = vld [vmem:[#allocation8 + $0x68] sm:$0xff]
    %v92 = vld [vmem:[#allocation8 + $0x70] sm:$0xff]
    %v93 = vld [vmem:[#allocation8 + $0x78] sm:$0xff]
    %v94 = vld [vmem:[#allocation8 + $0x80] sm:$0xff]
    %v95 = vld [vmem:[#allocation8 + $0x88] sm:$0xff]
    %v96 = vld [vmem:[#allocation8 + $0x90] sm:$0xff]
    %v97 = vld [vmem:[#allocation8 + $0x98] sm:$0xff]
    %v98 = vld [vmem:[#allocation8 + $0xa0] sm:$0xff]
    %v99 = vld [vmem:[#allocation8 + $0xa8] sm:$0xff]
    %v100 = vld [vmem:[#allocation8 + $0xb0] sm:$0xff]
    %v101 = vld [vmem:[#allocation8 + $0xb8] sm:$0xff]
    %v102 = vld [vmem:[#allocation8 + $0xc0] sm:$0xff]
    %v103 = vld [vmem:[#allocation8 + $0xc8] sm:$0xff]
    %v104 = vld [vmem:[#allocation8 + $0xd0] sm:$0xff]
    %v105 = vld [vmem:[#allocation8 + $0xd8] sm:$0xff]
    %v106 = vld [vmem:[#allocation8 + $0xe0] sm:$0xff]
    %v107 = vld [vmem:[#allocation8 + $0xe8] sm:$0xff]
    %v108 = vld [vmem:[#allocation8 + $0xf0] sm:$0xff]
    %v109 = vld [vmem:[#allocation8 + $0xf8] sm:$0xff]
    %v110 = vld [vmem:[%s3] sm:$0xf]
    %v112 = vlaneseq
    %v113 = vshrl.u32 %v112, 7
    %v114 = vsub.s32 0, %v113
    %v115 = vrot.slane %v110, %v114
    %v116 = vlaneseq
    %v117 = vshrl.u32 %v116, 7
    %v118 = vsub.s32 1, %v117
    %v119 = vrot.slane %v110, %v118
    %v120 = vlaneseq
    %v121 = vshrl.u32 %v120, 7
    %v122 = vsub.s32 2, %v121
    %v123 = vrot.slane %v110, %v122
    %v124 = vlaneseq
    %v125 = vshrl.u32 %v124, 7
    %v126 = vsub.s32 3, %v125
    %v127 = vrot.slane %v110, %v126
    %v164 = vunpack.c.l.b16 %v78
    %v165 = vunpack.c.h.b16 %v78
    %v166 = vunpack.c.l.b16 %v79
    %v167 = vunpack.c.h.b16 %v79
    %v168 = vunpack.c.l.b16 %v80
    %v169 = vunpack.c.h.b16 %v80
    %v170 = vunpack.c.l.b16 %v81
    %v171 = vunpack.c.h.b16 %v81
    %v172 = vunpack.c.l.b16 %v82
    %v173 = vunpack.c.h.b16 %v82
    %v174 = vunpack.c.l.b16 %v83
    %v175 = vunpack.c.h.b16 %v83
    %v176 = vunpack.c.l.b16 %v84
    %v177 = vunpack.c.h.b16 %v84
    %v178 = vunpack.c.l.b16 %v85
    %v179 = vunpack.c.h.b16 %v85
    %v180 = vunpack.c.l.b16 %v86
    %v181 = vunpack.c.h.b16 %v86
    %v182 = vunpack.c.l.b16 %v87
    %v183 = vunpack.c.h.b16 %v87
    %v184 = vunpack.c.l.b16 %v88
    %v185 = vunpack.c.h.b16 %v88
    %v186 = vunpack.c.l.b16 %v89
    %v187 = vunpack.c.h.b16 %v89
    %v188 = vunpack.c.l.b16 %v90
    %v189 = vunpack.c.h.b16 %v90
    %v190 = vunpack.c.l.b16 %v91
    %v191 = vunpack.c.h.b16 %v91
    %v192 = vunpack.c.l.b16 %v92
    %v193 = vunpack.c.h.b16 %v92
    %v194 = vunpack.c.l.b16 %v93
    %v195 = vunpack.c.h.b16 %v93
    %v196 = vunpack.c.l.b16 %v94
    %v197 = vunpack.c.h.b16 %v94
    %v198 = vunpack.c.l.b16 %v95
    %v199 = vunpack.c.h.b16 %v95
    %v200 = vunpack.c.l.b16 %v96
    %v201 = vunpack.c.h.b16 %v96
    %v202 = vunpack.c.l.b16 %v97
    %v203 = vunpack.c.h.b16 %v97
    %v204 = vunpack.c.l.b16 %v98
    %v205 = vunpack.c.h.b16 %v98
    %v206 = vunpack.c.l.b16 %v99
    %v207 = vunpack.c.h.b16 %v99
    %v208 = vunpack.c.l.b16 %v100
    %v209 = vunpack.c.h.b16 %v100
    %v210 = vunpack.c.l.b16 %v101
    %v211 = vunpack.c.h.b16 %v101
    %v212 = vunpack.c.l.b16 %v102
    %v213 = vunpack.c.h.b16 %v102
    %v214 = vunpack.c.l.b16 %v103
    %v215 = vunpack.c.h.b16 %v103
    %v216 = vunpack.c.l.b16 %v104
    %v217 = vunpack.c.h.b16 %v104
    %v218 = vunpack.c.l.b16 %v105
    %v219 = vunpack.c.h.b16 %v105
    %v220 = vunpack.c.l.b16 %v106
    %v221 = vunpack.c.h.b16 %v106
    %v222 = vunpack.c.l.b16 %v107
    %v223 = vunpack.c.h.b16 %v107
    %v224 = vunpack.c.l.b16 %v108
    %v225 = vunpack.c.h.b16 %v108
    %v226 = vunpack.c.l.b16 %v109
    %v227 = vunpack.c.h.b16 %v109
    %v228 = vpack.c.b16 %v168, %v164
    %v229 = vpack.c.b16 %v169, %v165
    %v230 = vpack.c.b16 %v170, %v166
    %v231 = vpack.c.b16 %v171, %v167
    %v232 = vpack.c.b16 %v176, %v172
    %v233 = vpack.c.b16 %v177, %v173
    %v234 = vpack.c.b16 %v178, %v174
    %v235 = vpack.c.b16 %v179, %v175
    %v236 = vpack.c.b16 %v184, %v180
    %v237 = vpack.c.b16 %v185, %v181
    %v238 = vpack.c.b16 %v186, %v182
    %v239 = vpack.c.b16 %v187, %v183
    %v240 = vpack.c.b16 %v192, %v188
    %v241 = vpack.c.b16 %v193, %v189
    %v242 = vpack.c.b16 %v194, %v190
    %v243 = vpack.c.b16 %v195, %v191
    %v244 = vpack.c.b16 %v200, %v196
    %v245 = vpack.c.b16 %v201, %v197
    %v246 = vpack.c.b16 %v202, %v198
    %v247 = vpack.c.b16 %v203, %v199
    %v248 = vpack.c.b16 %v208, %v204
    %v249 = vpack.c.b16 %v209, %v205
    %v250 = vpack.c.b16 %v210, %v206
    %v251 = vpack.c.b16 %v211, %v207
    %v252 = vpack.c.b16 %v216, %v212
    %v253 = vpack.c.b16 %v217, %v213
    %v254 = vpack.c.b16 %v218, %v214
    %v255 = vpack.c.b16 %v219, %v215
    %v256 = vpack.c.b16 %v224, %v220
    %v257 = vpack.c.b16 %v225, %v221
    %v258 = vpack.c.b16 %v226, %v222
    %v259 = vpack.c.b16 %v227, %v223
    %292 = vmatprep.subr.bf16.mxu0 %v257
    %293 = vmatpush1.bf16.msra.mxu0 %v256
    %294 = vmatprep.subr.bf16.mxu0 %v253
    %295 = vmatpush1.bf16.msra.mxu0 %v252
    %296 = vmatprep.subr.bf16.mxu0 %v249
    %297 = vmatpush1.bf16.msra.mxu0 %v248
    %298 = vmatprep.subr.bf16.mxu0 %v245
    %299 = vmatpush1.bf16.msra.mxu0 %v244
    %300 = vmatprep.subr.bf16.mxu0 %v241
    %301 = vmatpush1.bf16.msra.mxu0 %v240
    %302 = vmatprep.subr.bf16.mxu0 %v237
    %303 = vmatpush1.bf16.msra.mxu0 %v236
    %304 = vmatprep.subr.bf16.mxu0 %v233
    %305 = vmatpush1.bf16.msra.mxu0 %v232
    %306 = vmatprep.subr.bf16.mxu0 %v229
    %307 = vmatpush1.bf16.msra.mxu0 %v228
    %308 = vmatprep.subr.bf16.mxu0 0
    %309 = vmatpush2.bf16.msra.mxu0 0
    %310 = vmatprep.subr.bf16.mxu0 0
    %311 = vmatpush2.bf16.msra.mxu0 0
    %312 = vmatprep.subr.bf16.mxu0 0
    %313 = vmatpush2.bf16.msra.mxu0 0
    %314 = vmatprep.subr.bf16.mxu0 0
    %315 = vmatpush2.bf16.msra.mxu0 0
    %316 = vmatprep.subr.bf16.mxu0 0
    %317 = vmatpush2.bf16.msra.mxu0 0
    %318 = vmatprep.subr.bf16.mxu0 0
    %319 = vmatpush2.bf16.msra.mxu0 0
    %320 = vmatprep.subr.bf16.mxu0 0
    %321 = vmatpush2.bf16.msra.mxu0 0
    %322 = vmatprep.subr.bf16.mxu0 0
    %323 = vmatpush2.bf16.msra.mxu0 0
    %324 = vmatprep.mubr.bf16.mxu0 0
    %325 = vmatmul.mubr.bf16.gmra.mxu0 %v74
    %v326 = vpop.f32.mrf.mxu0
    %v327 = vadd.f32 %v115, %v326
    %v328 = vpop.f32.mrf.mxu0
    %v329 = vadd.f32 %v119, %v328
    %v330 = vpop.f32.mrf.mxu0
    %v331 = vadd.f32 %v115, %v330
    %v332 = vpop.f32.mrf.mxu0
    %v333 = vadd.f32 %v119, %v332
    %334 = vmatprep.mubr.bf16.mxu0 0
    %335 = vmatmul.mubr.bf16.gmra.mxu0 %v75
    %v336 = vpop.f32.mrf.mxu0
    %v337 = vadd.f32 %v115, %v336
    %v338 = vpop.f32.mrf.mxu0
    %v339 = vadd.f32 %v119, %v338
    %v340 = vpop.f32.mrf.mxu0
    %v341 = vadd.f32 %v115, %v340
    %v342 = vpop.f32.mrf.mxu0
    %v343 = vadd.f32 %v119, %v342
    %344 = vmatprep.mubr.bf16.mxu0 0
    %345 = vmatmul.mubr.bf16.gmra.mxu0 %v76
    %v346 = vpop.f32.mrf.mxu0
    %v347 = vadd.f32 %v115, %v346
    %v348 = vpop.f32.mrf.mxu0
    %v349 = vadd.f32 %v119, %v348
    %v350 = vpop.f32.mrf.mxu0
    %v351 = vadd.f32 %v115, %v350
    %v352 = vpop.f32.mrf.mxu0
    %v353 = vadd.f32 %v119, %v352
    %354 = vmatprep.mubr.bf16.mxu0 0
    %355 = vmatmul.mubr.bf16.gmra.mxu0 %v77
    %v356 = vpop.f32.mrf.mxu0
    %v357 = vadd.f32 %v115, %v356
    %v358 = vpop.f32.mrf.mxu0
    %v359 = vadd.f32 %v119, %v358
    %v360 = vpop.f32.mrf.mxu0
    %v361 = vadd.f32 %v115, %v360
    %v362 = vpop.f32.mrf.mxu0
    %v363 = vadd.f32 %v119, %v362
    %364 = vdwg.mxu0
    %365 = vmatprep.subr.bf16.mxu0 %v259
    %366 = vmatpush1.bf16.msra.mxu0 %v258
    %367 = vmatprep.subr.bf16.mxu0 %v255
    %368 = vmatpush1.bf16.msra.mxu0 %v254
    %369 = vmatprep.subr.bf16.mxu0 %v251
    %370 = vmatpush1.bf16.msra.mxu0 %v250
    %371 = vmatprep.subr.bf16.mxu0 %v247
    %372 = vmatpush1.bf16.msra.mxu0 %v246
    %373 = vmatprep.subr.bf16.mxu0 %v243
    %374 = vmatpush1.bf16.msra.mxu0 %v242
    %375 = vmatprep.subr.bf16.mxu0 %v239
    %376 = vmatpush1.bf16.msra.mxu0 %v238
    %377 = vmatprep.subr.bf16.mxu0 %v235
    %378 = vmatpush1.bf16.msra.mxu0 %v234
    %379 = vmatprep.subr.bf16.mxu0 %v231
    %380 = vmatpush1.bf16.msra.mxu0 %v230
    %381 = vmatprep.subr.bf16.mxu0 0
    %382 = vmatpush2.bf16.msra.mxu0 0
    %383 = vmatprep.subr.bf16.mxu0 0
    %384 = vmatpush2.bf16.msra.mxu0 0
    %385 = vmatprep.subr.bf16.mxu0 0
    %386 = vmatpush2.bf16.msra.mxu0 0
    %387 = vmatprep.subr.bf16.mxu0 0
    %388 = vmatpush2.bf16.msra.mxu0 0
    %389 = vmatprep.subr.bf16.mxu0 0
    %390 = vmatpush2.bf16.msra.mxu0 0
    %391 = vmatprep.subr.bf16.mxu0 0
    %392 = vmatpush2.bf16.msra.mxu0 0
    %393 = vmatprep.subr.bf16.mxu0 0
    %394 = vmatpush2.bf16.msra.mxu0 0
    %395 = vmatprep.subr.bf16.mxu0 0
    %396 = vmatpush2.bf16.msra.mxu0 0
    %397 = vmatprep.mubr.bf16.mxu0 0
    %398 = vmatmul.mubr.bf16.gmra.mxu0 %v74
    %v399 = vpop.f32.mrf.mxu0
    %v400 = vadd.f32 %v123, %v399
    %v401 = vpop.f32.mrf.mxu0
    %v402 = vadd.f32 %v127, %v401
    %v403 = vpop.f32.mrf.mxu0
    %v404 = vadd.f32 %v123, %v403
    %v405 = vpop.f32.mrf.mxu0
    %v406 = vadd.f32 %v127, %v405
    %407 = vmatprep.mubr.bf16.mxu0 0
    %408 = vmatmul.mubr.bf16.gmra.mxu0 %v75
    %v409 = vpop.f32.mrf.mxu0
    %v410 = vadd.f32 %v123, %v409
    %v411 = vpop.f32.mrf.mxu0
    %v412 = vadd.f32 %v127, %v411
    %v413 = vpop.f32.mrf.mxu0
    %v414 = vadd.f32 %v123, %v413
    %v415 = vpop.f32.mrf.mxu0
    %v416 = vadd.f32 %v127, %v415
    %417 = vmatprep.mubr.bf16.mxu0 0
    %418 = vmatmul.mubr.bf16.gmra.mxu0 %v76
    %v419 = vpop.f32.mrf.mxu0
    %v420 = vadd.f32 %v123, %v419
    %v421 = vpop.f32.mrf.mxu0
    %v422 = vadd.f32 %v127, %v421
    %v423 = vpop.f32.mrf.mxu0
    %v424 = vadd.f32 %v123, %v423
    %v425 = vpop.f32.mrf.mxu0
    %v426 = vadd.f32 %v127, %v425
    %427 = vmatprep.mubr.bf16.mxu0 0
    %428 = vmatmul.mubr.bf16.gmra.mxu0 %v77
    %v429 = vpop.f32.mrf.mxu0
    %v430 = vadd.f32 %v123, %v429
    %v431 = vpop.f32.mrf.mxu0
    %v432 = vadd.f32 %v127, %v431
    %v433 = vpop.f32.mrf.mxu0
    %v434 = vadd.f32 %v123, %v433
    %v435 = vpop.f32.mrf.mxu0
    %v436 = vadd.f32 %v127, %v435
    %437 = vdwg.mxu0
    %438 = vst [vmem:[#allocation2] sm:$0xff] %v327
    %439 = vst [vmem:[#allocation2 + $0x8] sm:$0xff] %v329
    %440 = vst [vmem:[#allocation2 + $0x10] sm:$0xff] %v400
    %441 = vst [vmem:[#allocation2 + $0x18] sm:$0xff] %v402
    %442 = vst [vmem:[#allocation2 + $0x20] sm:$0xff] %v331
    %443 = vst [vmem:[#allocation2 + $0x28] sm:$0xff] %v333
    %444 = vst [vmem:[#allocation2 + $0x30] sm:$0xff] %v404
    %445 = vst [vmem:[#allocation2 + $0x38] sm:$0xff] %v406
    %446 = vst [vmem:[#allocation2 + $0x40] sm:$0xff] %v337
    %447 = vst [vmem:[#allocation2 + $0x48] sm:$0xff] %v339
    %448 = vst [vmem:[#allocation2 + $0x50] sm:$0xff] %v410
    %449 = vst [vmem:[#allocation2 + $0x58] sm:$0xff] %v412
    %450 = vst [vmem:[#allocation2 + $0x60] sm:$0xff] %v341
    %451 = vst [vmem:[#allocation2 + $0x68] sm:$0xff] %v343
    %452 = vst [vmem:[#allocation2 + $0x70] sm:$0xff] %v414
    %453 = vst [vmem:[#allocation2 + $0x78] sm:$0xff] %v416
    %454 = vst [vmem:[#allocation2 + $0x80] sm:$0xff] %v347
    %455 = vst [vmem:[#allocation2 + $0x88] sm:$0xff] %v349
    %456 = vst [vmem:[#allocation2 + $0x90] sm:$0xff] %v420
    %457 = vst [vmem:[#allocation2 + $0x98] sm:$0xff] %v422
    %458 = vst [vmem:[#allocation2 + $0xa0] sm:$0xff] %v351
    %459 = vst [vmem:[#allocation2 + $0xa8] sm:$0xff] %v353
    %460 = vst [vmem:[#allocation2 + $0xb0] sm:$0xff] %v424
    %461 = vst [vmem:[#allocation2 + $0xb8] sm:$0xff] %v426
    %462 = vst [vmem:[#allocation2 + $0xc0] sm:$0xff] %v357
    %463 = vst [vmem:[#allocation2 + $0xc8] sm:$0xff] %v359
    %464 = vst [vmem:[#allocation2 + $0xd0] sm:$0xff] %v430
    %465 = vst [vmem:[#allocation2 + $0xd8] sm:$0xff] %v432
    %466 = vst [vmem:[#allocation2 + $0xe0] sm:$0xff] %v361
    %467 = vst [vmem:[#allocation2 + $0xe8] sm:$0xff] %v363
    %468 = vst [vmem:[#allocation2 + $0xf0] sm:$0xff] %v434
    %469 = vst [vmem:[#allocation2 + $0xf8] sm:$0xff] %v436
    %v470 = vld [vmem:[#allocation3] sm:$0xff]
    %v471 = vld [vmem:[#allocation4] sm:$0xff]
    %v472 = vpack.c.bf16 %v470, %v470
    %v473 = vld [vmem:[#allocation10] sm:$0xff]
    %v474 = vld [vmem:[#allocation10 + $0x8] sm:$0xff]
    %v475 = vld [vmem:[#allocation10 + $0x10] sm:$0xff]
    %v476 = vld [vmem:[#allocation10 + $0x18] sm:$0xff]
    %v477 = vld [vmem:[#allocation10 + $0x20] sm:$0xff]
    %v478 = vld [vmem:[#allocation10 + $0x28] sm:$0xff]
    %v479 = vld [vmem:[#allocation10 + $0x30] sm:$0xff]
    %v480 = vld [vmem:[#allocation10 + $0x38] sm:$0xff]
    %v481 = vld [vmem:[#allocation10 + $0x40] sm:$0xff]
    %v482 = vld [vmem:[#allocation10 + $0x48] sm:$0xff]
    %v483 = vld [vmem:[#allocation10 + $0x50] sm:$0xff]
    %v484 = vld [vmem:[#allocation10 + $0x58] sm:$0xff]
    %v485 = vld [vmem:[#allocation10 + $0x60] sm:$0xff]
    %v486 = vld [vmem:[#allocation10 + $0x68] sm:$0xff]
    %v487 = vld [vmem:[#allocation10 + $0x70] sm:$0xff]
    %v488 = vld [vmem:[#allocation10 + $0x78] sm:$0xff]
    %v489 = vld [vmem:[#allocation10 + $0x80] sm:$0xff]
    %v490 = vld [vmem:[#allocation10 + $0x88] sm:$0xff]
    %v491 = vld [vmem:[#allocation10 + $0x90] sm:$0xff]
    %v492 = vld [vmem:[#allocation10 + $0x98] sm:$0xff]
    %v493 = vld [vmem:[#allocation10 + $0xa0] sm:$0xff]
    %v494 = vld [vmem:[#allocation10 + $0xa8] sm:$0xff]
    %v495 = vld [vmem:[#allocation10 + $0xb0] sm:$0xff]
    %v496 = vld [vmem:[#allocation10 + $0xb8] sm:$0xff]
    %v497 = vld [vmem:[#allocation10 + $0xc0] sm:$0xff]
    %v498 = vld [vmem:[#allocation10 + $0xc8] sm:$0xff]
    %v499 = vld [vmem:[#allocation10 + $0xd0] sm:$0xff]
    %v500 = vld [vmem:[#allocation10 + $0xd8] sm:$0xff]
    %v501 = vld [vmem:[#allocation10 + $0xe0] sm:$0xff]
    %v502 = vld [vmem:[#allocation10 + $0xe8] sm:$0xff]
    %v503 = vld [vmem:[#allocation10 + $0xf0] sm:$0xff]
    %v504 = vld [vmem:[#allocation10 + $0xf8] sm:$0xff]
    %v505 = vld [vmem:[#allocation2] sm:$0xff]
    %v506 = vld [vmem:[#allocation2 + $0x8] sm:$0xff]
    %v507 = vld [vmem:[#allocation2 + $0x10] sm:$0xff]
    %v508 = vld [vmem:[#allocation2 + $0x18] sm:$0xff]
    %v541 = vunpack.c.l.b16 %v473
    %v542 = vunpack.c.h.b16 %v473
    %v543 = vunpack.c.l.b16 %v474
    %v544 = vunpack.c.h.b16 %v474
    %v545 = vunpack.c.l.b16 %v475
    %v546 = vunpack.c.h.b16 %v475
    %v547 = vunpack.c.l.b16 %v476
    %v548 = vunpack.c.h.b16 %v476
    %v549 = vunpack.c.l.b16 %v477
    %v550 = vunpack.c.h.b16 %v477
    %v551 = vunpack.c.l.b16 %v478
    %v552 = vunpack.c.h.b16 %v478
    %v553 = vunpack.c.l.b16 %v479
    %v554 = vunpack.c.h.b16 %v479
    %v555 = vunpack.c.l.b16 %v480
    %v556 = vunpack.c.h.b16 %v480
    %v557 = vunpack.c.l.b16 %v481
    %v558 = vunpack.c.h.b16 %v481
    %v559 = vunpack.c.l.b16 %v482
    %v560 = vunpack.c.h.b16 %v482
    %v561 = vunpack.c.l.b16 %v483
    %v562 = vunpack.c.h.b16 %v483
    %v563 = vunpack.c.l.b16 %v484
    %v564 = vunpack.c.h.b16 %v484
    %v565 = vunpack.c.l.b16 %v485
    %v566 = vunpack.c.h.b16 %v485
    %v567 = vunpack.c.l.b16 %v486
    %v568 = vunpack.c.h.b16 %v486
    %v569 = vunpack.c.l.b16 %v487
    %v570 = vunpack.c.h.b16 %v487
    %v571 = vunpack.c.l.b16 %v488
    %v572 = vunpack.c.h.b16 %v488
    %v573 = vunpack.c.l.b16 %v489
    %v574 = vunpack.c.h.b16 %v489
    %v575 = vunpack.c.l.b16 %v490
    %v576 = vunpack.c.h.b16 %v490
    %v577 = vunpack.c.l.b16 %v491
    %v578 = vunpack.c.h.b16 %v491
    %v579 = vunpack.c.l.b16 %v492
    %v580 = vunpack.c.h.b16 %v492
    %v581 = vunpack.c.l.b16 %v493
    %v582 = vunpack.c.h.b16 %v493
    %v583 = vunpack.c.l.b16 %v494
    %v584 = vunpack.c.h.b16 %v494
    %v585 = vunpack.c.l.b16 %v495
    %v586 = vunpack.c.h.b16 %v495
    %v587 = vunpack.c.l.b16 %v496
    %v588 = vunpack.c.h.b16 %v496
    %v589 = vunpack.c.l.b16 %v497
    %v590 = vunpack.c.h.b16 %v497
    %v591 = vunpack.c.l.b16 %v498
    %v592 = vunpack.c.h.b16 %v498
    %v593 = vunpack.c.l.b16 %v499
    %v594 = vunpack.c.h.b16 %v499
    %v595 = vunpack.c.l.b16 %v500
    %v596 = vunpack.c.h.b16 %v500
    %v597 = vunpack.c.l.b16 %v501
    %v598 = vunpack.c.h.b16 %v501
    %v599 = vunpack.c.l.b16 %v502
    %v600 = vunpack.c.h.b16 %v502
    %v601 = vunpack.c.l.b16 %v503
    %v602 = vunpack.c.h.b16 %v503
    %v603 = vunpack.c.l.b16 %v504
    %v604 = vunpack.c.h.b16 %v504
    %v605 = vpack.c.b16 %v545, %v541
    %v606 = vpack.c.b16 %v546, %v542
    %v607 = vpack.c.b16 %v547, %v543
    %v608 = vpack.c.b16 %v548, %v544
    %v609 = vpack.c.b16 %v553, %v549
    %v610 = vpack.c.b16 %v554, %v550
    %v611 = vpack.c.b16 %v555, %v551
    %v612 = vpack.c.b16 %v556, %v552
    %v613 = vpack.c.b16 %v561, %v557
    %v614 = vpack.c.b16 %v562, %v558
    %v615 = vpack.c.b16 %v563, %v559
    %v616 = vpack.c.b16 %v564, %v560
    %v617 = vpack.c.b16 %v569, %v565
    %v618 = vpack.c.b16 %v570, %v566
    %v619 = vpack.c.b16 %v571, %v567
    %v620 = vpack.c.b16 %v572, %v568
    %v621 = vpack.c.b16 %v577, %v573
    %v622 = vpack.c.b16 %v578, %v574
    %v623 = vpack.c.b16 %v579, %v575
    %v624 = vpack.c.b16 %v580, %v576
    %v625 = vpack.c.b16 %v585, %v581
    %v626 = vpack.c.b16 %v586, %v582
    %v627 = vpack.c.b16 %v587, %v583
    %v628 = vpack.c.b16 %v588, %v584
    %v629 = vpack.c.b16 %v593, %v589
    %v630 = vpack.c.b16 %v594, %v590
    %v631 = vpack.c.b16 %v595, %v591
    %v632 = vpack.c.b16 %v596, %v592
    %v633 = vpack.c.b16 %v601, %v597
    %v634 = vpack.c.b16 %v602, %v598
    %v635 = vpack.c.b16 %v603, %v599
    %v636 = vpack.c.b16 %v604, %v600
    %669 = vmatprep.subr.bf16.mxu0 %v634
    %670 = vmatpush1.bf16.msra.mxu0 %v633
    %671 = vmatprep.subr.bf16.mxu0 %v630
    %672 = vmatpush1.bf16.msra.mxu0 %v629
    %673 = vmatprep.subr.bf16.mxu0 %v626
    %674 = vmatpush1.bf16.msra.mxu0 %v625
    %675 = vmatprep.subr.bf16.mxu0 %v622
    %676 = vmatpush1.bf16.msra.mxu0 %v621
    %677 = vmatprep.subr.bf16.mxu0 %v618
    %678 = vmatpush1.bf16.msra.mxu0 %v617
    %679 = vmatprep.subr.bf16.mxu0 %v614
    %680 = vmatpush1.bf16.msra.mxu0 %v613
    %681 = vmatprep.subr.bf16.mxu0 %v610
    %682 = vmatpush1.bf16.msra.mxu0 %v609
    %683 = vmatprep.subr.bf16.mxu0 %v606
    %684 = vmatpush1.bf16.msra.mxu0 %v605
    %685 = vmatprep.subr.bf16.mxu0 0
    %686 = vmatpush2.bf16.msra.mxu0 0
    %687 = vmatprep.subr.bf16.mxu0 0
    %688 = vmatpush2.bf16.msra.mxu0 0
    %689 = vmatprep.subr.bf16.mxu0 0
    %690 = vmatpush2.bf16.msra.mxu0 0
    %691 = vmatprep.subr.bf16.mxu0 0
    %692 = vmatpush2.bf16.msra.mxu0 0
    %693 = vmatprep.subr.bf16.mxu0 0
    %694 = vmatpush2.bf16.msra.mxu0 0
    %695 = vmatprep.subr.bf16.mxu0 0
    %696 = vmatpush2.bf16.msra.mxu0 0
    %697 = vmatprep.subr.bf16.mxu0 0
    %698 = vmatpush2.bf16.msra.mxu0 0
    %699 = vmatprep.subr.bf16.mxu0 0
    %700 = vmatpush2.bf16.msra.mxu0 0
    %701 = vmatprep.mubr.bf16.mxu0 0
    %702 = vmatmul.mubr.bf16.gmra.mxu0 %v472
    %v703 = vpop.f32.mrf.mxu0
    %v704 = vadd.f32 %v505, %v703
    %v705 = vpop.f32.mrf.mxu0
    %v706 = vadd.f32 %v506, %v705
    %v707 = vpop.f32.mrf.mxu0
    %v708 = vpop.f32.mrf.mxu0
    %709 = vdwg.mxu0
    %710 = vmatprep.subr.bf16.mxu0 %v636
    %711 = vmatpush1.bf16.msra.mxu0 %v635
    %712 = vmatprep.subr.bf16.mxu0 %v632
    %713 = vmatpush1.bf16.msra.mxu0 %v631
    %714 = vmatprep.subr.bf16.mxu0 %v628
    %715 = vmatpush1.bf16.msra.mxu0 %v627
    %716 = vmatprep.subr.bf16.mxu0 %v624
    %717 = vmatpush1.bf16.msra.mxu0 %v623
    %718 = vmatprep.subr.bf16.mxu0 %v620
    %719 = vmatpush1.bf16.msra.mxu0 %v619
    %720 = vmatprep.subr.bf16.mxu0 %v616
    %721 = vmatpush1.bf16.msra.mxu0 %v615
    %722 = vmatprep.subr.bf16.mxu0 %v612
    %723 = vmatpush1.bf16.msra.mxu0 %v611
    %724 = vmatprep.subr.bf16.mxu0 %v608
    %725 = vmatpush1.bf16.msra.mxu0 %v607
    %726 = vmatprep.subr.bf16.mxu0 0
    %727 = vmatpush2.bf16.msra.mxu0 0
    %728 = vmatprep.subr.bf16.mxu0 0
    %729 = vmatpush2.bf16.msra.mxu0 0
    %730 = vmatprep.subr.bf16.mxu0 0
    %731 = vmatpush2.bf16.msra.mxu0 0
    %732 = vmatprep.subr.bf16.mxu0 0
    %733 = vmatpush2.bf16.msra.mxu0 0
    %734 = vmatprep.subr.bf16.mxu0 0
    %735 = vmatpush2.bf16.msra.mxu0 0
    %736 = vmatprep.subr.bf16.mxu0 0
    %737 = vmatpush2.bf16.msra.mxu0 0
    %738 = vmatprep.subr.bf16.mxu0 0
    %739 = vmatpush2.bf16.msra.mxu0 0
    %740 = vmatprep.subr.bf16.mxu0 0
    %741 = vmatpush2.bf16.msra.mxu0 0
    %742 = vmatprep.mubr.bf16.mxu0 0
    %743 = vmatmul.mubr.bf16.gmra.mxu0 %v472
    %v744 = vpop.f32.mrf.mxu0
    %v745 = vadd.f32 %v507, %v744
    %v746 = vpop.f32.mrf.mxu0
    %v747 = vadd.f32 %v508, %v746
    %v748 = vpop.f32.mrf.mxu0
    %v749 = vpop.f32.mrf.mxu0
    %750 = vdwg.mxu0
    %v751 = vxor.u32 %v704, 2147483648
    %v752 = vmul.f32 %v751, 1.442695
    %v753 = vpow.pop %v752
    %v754 = vadd.f32 %v753, 1.0
    %v755 = vrcp.pop %v754
    %v756 = vmul.f32 1.0, %v755
    %v757 = vxor.u32 %v706, 2147483648
    %v758 = vmul.f32 %v757, 1.442695
    %v759 = vpow.pop %v758
    %v760 = vadd.f32 %v759, 1.0
    %v761 = vrcp.pop %v760
    %v762 = vmul.f32 1.0, %v761
    %v763 = vtanh.pop %v745
    %v764 = vxor.u32 %v747, 2147483648
    %v765 = vmul.f32 %v764, 1.442695
    %v766 = vpow.pop %v765
    %v767 = vadd.f32 %v766, 1.0
    %v768 = vrcp.pop %v767
    %v769 = vmul.f32 1.0, %v768
    %v770 = vmul.f32 %v762, %v471
    %v771 = vmul.f32 %v756, %v763
    %v772 = vadd.f32 %v770, %v771
    %v773 = vtanh.pop %v772
    %v774 = vmul.f32 %v769, %v773
    %775 = vst [vmem:[#allocation11] sm:$0xff] %v774
    %v776 = vpack.c.bf16 %v774, %v774
    %v777 = vld [vmem:[#allocation10] sm:$0xff]
    %v778 = vld [vmem:[#allocation10 + $0x8] sm:$0xff]
    %v779 = vld [vmem:[#allocation10 + $0x10] sm:$0xff]
    %v780 = vld [vmem:[#allocation10 + $0x18] sm:$0xff]
    %v781 = vld [vmem:[#allocation10 + $0x20] sm:$0xff]
    %v782 = vld [vmem:[#allocation10 + $0x28] sm:$0xff]
    %v783 = vld [vmem:[#allocation10 + $0x30] sm:$0xff]
    %v784 = vld [vmem:[#allocation10 + $0x38] sm:$0xff]
    %v785 = vld [vmem:[#allocation10 + $0x40] sm:$0xff]
    %v786 = vld [vmem:[#allocation10 + $0x48] sm:$0xff]
    %v787 = vld [vmem:[#allocation10 + $0x50] sm:$0xff]
    %v788 = vld [vmem:[#allocation10 + $0x58] sm:$0xff]
    %v789 = vld [vmem:[#allocation10 + $0x60] sm:$0xff]
    %v790 = vld [vmem:[#allocation10 + $0x68] sm:$0xff]
    %v791 = vld [vmem:[#allocation10 + $0x70] sm:$0xff]
    %v792 = vld [vmem:[#allocation10 + $0x78] sm:$0xff]
    %v793 = vld [vmem:[#allocation10 + $0x80] sm:$0xff]
    %v794 = vld [vmem:[#allocation10 + $0x88] sm:$0xff]
    %v795 = vld [vmem:[#allocation10 + $0x90] sm:$0xff]
    %v796 = vld [vmem:[#allocation10 + $0x98] sm:$0xff]
    %v797 = vld [vmem:[#allocation10 + $0xa0] sm:$0xff]
    %v798 = vld [vmem:[#allocation10 + $0xa8] sm:$0xff]
    %v799 = vld [vmem:[#allocation10 + $0xb0] sm:$0xff]
    %v800 = vld [vmem:[#allocation10 + $0xb8] sm:$0xff]
    %v801 = vld [vmem:[#allocation10 + $0xc0] sm:$0xff]
    %v802 = vld [vmem:[#allocation10 + $0xc8] sm:$0xff]
    %v803 = vld [vmem:[#allocation10 + $0xd0] sm:$0xff]
    %v804 = vld [vmem:[#allocation10 + $0xd8] sm:$0xff]
    %v805 = vld [vmem:[#allocation10 + $0xe0] sm:$0xff]
    %v806 = vld [vmem:[#allocation10 + $0xe8] sm:$0xff]
    %v807 = vld [vmem:[#allocation10 + $0xf0] sm:$0xff]
    %v808 = vld [vmem:[#allocation10 + $0xf8] sm:$0xff]
    %s809 = scalar_lea.vmem [#allocation2], 32
    %v810 = vld [vmem:[%s809] sm:$0xff]
    %v811 = vld [vmem:[%s809 + $0x8] sm:$0xff]
    %v812 = vld [vmem:[%s809 + $0x10] sm:$0xff]
    %v813 = vld [vmem:[%s809 + $0x18] sm:$0xff]
    %v846 = vunpack.c.l.b16 %v777
    %v847 = vunpack.c.h.b16 %v777
    %v848 = vunpack.c.l.b16 %v778
    %v849 = vunpack.c.h.b16 %v778
    %v850 = vunpack.c.l.b16 %v779
    %v851 = vunpack.c.h.b16 %v779
    %v852 = vunpack.c.l.b16 %v780
    %v853 = vunpack.c.h.b16 %v780
    %v854 = vunpack.c.l.b16 %v781
    %v855 = vunpack.c.h.b16 %v781
    %v856 = vunpack.c.l.b16 %v782
    %v857 = vunpack.c.h.b16 %v782
    %v858 = vunpack.c.l.b16 %v783
    %v859 = vunpack.c.h.b16 %v783
    %v860 = vunpack.c.l.b16 %v784
    %v861 = vunpack.c.h.b16 %v784
    %v862 = vunpack.c.l.b16 %v785
    %v863 = vunpack.c.h.b16 %v785
    %v864 = vunpack.c.l.b16 %v786
    %v865 = vunpack.c.h.b16 %v786
    %v866 = vunpack.c.l.b16 %v787
    %v867 = vunpack.c.h.b16 %v787
    %v868 = vunpack.c.l.b16 %v788
    %v869 = vunpack.c.h.b16 %v788
    %v870 = vunpack.c.l.b16 %v789
    %v871 = vunpack.c.h.b16 %v789
    %v872 = vunpack.c.l.b16 %v790
    %v873 = vunpack.c.h.b16 %v790
    %v874 = vunpack.c.l.b16 %v791
    %v875 = vunpack.c.h.b16 %v791
    %v876 = vunpack.c.l.b16 %v792
    %v877 = vunpack.c.h.b16 %v792
    %v878 = vunpack.c.l.b16 %v793
    %v879 = vunpack.c.h.b16 %v793
    %v880 = vunpack.c.l.b16 %v794
    %v881 = vunpack.c.h.b16 %v794
    %v882 = vunpack.c.l.b16 %v795
    %v883 = vunpack.c.h.b16 %v795
    %v884 = vunpack.c.l.b16 %v796
    %v885 = vunpack.c.h.b16 %v796
    %v886 = vunpack.c.l.b16 %v797
    %v887 = vunpack.c.h.b16 %v797
    %v888 = vunpack.c.l.b16 %v798
    %v889 = vunpack.c.h.b16 %v798
    %v890 = vunpack.c.l.b16 %v799
    %v891 = vunpack.c.h.b16 %v799
    %v892 = vunpack.c.l.b16 %v800
    %v893 = vunpack.c.h.b16 %v800
    %v894 = vunpack.c.l.b16 %v801
    %v895 = vunpack.c.h.b16 %v801
    %v896 = vunpack.c.l.b16 %v802
    %v897 = vunpack.c.h.b16 %v802
    %v898 = vunpack.c.l.b16 %v803
    %v899 = vunpack.c.h.b16 %v803
    %v900 = vunpack.c.l.b16 %v804
    %v901 = vunpack.c.h.b16 %v804
    %v902 = vunpack.c.l.b16 %v805
    %v903 = vunpack.c.h.b16 %v805
    %v904 = vunpack.c.l.b16 %v806
    %v905 = vunpack.c.h.b16 %v806
    %v906 = vunpack.c.l.b16 %v807
    %v907 = vunpack.c.h.b16 %v807
    %v908 = vunpack.c.l.b16 %v808
    %v909 = vunpack.c.h.b16 %v808
    %v910 = vpack.c.b16 %v850, %v846
    %v911 = vpack.c.b16 %v851, %v847
    %v912 = vpack.c.b16 %v852, %v848
    %v913 = vpack.c.b16 %v853, %v849
    %v914 = vpack.c.b16 %v858, %v854
    %v915 = vpack.c.b16 %v859, %v855
    %v916 = vpack.c.b16 %v860, %v856
    %v917 = vpack.c.b16 %v861, %v857
    %v918 = vpack.c.b16 %v866, %v862
    %v919 = vpack.c.b16 %v867, %v863
    %v920 = vpack.c.b16 %v868, %v864
    %v921 = vpack.c.b16 %v869, %v865
    %v922 = vpack.c.b16 %v874, %v870
    %v923 = vpack.c.b16 %v875, %v871
    %v924 = vpack.c.b16 %v876, %v872
    %v925 = vpack.c.b16 %v877, %v873
    %v926 = vpack.c.b16 %v882, %v878
    %v927 = vpack.c.b16 %v883, %v879
    %v928 = vpack.c.b16 %v884, %v880
    %v929 = vpack.c.b16 %v885, %v881
    %v930 = vpack.c.b16 %v890, %v886
    %v931 = vpack.c.b16 %v891, %v887
    %v932 = vpack.c.b16 %v892, %v888
    %v933 = vpack.c.b16 %v893, %v889
    %v934 = vpack.c.b16 %v898, %v894
    %v935 = vpack.c.b16 %v899, %v895
    %v936 = vpack.c.b16 %v900, %v896
    %v937 = vpack.c.b16 %v901, %v897
    %v938 = vpack.c.b16 %v906, %v902
    %v939 = vpack.c.b16 %v907, %v903
    %v940 = vpack.c.b16 %v908, %v904
    %v941 = vpack.c.b16 %v909, %v905
    %974 = vmatprep.subr.bf16.mxu0 %v939
    %975 = vmatpush1.bf16.msra.mxu0 %v938
    %976 = vmatprep.subr.bf16.mxu0 %v935
    %977 = vmatpush1.bf16.msra.mxu0 %v934
    %978 = vmatprep.subr.bf16.mxu0 %v931
    %979 = vmatpush1.bf16.msra.mxu0 %v930
    %980 = vmatprep.subr.bf16.mxu0 %v927
    %981 = vmatpush1.bf16.msra.mxu0 %v926
    %982 = vmatprep.subr.bf16.mxu0 %v923
    %983 = vmatpush1.bf16.msra.mxu0 %v922
    %984 = vmatprep.subr.bf16.mxu0 %v919
    %985 = vmatpush1.bf16.msra.mxu0 %v918
    %986 = vmatprep.subr.bf16.mxu0 %v915
    %987 = vmatpush1.bf16.msra.mxu0 %v914
    %988 = vmatprep.subr.bf16.mxu0 %v911
    %989 = vmatpush1.bf16.msra.mxu0 %v910
    %990 = vmatprep.subr.bf16.mxu0 0
    %991 = vmatpush2.bf16.msra.mxu0 0
    %992 = vmatprep.subr.bf16.mxu0 0
    %993 = vmatpush2.bf16.msra.mxu0 0
    %994 = vmatprep.subr.bf16.mxu0 0
    %995 = vmatpush2.bf16.msra.mxu0 0
    %996 = vmatprep.subr.bf16.mxu0 0
    %997 = vmatpush2.bf16.msra.mxu0 0
    %998 = vmatprep.subr.bf16.mxu0 0
    %999 = vmatpush2.bf16.msra.mxu0 0
    %1000 = vmatprep.subr.bf16.mxu0 0
    %1001 = vmatpush2.bf16.msra.mxu0 0
    %1002 = vmatprep.subr.bf16.mxu0 0
    %1003 = vmatpush2.bf16.msra.mxu0 0
    %1004 = vmatprep.subr.bf16.mxu0 0
    %1005 = vmatpush2.bf16.msra.mxu0 0
    %1006 = vmatprep.mubr.bf16.mxu0 0
    %1007 = vmatmul.mubr.bf16.gmra.mxu0 %v776
    %v1008 = vpop.f32.mrf.mxu0
    %v1009 = vadd.f32 %v810, %v1008
    %v1010 = vpop.f32.mrf.mxu0
    %v1011 = vadd.f32 %v811, %v1010
    %v1012 = vpop.f32.mrf.mxu0
    %v1013 = vpop.f32.mrf.mxu0
    %1014 = vdwg.mxu0
    %1015 = vmatprep.subr.bf16.mxu0 %v941
    %1016 = vmatpush1.bf16.msra.mxu0 %v940
    %1017 = vmatprep.subr.bf16.mxu0 %v937
    %1018 = vmatpush1.bf16.msra.mxu0 %v936
    %1019 = vmatprep.subr.bf16.mxu0 %v933
    %1020 = vmatpush1.bf16.msra.mxu0 %v932
    %1021 = vmatprep.subr.bf16.mxu0 %v929
    %1022 = vmatpush1.bf16.msra.mxu0 %v928
    %1023 = vmatprep.subr.bf16.mxu0 %v925
    %1024 = vmatpush1.bf16.msra.mxu0 %v924
    %1025 = vmatprep.subr.bf16.mxu0 %v921
    %1026 = vmatpush1.bf16.msra.mxu0 %v920
    %1027 = vmatprep.subr.bf16.mxu0 %v917
    %1028 = vmatpush1.bf16.msra.mxu0 %v916
    %1029 = vmatprep.subr.bf16.mxu0 %v913
    %1030 = vmatpush1.bf16.msra.mxu0 %v912
    %1031 = vmatprep.subr.bf16.mxu0 0
    %1032 = vmatpush2.bf16.msra.mxu0 0
    %1033 = vmatprep.subr.bf16.mxu0 0
    %1034 = vmatpush2.bf16.msra.mxu0 0
    %1035 = vmatprep.subr.bf16.mxu0 0
    %1036 = vmatpush2.bf16.msra.mxu0 0
    %1037 = vmatprep.subr.bf16.mxu0 0
    %1038 = vmatpush2.bf16.msra.mxu0 0
    %1039 = vmatprep.subr.bf16.mxu0 0
    %1040 = vmatpush2.bf16.msra.mxu0 0
    %1041 = vmatprep.subr.bf16.mxu0 0
    %1042 = vmatpush2.bf16.msra.mxu0 0
    %1043 = vmatprep.subr.bf16.mxu0 0
    %1044 = vmatpush2.bf16.msra.mxu0 0
    %1045 = vmatprep.subr.bf16.mxu0 0
    %1046 = vmatpush2.bf16.msra.mxu0 0
    %1047 = vmatprep.mubr.bf16.mxu0 0
    %1048 = vmatmul.mubr.bf16.gmra.mxu0 %v776
    %v1049 = vpop.f32.mrf.mxu0
    %v1050 = vadd.f32 %v812, %v1049
    %v1051 = vpop.f32.mrf.mxu0
    %v1052 = vadd.f32 %v813, %v1051
    %v1053 = vpop.f32.mrf.mxu0
    %v1054 = vpop.f32.mrf.mxu0
    %1055 = vdwg.mxu0
    %v1056 = vxor.u32 %v1009, 2147483648
    %v1057 = vmul.f32 %v1056, 1.442695
    %v1058 = vpow.pop %v1057
    %v1059 = vadd.f32 %v1058, 1.0
    %v1060 = vrcp.pop %v1059
    %v1061 = vmul.f32 1.0, %v1060
    %v1062 = vxor.u32 %v1011, 2147483648
    %v1063 = vmul.f32 %v1062, 1.442695
    %v1064 = vpow.pop %v1063
    %v1065 = vadd.f32 %v1064, 1.0
    %v1066 = vrcp.pop %v1065
    %v1067 = vmul.f32 1.0, %v1066
    %v1068 = vtanh.pop %v1050
    %v1069 = vxor.u32 %v1052, 2147483648
    %v1070 = vmul.f32 %v1069, 1.442695
    %v1071 = vpow.pop %v1070
    %v1072 = vadd.f32 %v1071, 1.0
    %v1073 = vrcp.pop %v1072
    %v1074 = vmul.f32 1.0, %v1073
    %v1075 = vmul.f32 %v1067, %v772
    %v1076 = vmul.f32 %v1061, %v1068
    %v1077 = vadd.f32 %v1075, %v1076
    %v1078 = vtanh.pop %v1077
    %v1079 = vmul.f32 %v1074, %v1078
    %s1080 = scalar_lea.vmem [#allocation11], 8
    %1081 = vst [vmem:[%s1080] sm:$0xff] %v1079
    %v1082 = vpack.c.bf16 %v1079, %v1079
    %v1083 = vld [vmem:[#allocation10] sm:$0xff]
    %v1084 = vld [vmem:[#allocation10 + $0x8] sm:$0xff]
    %v1085 = vld [vmem:[#allocation10 + $0x10] sm:$0xff]
    %v1086 = vld [vmem:[#allocation10 + $0x18] sm:$0xff]
    %v1087 = vld [vmem:[#allocation10 + $0x20] sm:$0xff]
    %v1088 = vld [vmem:[#allocation10 + $0x28] sm:$0xff]
    %v1089 = vld [vmem:[#allocation10 + $0x30] sm:$0xff]
    %v1090 = vld [vmem:[#allocation10 + $0x38] sm:$0xff]
    %v1091 = vld [vmem:[#allocation10 + $0x40] sm:$0xff]
    %v1092 = vld [vmem:[#allocation10 + $0x48] sm:$0xff]
    %v1093 = vld [vmem:[#allocation10 + $0x50] sm:$0xff]
    %v1094 = vld [vmem:[#allocation10 + $0x58] sm:$0xff]
    %v1095 = vld [vmem:[#allocation10 + $0x60] sm:$0xff]
    %v1096 = vld [vmem:[#allocation10 + $0x68] sm:$0xff]
    %v1097 = vld [vmem:[#allocation10 + $0x70] sm:$0xff]
    %v1098 = vld [vmem:[#allocation10 + $0x78] sm:$0xff]
    %v1099 = vld [vmem:[#allocation10 + $0x80] sm:$0xff]
    %v1100 = vld [vmem:[#allocation10 + $0x88] sm:$0xff]
    %v1101 = vld [vmem:[#allocation10 + $0x90] sm:$0xff]
    %v1102 = vld [vmem:[#allocation10 + $0x98] sm:$0xff]
    %v1103 = vld [vmem:[#allocation10 + $0xa0] sm:$0xff]
    %v1104 = vld [vmem:[#allocation10 + $0xa8] sm:$0xff]
    %v1105 = vld [vmem:[#allocation10 + $0xb0] sm:$0xff]
    %v1106 = vld [vmem:[#allocation10 + $0xb8] sm:$0xff]
    %v1107 = vld [vmem:[#allocation10 + $0xc0] sm:$0xff]
    %v1108 = vld [vmem:[#allocation10 + $0xc8] sm:$0xff]
    %v1109 = vld [vmem:[#allocation10 + $0xd0] sm:$0xff]
    %v1110 = vld [vmem:[#allocation10 + $0xd8] sm:$0xff]
    %v1111 = vld [vmem:[#allocation10 + $0xe0] sm:$0xff]
    %v1112 = vld [vmem:[#allocation10 + $0xe8] sm:$0xff]
    %v1113 = vld [vmem:[#allocation10 + $0xf0] sm:$0xff]
    %v1114 = vld [vmem:[#allocation10 + $0xf8] sm:$0xff]
    %s1115 = scalar_lea.vmem [#allocation2], 64
    %v1116 = vld [vmem:[%s1115] sm:$0xff]
    %v1117 = vld [vmem:[%s1115 + $0x8] sm:$0xff]
    %v1118 = vld [vmem:[%s1115 + $0x10] sm:$0xff]
    %v1119 = vld [vmem:[%s1115 + $0x18] sm:$0xff]
    %v1152 = vunpack.c.l.b16 %v1083
    %v1153 = vunpack.c.h.b16 %v1083
    %v1154 = vunpack.c.l.b16 %v1084
    %v1155 = vunpack.c.h.b16 %v1084
    %v1156 = vunpack.c.l.b16 %v1085
    %v1157 = vunpack.c.h.b16 %v1085
    %v1158 = vunpack.c.l.b16 %v1086
    %v1159 = vunpack.c.h.b16 %v1086
    %v1160 = vunpack.c.l.b16 %v1087
    %v1161 = vunpack.c.h.b16 %v1087
    %v1162 = vunpack.c.l.b16 %v1088
    %v1163 = vunpack.c.h.b16 %v1088
    %v1164 = vunpack.c.l.b16 %v1089
    %v1165 = vunpack.c.h.b16 %v1089
    %v1166 = vunpack.c.l.b16 %v1090
    %v1167 = vunpack.c.h.b16 %v1090
    %v1168 = vunpack.c.l.b16 %v1091
    %v1169 = vunpack.c.h.b16 %v1091
    %v1170 = vunpack.c.l.b16 %v1092
    %v1171 = vunpack.c.h.b16 %v1092
    %v1172 = vunpack.c.l.b16 %v1093
    %v1173 = vunpack.c.h.b16 %v1093
    %v1174 = vunpack.c.l.b16 %v1094
    %v1175 = vunpack.c.h.b16 %v1094
    %v1176 = vunpack.c.l.b16 %v1095
    %v1177 = vunpack.c.h.b16 %v1095
    %v1178 = vunpack.c.l.b16 %v1096
    %v1179 = vunpack.c.h.b16 %v1096
    %v1180 = vunpack.c.l.b16 %v1097
    %v1181 = vunpack.c.h.b16 %v1097
    %v1182 = vunpack.c.l.b16 %v1098
    %v1183 = vunpack.c.h.b16 %v1098
    %v1184 = vunpack.c.l.b16 %v1099
    %v1185 = vunpack.c.h.b16 %v1099
    %v1186 = vunpack.c.l.b16 %v1100
    %v1187 = vunpack.c.h.b16 %v1100
    %v1188 = vunpack.c.l.b16 %v1101
    %v1189 = vunpack.c.h.b16 %v1101
    %v1190 = vunpack.c.l.b16 %v1102
    %v1191 = vunpack.c.h.b16 %v1102
    %v1192 = vunpack.c.l.b16 %v1103
    %v1193 = vunpack.c.h.b16 %v1103
    %v1194 = vunpack.c.l.b16 %v1104
    %v1195 = vunpack.c.h.b16 %v1104
    %v1196 = vunpack.c.l.b16 %v1105
    %v1197 = vunpack.c.h.b16 %v1105
    %v1198 = vunpack.c.l.b16 %v1106
    %v1199 = vunpack.c.h.b16 %v1106
    %v1200 = vunpack.c.l.b16 %v1107
    %v1201 = vunpack.c.h.b16 %v1107
    %v1202 = vunpack.c.l.b16 %v1108
    %v1203 = vunpack.c.h.b16 %v1108
    %v1204 = vunpack.c.l.b16 %v1109
    %v1205 = vunpack.c.h.b16 %v1109
    %v1206 = vunpack.c.l.b16 %v1110
    %v1207 = vunpack.c.h.b16 %v1110
    %v1208 = vunpack.c.l.b16 %v1111
    %v1209 = vunpack.c.h.b16 %v1111
    %v1210 = vunpack.c.l.b16 %v1112
    %v1211 = vunpack.c.h.b16 %v1112
    %v1212 = vunpack.c.l.b16 %v1113
    %v1213 = vunpack.c.h.b16 %v1113
    %v1214 = vunpack.c.l.b16 %v1114
    %v1215 = vunpack.c.h.b16 %v1114
    %v1216 = vpack.c.b16 %v1156, %v1152
    %v1217 = vpack.c.b16 %v1157, %v1153
    %v1218 = vpack.c.b16 %v1158, %v1154
    %v1219 = vpack.c.b16 %v1159, %v1155
    %v1220 = vpack.c.b16 %v1164, %v1160
    %v1221 = vpack.c.b16 %v1165, %v1161
    %v1222 = vpack.c.b16 %v1166, %v1162
    %v1223 = vpack.c.b16 %v1167, %v1163
    %v1224 = vpack.c.b16 %v1172, %v1168
    %v1225 = vpack.c.b16 %v1173, %v1169
    %v1226 = vpack.c.b16 %v1174, %v1170
    %v1227 = vpack.c.b16 %v1175, %v1171
    %v1228 = vpack.c.b16 %v1180, %v1176
    %v1229 = vpack.c.b16 %v1181, %v1177
    %v1230 = vpack.c.b16 %v1182, %v1178
    %v1231 = vpack.c.b16 %v1183, %v1179
    %v1232 = vpack.c.b16 %v1188, %v1184
    %v1233 = vpack.c.b16 %v1189, %v1185
    %v1234 = vpack.c.b16 %v1190, %v1186
    %v1235 = vpack.c.b16 %v1191, %v1187
    %v1236 = vpack.c.b16 %v1196, %v1192
    %v1237 = vpack.c.b16 %v1197, %v1193
    %v1238 = vpack.c.b16 %v1198, %v1194
    %v1239 = vpack.c.b16 %v1199, %v1195
    %v1240 = vpack.c.b16 %v1204, %v1200
    %v1241 = vpack.c.b16 %v1205, %v1201
    %v1242 = vpack.c.b16 %v1206, %v1202
    %v1243 = vpack.c.b16 %v1207, %v1203
    %v1244 = vpack.c.b16 %v1212, %v1208
    %v1245 = vpack.c.b16 %v1213, %v1209
    %v1246 = vpack.c.b16 %v1214, %v1210
    %v1247 = vpack.c.b16 %v1215, %v1211
    %1280 = vmatprep.subr.bf16.mxu0 %v1245
    %1281 = vmatpush1.bf16.msra.mxu0 %v1244
    %1282 = vmatprep.subr.bf16.mxu0 %v1241
    %1283 = vmatpush1.bf16.msra.mxu0 %v1240
    %1284 = vmatprep.subr.bf16.mxu0 %v1237
    %1285 = vmatpush1.bf16.msra.mxu0 %v1236
    %1286 = vmatprep.subr.bf16.mxu0 %v1233
    %1287 = vmatpush1.bf16.msra.mxu0 %v1232
    %1288 = vmatprep.subr.bf16.mxu0 %v1229
    %1289 = vmatpush1.bf16.msra.mxu0 %v1228
    %1290 = vmatprep.subr.bf16.mxu0 %v1225
    %1291 = vmatpush1.bf16.msra.mxu0 %v1224
    %1292 = vmatprep.subr.bf16.mxu0 %v1221
    %1293 = vmatpush1.bf16.msra.mxu0 %v1220
    %1294 = vmatprep.subr.bf16.mxu0 %v1217
    %1295 = vmatpush1.bf16.msra.mxu0 %v1216
    %1296 = vmatprep.subr.bf16.mxu0 0
    %1297 = vmatpush2.bf16.msra.mxu0 0
    %1298 = vmatprep.subr.bf16.mxu0 0
    %1299 = vmatpush2.bf16.msra.mxu0 0
    %1300 = vmatprep.subr.bf16.mxu0 0
    %1301 = vmatpush2.bf16.msra.mxu0 0
    %1302 = vmatprep.subr.bf16.mxu0 0
    %1303 = vmatpush2.bf16.msra.mxu0 0
    %1304 = vmatprep.subr.bf16.mxu0 0
    %1305 = vmatpush2.bf16.msra.mxu0 0
    %1306 = vmatprep.subr.bf16.mxu0 0
    %1307 = vmatpush2.bf16.msra.mxu0 0
    %1308 = vmatprep.subr.bf16.mxu0 0
    %1309 = vmatpush2.bf16.msra.mxu0 0
    %1310 = vmatprep.subr.bf16.mxu0 0
    %1311 = vmatpush2.bf16.msra.mxu0 0
    %1312 = vmatprep.mubr.bf16.mxu0 0
    %1313 = vmatmul.mubr.bf16.gmra.mxu0 %v1082
    %v1314 = vpop.f32.mrf.mxu0
    %v1315 = vadd.f32 %v1116, %v1314
    %v1316 = vpop.f32.mrf.mxu0
    %v1317 = vadd.f32 %v1117, %v1316
    %v1318 = vpop.f32.mrf.mxu0
    %v1319 = vpop.f32.mrf.mxu0
    %1320 = vdwg.mxu0
    %1321 = vmatprep.subr.bf16.mxu0 %v1247
    %1322 = vmatpush1.bf16.msra.mxu0 %v1246
    %1323 = vmatprep.subr.bf16.mxu0 %v1243
    %1324 = vmatpush1.bf16.msra.mxu0 %v1242
    %1325 = vmatprep.subr.bf16.mxu0 %v1239
    %1326 = vmatpush1.bf16.msra.mxu0 %v1238
    %1327 = vmatprep.subr.bf16.mxu0 %v1235
    %1328 = vmatpush1.bf16.msra.mxu0 %v1234
    %1329 = vmatprep.subr.bf16.mxu0 %v1231
    %1330 = vmatpush1.bf16.msra.mxu0 %v1230
    %1331 = vmatprep.subr.bf16.mxu0 %v1227
    %1332 = vmatpush1.bf16.msra.mxu0 %v1226
    %1333 = vmatprep.subr.bf16.mxu0 %v1223
    %1334 = vmatpush1.bf16.msra.mxu0 %v1222
    %1335 = vmatprep.subr.bf16.mxu0 %v1219
    %1336 = vmatpush1.bf16.msra.mxu0 %v1218
    %1337 = vmatprep.subr.bf16.mxu0 0
    %1338 = vmatpush2.bf16.msra.mxu0 0
    %1339 = vmatprep.subr.bf16.mxu0 0
    %1340 = vmatpush2.bf16.msra.mxu0 0
    %1341 = vmatprep.subr.bf16.mxu0 0
    %1342 = vmatpush2.bf16.msra.mxu0 0
    %1343 = vmatprep.subr.bf16.mxu0 0
    %1344 = vmatpush2.bf16.msra.mxu0 0
    %1345 = vmatprep.subr.bf16.mxu0 0
    %1346 = vmatpush2.bf16.msra.mxu0 0
    %1347 = vmatprep.subr.bf16.mxu0 0
    %1348 = vmatpush2.bf16.msra.mxu0 0
    %1349 = vmatprep.subr.bf16.mxu0 0
    %1350 = vmatpush2.bf16.msra.mxu0 0
    %1351 = vmatprep.subr.bf16.mxu0 0
    %1352 = vmatpush2.bf16.msra.mxu0 0
    %1353 = vmatprep.mubr.bf16.mxu0 0
    %1354 = vmatmul.mubr.bf16.gmra.mxu0 %v1082
    %v1355 = vpop.f32.mrf.mxu0
    %v1356 = vadd.f32 %v1118, %v1355
    %v1357 = vpop.f32.mrf.mxu0
    %v1358 = vadd.f32 %v1119, %v1357
    %v1359 = vpop.f32.mrf.mxu0
    %v1360 = vpop.f32.mrf.mxu0
    %1361 = vdwg.mxu0
    %v1362 = vxor.u32 %v1315, 2147483648
    %v1363 = vmul.f32 %v1362, 1.442695
    %v1364 = vpow.pop %v1363
    %v1365 = vadd.f32 %v1364, 1.0
    %v1366 = vrcp.pop %v1365
    %v1367 = vmul.f32 1.0, %v1366
    %v1368 = vxor.u32 %v1317, 2147483648
    %v1369 = vmul.f32 %v1368, 1.442695
    %v1370 = vpow.pop %v1369
    %v1371 = vadd.f32 %v1370, 1.0
    %v1372 = vrcp.pop %v1371
    %v1373 = vmul.f32 1.0, %v1372
    %v1374 = vtanh.pop %v1356
    %v1375 = vxor.u32 %v1358, 2147483648
    %v1376 = vmul.f32 %v1375, 1.442695
    %v1377 = vpow.pop %v1376
    %v1378 = vadd.f32 %v1377, 1.0
    %v1379 = vrcp.pop %v1378
    %v1380 = vmul.f32 1.0, %v1379
    %v1381 = vmul.f32 %v1373, %v1077
    %v1382 = vmul.f32 %v1367, %v1374
    %v1383 = vadd.f32 %v1381, %v1382
    %v1384 = vtanh.pop %v1383
    %v1385 = vmul.f32 %v1380, %v1384
    %s1386 = scalar_lea.vmem [#allocation11], 16
    %1387 = vst [vmem:[%s1386] sm:$0xff] %v1385
    %v1388 = vpack.c.bf16 %v1385, %v1385
    %v1389 = vld [vmem:[#allocation10] sm:$0xff]
    %v1390 = vld [vmem:[#allocation10 + $0x8] sm:$0xff]
    %v1391 = vld [vmem:[#allocation10 + $0x10] sm:$0xff]
    %v1392 = vld [vmem:[#allocation10 + $0x18] sm:$0xff]
    %v1393 = vld [vmem:[#allocation10 + $0x20] sm:$0xff]
    %v1394 = vld [vmem:[#allocation10 + $0x28] sm:$0xff]
    %v1395 = vld [vmem:[#allocation10 + $0x30] sm:$0xff]
    %v1396 = vld [vmem:[#allocation10 + $0x38] sm:$0xff]
    %v1397 = vld [vmem:[#allocation10 + $0x40] sm:$0xff]
    %v1398 = vld [vmem:[#allocation10 + $0x48] sm:$0xff]
    %v1399 = vld [vmem:[#allocation10 + $0x50] sm:$0xff]
    %v1400 = vld [vmem:[#allocation10 + $0x58] sm:$0xff]
    %v1401 = vld [vmem:[#allocation10 + $0x60] sm:$0xff]
    %v1402 = vld [vmem:[#allocation10 + $0x68] sm:$0xff]
    %v1403 = vld [vmem:[#allocation10 + $0x70] sm:$0xff]
    %v1404 = vld [vmem:[#allocation10 + $0x78] sm:$0xff]
    %v1405 = vld [vmem:[#allocation10 + $0x80] sm:$0xff]
    %v1406 = vld [vmem:[#allocation10 + $0x88] sm:$0xff]
    %v1407 = vld [vmem:[#allocation10 + $0x90] sm:$0xff]
    %v1408 = vld [vmem:[#allocation10 + $0x98] sm:$0xff]
    %v1409 = vld [vmem:[#allocation10 + $0xa0] sm:$0xff]
    %v1410 = vld [vmem:[#allocation10 + $0xa8] sm:$0xff]
    %v1411 = vld [vmem:[#allocation10 + $0xb0] sm:$0xff]
    %v1412 = vld [vmem:[#allocation10 + $0xb8] sm:$0xff]
    %v1413 = vld [vmem:[#allocation10 + $0xc0] sm:$0xff]
    %v1414 = vld [vmem:[#allocation10 + $0xc8] sm:$0xff]
    %v1415 = vld [vmem:[#allocation10 + $0xd0] sm:$0xff]
    %v1416 = vld [vmem:[#allocation10 + $0xd8] sm:$0xff]
    %v1417 = vld [vmem:[#allocation10 + $0xe0] sm:$0xff]
    %v1418 = vld [vmem:[#allocation10 + $0xe8] sm:$0xff]
    %v1419 = vld [vmem:[#allocation10 + $0xf0] sm:$0xff]
    %v1420 = vld [vmem:[#allocation10 + $0xf8] sm:$0xff]
    %s1421 = scalar_lea.vmem [#allocation2], 96
    %v1422 = vld [vmem:[%s1421] sm:$0xff]
    %v1423 = vld [vmem:[%s1421 + $0x8] sm:$0xff]
    %v1424 = vld [vmem:[%s1421 + $0x10] sm:$0xff]
    %v1425 = vld [vmem:[%s1421 + $0x18] sm:$0xff]
    %v1458 = vunpack.c.l.b16 %v1389
    %v1459 = vunpack.c.h.b16 %v1389
    %v1460 = vunpack.c.l.b16 %v1390
    %v1461 = vunpack.c.h.b16 %v1390
    %v1462 = vunpack.c.l.b16 %v1391
    %v1463 = vunpack.c.h.b16 %v1391
    %v1464 = vunpack.c.l.b16 %v1392
    %v1465 = vunpack.c.h.b16 %v1392
    %v1466 = vunpack.c.l.b16 %v1393
    %v1467 = vunpack.c.h.b16 %v1393
    %v1468 = vunpack.c.l.b16 %v1394
    %v1469 = vunpack.c.h.b16 %v1394
    %v1470 = vunpack.c.l.b16 %v1395
    %v1471 = vunpack.c.h.b16 %v1395
    %v1472 = vunpack.c.l.b16 %v1396
    %v1473 = vunpack.c.h.b16 %v1396
    %v1474 = vunpack.c.l.b16 %v1397
    %v1475 = vunpack.c.h.b16 %v1397
    %v1476 = vunpack.c.l.b16 %v1398
    %v1477 = vunpack.c.h.b16 %v1398
    %v1478 = vunpack.c.l.b16 %v1399
    %v1479 = vunpack.c.h.b16 %v1399
    %v1480 = vunpack.c.l.b16 %v1400
    %v1481 = vunpack.c.h.b16 %v1400
    %v1482 = vunpack.c.l.b16 %v1401
    %v1483 = vunpack.c.h.b16 %v1401
    %v1484 = vunpack.c.l.b16 %v1402
    %v1485 = vunpack.c.h.b16 %v1402
    %v1486 = vunpack.c.l.b16 %v1403
    %v1487 = vunpack.c.h.b16 %v1403
    %v1488 = vunpack.c.l.b16 %v1404
    %v1489 = vunpack.c.h.b16 %v1404
    %v1490 = vunpack.c.l.b16 %v1405
    %v1491 = vunpack.c.h.b16 %v1405
    %v1492 = vunpack.c.l.b16 %v1406
    %v1493 = vunpack.c.h.b16 %v1406
    %v1494 = vunpack.c.l.b16 %v1407
    %v1495 = vunpack.c.h.b16 %v1407
    %v1496 = vunpack.c.l.b16 %v1408
    %v1497 = vunpack.c.h.b16 %v1408
    %v1498 = vunpack.c.l.b16 %v1409
    %v1499 = vunpack.c.h.b16 %v1409
    %v1500 = vunpack.c.l.b16 %v1410
    %v1501 = vunpack.c.h.b16 %v1410
    %v1502 = vunpack.c.l.b16 %v1411
    %v1503 = vunpack.c.h.b16 %v1411
    %v1504 = vunpack.c.l.b16 %v1412
    %v1505 = vunpack.c.h.b16 %v1412
    %v1506 = vunpack.c.l.b16 %v1413
    %v1507 = vunpack.c.h.b16 %v1413
    %v1508 = vunpack.c.l.b16 %v1414
    %v1509 = vunpack.c.h.b16 %v1414
    %v1510 = vunpack.c.l.b16 %v1415
    %v1511 = vunpack.c.h.b16 %v1415
    %v1512 = vunpack.c.l.b16 %v1416
    %v1513 = vunpack.c.h.b16 %v1416
    %v1514 = vunpack.c.l.b16 %v1417
    %v1515 = vunpack.c.h.b16 %v1417
    %v1516 = vunpack.c.l.b16 %v1418
    %v1517 = vunpack.c.h.b16 %v1418
    %v1518 = vunpack.c.l.b16 %v1419
    %v1519 = vunpack.c.h.b16 %v1419
    %v1520 = vunpack.c.l.b16 %v1420
    %v1521 = vunpack.c.h.b16 %v1420
    %v1522 = vpack.c.b16 %v1462, %v1458
    %v1523 = vpack.c.b16 %v1463, %v1459
    %v1524 = vpack.c.b16 %v1464, %v1460
    %v1525 = vpack.c.b16 %v1465, %v1461
    %v1526 = vpack.c.b16 %v1470, %v1466
    %v1527 = vpack.c.b16 %v1471, %v1467
    %v1528 = vpack.c.b16 %v1472, %v1468
    %v1529 = vpack.c.b16 %v1473, %v1469
    %v1530 = vpack.c.b16 %v1478, %v1474
    %v1531 = vpack.c.b16 %v1479, %v1475
    %v1532 = vpack.c.b16 %v1480, %v1476
    %v1533 = vpack.c.b16 %v1481, %v1477
    %v1534 = vpack.c.b16 %v1486, %v1482
    %v1535 = vpack.c.b16 %v1487, %v1483
    %v1536 = vpack.c.b16 %v1488, %v1484
    %v1537 = vpack.c.b16 %v1489, %v1485
    %v1538 = vpack.c.b16 %v1494, %v1490
    %v1539 = vpack.c.b16 %v1495, %v1491
    %v1540 = vpack.c.b16 %v1496, %v1492
    %v1541 = vpack.c.b16 %v1497, %v1493
    %v1542 = vpack.c.b16 %v1502, %v1498
    %v1543 = vpack.c.b16 %v1503, %v1499
    %v1544 = vpack.c.b16 %v1504, %v1500
    %v1545 = vpack.c.b16 %v1505, %v1501
    %v1546 = vpack.c.b16 %v1510, %v1506
    %v1547 = vpack.c.b16 %v1511, %v1507
    %v1548 = vpack.c.b16 %v1512, %v1508
    %v1549 = vpack.c.b16 %v1513, %v1509
    %v1550 = vpack.c.b16 %v1518, %v1514
    %v1551 = vpack.c.b16 %v1519, %v1515
    %v1552 = vpack.c.b16 %v1520, %v1516
    %v1553 = vpack.c.b16 %v1521, %v1517
    %1586 = vmatprep.subr.bf16.mxu0 %v1551
    %1587 = vmatpush1.bf16.msra.mxu0 %v1550
    %1588 = vmatprep.subr.bf16.mxu0 %v1547
    %1589 = vmatpush1.bf16.msra.mxu0 %v1546
    %1590 = vmatprep.subr.bf16.mxu0 %v1543
    %1591 = vmatpush1.bf16.msra.mxu0 %v1542
    %1592 = vmatprep.subr.bf16.mxu0 %v1539
    %1593 = vmatpush1.bf16.msra.mxu0 %v1538
    %1594 = vmatprep.subr.bf16.mxu0 %v1535
    %1595 = vmatpush1.bf16.msra.mxu0 %v1534
    %1596 = vmatprep.subr.bf16.mxu0 %v1531
    %1597 = vmatpush1.bf16.msra.mxu0 %v1530
    %1598 = vmatprep.subr.bf16.mxu0 %v1527
    %1599 = vmatpush1.bf16.msra.mxu0 %v1526
    %1600 = vmatprep.subr.bf16.mxu0 %v1523
    %1601 = vmatpush1.bf16.msra.mxu0 %v1522
    %1602 = vmatprep.subr.bf16.mxu0 0
    %1603 = vmatpush2.bf16.msra.mxu0 0
    %1604 = vmatprep.subr.bf16.mxu0 0
    %1605 = vmatpush2.bf16.msra.mxu0 0
    %1606 = vmatprep.subr.bf16.mxu0 0
    %1607 = vmatpush2.bf16.msra.mxu0 0
    %1608 = vmatprep.subr.bf16.mxu0 0
    %1609 = vmatpush2.bf16.msra.mxu0 0
    %1610 = vmatprep.subr.bf16.mxu0 0
    %1611 = vmatpush2.bf16.msra.mxu0 0
    %1612 = vmatprep.subr.bf16.mxu0 0
    %1613 = vmatpush2.bf16.msra.mxu0 0
    %1614 = vmatprep.subr.bf16.mxu0 0
    %1615 = vmatpush2.bf16.msra.mxu0 0
    %1616 = vmatprep.subr.bf16.mxu0 0
    %1617 = vmatpush2.bf16.msra.mxu0 0
    %1618 = vmatprep.mubr.bf16.mxu0 0
    %1619 = vmatmul.mubr.bf16.gmra.mxu0 %v1388
    %v1620 = vpop.f32.mrf.mxu0
    %v1621 = vadd.f32 %v1422, %v1620
    %v1622 = vpop.f32.mrf.mxu0
    %v1623 = vadd.f32 %v1423, %v1622
    %v1624 = vpop.f32.mrf.mxu0
    %v1625 = vpop.f32.mrf.mxu0
    %1626 = vdwg.mxu0
    %1627 = vmatprep.subr.bf16.mxu0 %v1553
    %1628 = vmatpush1.bf16.msra.mxu0 %v1552
    %1629 = vmatprep.subr.bf16.mxu0 %v1549
    %1630 = vmatpush1.bf16.msra.mxu0 %v1548
    %1631 = vmatprep.subr.bf16.mxu0 %v1545
    %1632 = vmatpush1.bf16.msra.mxu0 %v1544
    %1633 = vmatprep.subr.bf16.mxu0 %v1541
    %1634 = vmatpush1.bf16.msra.mxu0 %v1540
    %1635 = vmatprep.subr.bf16.mxu0 %v1537
    %1636 = vmatpush1.bf16.msra.mxu0 %v1536
    %1637 = vmatprep.subr.bf16.mxu0 %v1533
    %1638 = vmatpush1.bf16.msra.mxu0 %v1532
    %1639 = vmatprep.subr.bf16.mxu0 %v1529
    %1640 = vmatpush1.bf16.msra.mxu0 %v1528
    %1641 = vmatprep.subr.bf16.mxu0 %v1525
    %1642 = vmatpush1.bf16.msra.mxu0 %v1524
    %1643 = vmatprep.subr.bf16.mxu0 0
    %1644 = vmatpush2.bf16.msra.mxu0 0
    %1645 = vmatprep.subr.bf16.mxu0 0
    %1646 = vmatpush2.bf16.msra.mxu0 0
    %1647 = vmatprep.subr.bf16.mxu0 0
    %1648 = vmatpush2.bf16.msra.mxu0 0
    %1649 = vmatprep.subr.bf16.mxu0 0
    %1650 = vmatpush2.bf16.msra.mxu0 0
    %1651 = vmatprep.subr.bf16.mxu0 0
    %1652 = vmatpush2.bf16.msra.mxu0 0
    %1653 = vmatprep.subr.bf16.mxu0 0
    %1654 = vmatpush2.bf16.msra.mxu0 0
    %1655 = vmatprep.subr.bf16.mxu0 0
    %1656 = vmatpush2.bf16.msra.mxu0 0
    %1657 = vmatprep.subr.bf16.mxu0 0
    %1658 = vmatpush2.bf16.msra.mxu0 0
    %1659 = vmatprep.mubr.bf16.mxu0 0
    %1660 = vmatmul.mubr.bf16.gmra.mxu0 %v1388
    %v1661 = vpop.f32.mrf.mxu0
    %v1662 = vadd.f32 %v1424, %v1661
    %v1663 = vpop.f32.mrf.mxu0
    %v1664 = vadd.f32 %v1425, %v1663
    %v1665 = vpop.f32.mrf.mxu0
    %v1666 = vpop.f32.mrf.mxu0
    %1667 = vdwg.mxu0
    %v1668 = vxor.u32 %v1621, 2147483648
    %v1669 = vmul.f32 %v1668, 1.442695
    %v1670 = vpow.pop %v1669
    %v1671 = vadd.f32 %v1670, 1.0
    %v1672 = vrcp.pop %v1671
    %v1673 = vmul.f32 1.0, %v1672
    %v1674 = vxor.u32 %v1623, 2147483648
    %v1675 = vmul.f32 %v1674, 1.442695
    %v1676 = vpow.pop %v1675
    %v1677 = vadd.f32 %v1676, 1.0
    %v1678 = vrcp.pop %v1677
    %v1679 = vmul.f32 1.0, %v1678
    %v1680 = vtanh.pop %v1662
    %v1681 = vxor.u32 %v1664, 2147483648
    %v1682 = vmul.f32 %v1681, 1.442695
    %v1683 = vpow.pop %v1682
    %v1684 = vadd.f32 %v1683, 1.0
    %v1685 = vrcp.pop %v1684
    %v1686 = vmul.f32 1.0, %v1685
    %v1687 = vmul.f32 %v1679, %v1383
    %v1688 = vmul.f32 %v1673, %v1680
    %v1689 = vadd.f32 %v1687, %v1688
    %v1690 = vtanh.pop %v1689
    %v1691 = vmul.f32 %v1686, %v1690
    %s1692 = scalar_lea.vmem [#allocation11], 24
    %1693 = vst [vmem:[%s1692] sm:$0xff] %v1691
    %v1694 = vpack.c.bf16 %v1691, %v1691
    %v1695 = vld [vmem:[#allocation10] sm:$0xff]
    %v1696 = vld [vmem:[#allocation10 + $0x8] sm:$0xff]
    %v1697 = vld [vmem:[#allocation10 + $0x10] sm:$0xff]
    %v1698 = vld [vmem:[#allocation10 + $0x18] sm:$0xff]
    %v1699 = vld [vmem:[#allocation10 + $0x20] sm:$0xff]
    %v1700 = vld [vmem:[#allocation10 + $0x28] sm:$0xff]
    %v1701 = vld [vmem:[#allocation10 + $0x30] sm:$0xff]
    %v1702 = vld [vmem:[#allocation10 + $0x38] sm:$0xff]
    %v1703 = vld [vmem:[#allocation10 + $0x40] sm:$0xff]
    %v1704 = vld [vmem:[#allocation10 + $0x48] sm:$0xff]
    %v1705 = vld [vmem:[#allocation10 + $0x50] sm:$0xff]
    %v1706 = vld [vmem:[#allocation10 + $0x58] sm:$0xff]
    %v1707 = vld [vmem:[#allocation10 + $0x60] sm:$0xff]
    %v1708 = vld [vmem:[#allocation10 + $0x68] sm:$0xff]
    %v1709 = vld [vmem:[#allocation10 + $0x70] sm:$0xff]
    %v1710 = vld [vmem:[#allocation10 + $0x78] sm:$0xff]
    %v1711 = vld [vmem:[#allocation10 + $0x80] sm:$0xff]
    %v1712 = vld [vmem:[#allocation10 + $0x88] sm:$0xff]
    %v1713 = vld [vmem:[#allocation10 + $0x90] sm:$0xff]
    %v1714 = vld [vmem:[#allocation10 + $0x98] sm:$0xff]
    %v1715 = vld [vmem:[#allocation10 + $0xa0] sm:$0xff]
    %v1716 = vld [vmem:[#allocation10 + $0xa8] sm:$0xff]
    %v1717 = vld [vmem:[#allocation10 + $0xb0] sm:$0xff]
    %v1718 = vld [vmem:[#allocation10 + $0xb8] sm:$0xff]
    %v1719 = vld [vmem:[#allocation10 + $0xc0] sm:$0xff]
    %v1720 = vld [vmem:[#allocation10 + $0xc8] sm:$0xff]
    %v1721 = vld [vmem:[#allocation10 + $0xd0] sm:$0xff]
    %v1722 = vld [vmem:[#allocation10 + $0xd8] sm:$0xff]
    %v1723 = vld [vmem:[#allocation10 + $0xe0] sm:$0xff]
    %v1724 = vld [vmem:[#allocation10 + $0xe8] sm:$0xff]
    %v1725 = vld [vmem:[#allocation10 + $0xf0] sm:$0xff]
    %v1726 = vld [vmem:[#allocation10 + $0xf8] sm:$0xff]
    %s1727 = scalar_lea.vmem [#allocation2], 128
    %v1728 = vld [vmem:[%s1727] sm:$0xff]
    %v1729 = vld [vmem:[%s1727 + $0x8] sm:$0xff]
    %v1730 = vld [vmem:[%s1727 + $0x10] sm:$0xff]
    %v1731 = vld [vmem:[%s1727 + $0x18] sm:$0xff]
    %v1764 = vunpack.c.l.b16 %v1695
    %v1765 = vunpack.c.h.b16 %v1695
    %v1766 = vunpack.c.l.b16 %v1696
    %v1767 = vunpack.c.h.b16 %v1696
    %v1768 = vunpack.c.l.b16 %v1697
    %v1769 = vunpack.c.h.b16 %v1697
    %v1770 = vunpack.c.l.b16 %v1698
    %v1771 = vunpack.c.h.b16 %v1698
    %v1772 = vunpack.c.l.b16 %v1699
    %v1773 = vunpack.c.h.b16 %v1699
    %v1774 = vunpack.c.l.b16 %v1700
    %v1775 = vunpack.c.h.b16 %v1700
    %v1776 = vunpack.c.l.b16 %v1701
    %v1777 = vunpack.c.h.b16 %v1701
    %v1778 = vunpack.c.l.b16 %v1702
    %v1779 = vunpack.c.h.b16 %v1702
    %v1780 = vunpack.c.l.b16 %v1703
    %v1781 = vunpack.c.h.b16 %v1703
    %v1782 = vunpack.c.l.b16 %v1704
    %v1783 = vunpack.c.h.b16 %v1704
    %v1784 = vunpack.c.l.b16 %v1705
    %v1785 = vunpack.c.h.b16 %v1705
    %v1786 = vunpack.c.l.b16 %v1706
    %v1787 = vunpack.c.h.b16 %v1706
    %v1788 = vunpack.c.l.b16 %v1707
    %v1789 = vunpack.c.h.b16 %v1707
    %v1790 = vunpack.c.l.b16 %v1708
    %v1791 = vunpack.c.h.b16 %v1708
    %v1792 = vunpack.c.l.b16 %v1709
    %v1793 = vunpack.c.h.b16 %v1709
    %v1794 = vunpack.c.l.b16 %v1710
    %v1795 = vunpack.c.h.b16 %v1710
    %v1796 = vunpack.c.l.b16 %v1711
    %v1797 = vunpack.c.h.b16 %v1711
    %v1798 = vunpack.c.l.b16 %v1712
    %v1799 = vunpack.c.h.b16 %v1712
    %v1800 = vunpack.c.l.b16 %v1713
    %v1801 = vunpack.c.h.b16 %v1713
    %v1802 = vunpack.c.l.b16 %v1714
    %v1803 = vunpack.c.h.b16 %v1714
    %v1804 = vunpack.c.l.b16 %v1715
    %v1805 = vunpack.c.h.b16 %v1715
    %v1806 = vunpack.c.l.b16 %v1716
    %v1807 = vunpack.c.h.b16 %v1716
    %v1808 = vunpack.c.l.b16 %v1717
    %v1809 = vunpack.c.h.b16 %v1717
    %v1810 = vunpack.c.l.b16 %v1718
    %v1811 = vunpack.c.h.b16 %v1718
    %v1812 = vunpack.c.l.b16 %v1719
    %v1813 = vunpack.c.h.b16 %v1719
    %v1814 = vunpack.c.l.b16 %v1720
    %v1815 = vunpack.c.h.b16 %v1720
    %v1816 = vunpack.c.l.b16 %v1721
    %v1817 = vunpack.c.h.b16 %v1721
    %v1818 = vunpack.c.l.b16 %v1722
    %v1819 = vunpack.c.h.b16 %v1722
    %v1820 = vunpack.c.l.b16 %v1723
    %v1821 = vunpack.c.h.b16 %v1723
    %v1822 = vunpack.c.l.b16 %v1724
    %v1823 = vunpack.c.h.b16 %v1724
    %v1824 = vunpack.c.l.b16 %v1725
    %v1825 = vunpack.c.h.b16 %v1725
    %v1826 = vunpack.c.l.b16 %v1726
    %v1827 = vunpack.c.h.b16 %v1726
    %v1828 = vpack.c.b16 %v1768, %v1764
    %v1829 = vpack.c.b16 %v1769, %v1765
    %v1830 = vpack.c.b16 %v1770, %v1766
    %v1831 = vpack.c.b16 %v1771, %v1767
    %v1832 = vpack.c.b16 %v1776, %v1772
    %v1833 = vpack.c.b16 %v1777, %v1773
    %v1834 = vpack.c.b16 %v1778, %v1774
    %v1835 = vpack.c.b16 %v1779, %v1775
    %v1836 = vpack.c.b16 %v1784, %v1780
    %v1837 = vpack.c.b16 %v1785, %v1781
    %v1838 = vpack.c.b16 %v1786, %v1782
    %v1839 = vpack.c.b16 %v1787, %v1783
    %v1840 = vpack.c.b16 %v1792, %v1788
    %v1841 = vpack.c.b16 %v1793, %v1789
    %v1842 = vpack.c.b16 %v1794, %v1790
    %v1843 = vpack.c.b16 %v1795, %v1791
    %v1844 = vpack.c.b16 %v1800, %v1796
    %v1845 = vpack.c.b16 %v1801, %v1797
    %v1846 = vpack.c.b16 %v1802, %v1798
    %v1847 = vpack.c.b16 %v1803, %v1799
    %v1848 = vpack.c.b16 %v1808, %v1804
    %v1849 = vpack.c.b16 %v1809, %v1805
    %v1850 = vpack.c.b16 %v1810, %v1806
    %v1851 = vpack.c.b16 %v1811, %v1807
    %v1852 = vpack.c.b16 %v1816, %v1812
    %v1853 = vpack.c.b16 %v1817, %v1813
    %v1854 = vpack.c.b16 %v1818, %v1814
    %v1855 = vpack.c.b16 %v1819, %v1815
    %v1856 = vpack.c.b16 %v1824, %v1820
    %v1857 = vpack.c.b16 %v1825, %v1821
    %v1858 = vpack.c.b16 %v1826, %v1822
    %v1859 = vpack.c.b16 %v1827, %v1823
    %1892 = vmatprep.subr.bf16.mxu0 %v1857
    %1893 = vmatpush1.bf16.msra.mxu0 %v1856
    %1894 = vmatprep.subr.bf16.mxu0 %v1853
    %1895 = vmatpush1.bf16.msra.mxu0 %v1852
    %1896 = vmatprep.subr.bf16.mxu0 %v1849
    %1897 = vmatpush1.bf16.msra.mxu0 %v1848
    %1898 = vmatprep.subr.bf16.mxu0 %v1845
    %1899 = vmatpush1.bf16.msra.mxu0 %v1844
    %1900 = vmatprep.subr.bf16.mxu0 %v1841
    %1901 = vmatpush1.bf16.msra.mxu0 %v1840
    %1902 = vmatprep.subr.bf16.mxu0 %v1837
    %1903 = vmatpush1.bf16.msra.mxu0 %v1836
    %1904 = vmatprep.subr.bf16.mxu0 %v1833
    %1905 = vmatpush1.bf16.msra.mxu0 %v1832
    %1906 = vmatprep.subr.bf16.mxu0 %v1829
    %1907 = vmatpush1.bf16.msra.mxu0 %v1828
    %1908 = vmatprep.subr.bf16.mxu0 0
    %1909 = vmatpush2.bf16.msra.mxu0 0
    %1910 = vmatprep.subr.bf16.mxu0 0
    %1911 = vmatpush2.bf16.msra.mxu0 0
    %1912 = vmatprep.subr.bf16.mxu0 0
    %1913 = vmatpush2.bf16.msra.mxu0 0
    %1914 = vmatprep.subr.bf16.mxu0 0
    %1915 = vmatpush2.bf16.msra.mxu0 0
    %1916 = vmatprep.subr.bf16.mxu0 0
    %1917 = vmatpush2.bf16.msra.mxu0 0
    %1918 = vmatprep.subr.bf16.mxu0 0
    %1919 = vmatpush2.bf16.msra.mxu0 0
    %1920 = vmatprep.subr.bf16.mxu0 0
    %1921 = vmatpush2.bf16.msra.mxu0 0
    %1922 = vmatprep.subr.bf16.mxu0 0
    %1923 = vmatpush2.bf16.msra.mxu0 0
    %1924 = vmatprep.mubr.bf16.mxu0 0
    %1925 = vmatmul.mubr.bf16.gmra.mxu0 %v1694
    %v1926 = vpop.f32.mrf.mxu0
    %v1927 = vadd.f32 %v1728, %v1926
    %v1928 = vpop.f32.mrf.mxu0
    %v1929 = vadd.f32 %v1729, %v1928
    %v1930 = vpop.f32.mrf.mxu0
    %v1931 = vpop.f32.mrf.mxu0
    %1932 = vdwg.mxu0
    %1933 = vmatprep.subr.bf16.mxu0 %v1859
    %1934 = vmatpush1.bf16.msra.mxu0 %v1858
    %1935 = vmatprep.subr.bf16.mxu0 %v1855
    %1936 = vmatpush1.bf16.msra.mxu0 %v1854
    %1937 = vmatprep.subr.bf16.mxu0 %v1851
    %1938 = vmatpush1.bf16.msra.mxu0 %v1850
    %1939 = vmatprep.subr.bf16.mxu0 %v1847
    %1940 = vmatpush1.bf16.msra.mxu0 %v1846
    %1941 = vmatprep.subr.bf16.mxu0 %v1843
    %1942 = vmatpush1.bf16.msra.mxu0 %v1842
    %1943 = vmatprep.subr.bf16.mxu0 %v1839
    %1944 = vmatpush1.bf16.msra.mxu0 %v1838
    %1945 = vmatprep.subr.bf16.mxu0 %v1835
    %1946 = vmatpush1.bf16.msra.mxu0 %v1834
    %1947 = vmatprep.subr.bf16.mxu0 %v1831
    %1948 = vmatpush1.bf16.msra.mxu0 %v1830
    %1949 = vmatprep.subr.bf16.mxu0 0
    %1950 = vmatpush2.bf16.msra.mxu0 0
    %1951 = vmatprep.subr.bf16.mxu0 0
    %1952 = vmatpush2.bf16.msra.mxu0 0
    %1953 = vmatprep.subr.bf16.mxu0 0
    %1954 = vmatpush2.bf16.msra.mxu0 0
    %1955 = vmatprep.subr.bf16.mxu0 0
    %1956 = vmatpush2.bf16.msra.mxu0 0
    %1957 = vmatprep.subr.bf16.mxu0 0
    %1958 = vmatpush2.bf16.msra.mxu0 0
    %1959 = vmatprep.subr.bf16.mxu0 0
    %1960 = vmatpush2.bf16.msra.mxu0 0
    %1961 = vmatprep.subr.bf16.mxu0 0
    %1962 = vmatpush2.bf16.msra.mxu0 0
    %1963 = vmatprep.subr.bf16.mxu0 0
    %1964 = vmatpush2.bf16.msra.mxu0 0
    %1965 = vmatprep.mubr.bf16.mxu0 0
    %1966 = vmatmul.mubr.bf16.gmra.mxu0 %v1694
    %v1967 = vpop.f32.mrf.mxu0
    %v1968 = vadd.f32 %v1730, %v1967
    %v1969 = vpop.f32.mrf.mxu0
    %v1970 = vadd.f32 %v1731, %v1969
    %v1971 = vpop.f32.mrf.mxu0
    %v1972 = vpop.f32.mrf.mxu0
    %1973 = vdwg.mxu0
    %v1974 = vxor.u32 %v1927, 2147483648
    %v1975 = vmul.f32 %v1974, 1.442695
    %v1976 = vpow.pop %v1975
    %v1977 = vadd.f32 %v1976, 1.0
    %v1978 = vrcp.pop %v1977
    %v1979 = vmul.f32 1.0, %v1978
    %v1980 = vxor.u32 %v1929, 2147483648
    %v1981 = vmul.f32 %v1980, 1.442695
    %v1982 = vpow.pop %v1981
    %v1983 = vadd.f32 %v1982, 1.0
    %v1984 = vrcp.pop %v1983
    %v1985 = vmul.f32 1.0, %v1984
    %v1986 = vtanh.pop %v1968
    %v1987 = vxor.u32 %v1970, 2147483648
    %v1988 = vmul.f32 %v1987, 1.442695
    %v1989 = vpow.pop %v1988
    %v1990 = vadd.f32 %v1989, 1.0
    %v1991 = vrcp.pop %v1990
    %v1992 = vmul.f32 1.0, %v1991
    %v1993 = vmul.f32 %v1985, %v1689
    %v1994 = vmul.f32 %v1979, %v1986
    %v1995 = vadd.f32 %v1993, %v1994
    %v1996 = vtanh.pop %v1995
    %v1997 = vmul.f32 %v1992, %v1996
    %s1998 = scalar_lea.vmem [#allocation11], 32
    %1999 = vst [vmem:[%s1998] sm:$0xff] %v1997
    %v2000 = vpack.c.bf16 %v1997, %v1997
    %v2001 = vld [vmem:[#allocation10] sm:$0xff]
    %v2002 = vld [vmem:[#allocation10 + $0x8] sm:$0xff]
    %v2003 = vld [vmem:[#allocation10 + $0x10] sm:$0xff]
    %v2004 = vld [vmem:[#allocation10 + $0x18] sm:$0xff]
    %v2005 = vld [vmem:[#allocation10 + $0x20] sm:$0xff]
    %v2006 = vld [vmem:[#allocation10 + $0x28] sm:$0xff]
    %v2007 = vld [vmem:[#allocation10 + $0x30] sm:$0xff]
    %v2008 = vld [vmem:[#allocation10 + $0x38] sm:$0xff]
    %v2009 = vld [vmem:[#allocation10 + $0x40] sm:$0xff]
    %v2010 = vld [vmem:[#allocation10 + $0x48] sm:$0xff]
    %v2011 = vld [vmem:[#allocation10 + $0x50] sm:$0xff]
    %v2012 = vld [vmem:[#allocation10 + $0x58] sm:$0xff]
    %v2013 = vld [vmem:[#allocation10 + $0x60] sm:$0xff]
    %v2014 = vld [vmem:[#allocation10 + $0x68] sm:$0xff]
    %v2015 = vld [vmem:[#allocation10 + $0x70] sm:$0xff]
    %v2016 = vld [vmem:[#allocation10 + $0x78] sm:$0xff]
    %v2017 = vld [vmem:[#allocation10 + $0x80] sm:$0xff]
    %v2018 = vld [vmem:[#allocation10 + $0x88] sm:$0xff]
    %v2019 = vld [vmem:[#allocation10 + $0x90] sm:$0xff]
    %v2020 = vld [vmem:[#allocation10 + $0x98] sm:$0xff]
    %v2021 = vld [vmem:[#allocation10 + $0xa0] sm:$0xff]
    %v2022 = vld [vmem:[#allocation10 + $0xa8] sm:$0xff]
    %v2023 = vld [vmem:[#allocation10 + $0xb0] sm:$0xff]
    %v2024 = vld [vmem:[#allocation10 + $0xb8] sm:$0xff]
    %v2025 = vld [vmem:[#allocation10 + $0xc0] sm:$0xff]
    %v2026 = vld [vmem:[#allocation10 + $0xc8] sm:$0xff]
    %v2027 = vld [vmem:[#allocation10 + $0xd0] sm:$0xff]
    %v2028 = vld [vmem:[#allocation10 + $0xd8] sm:$0xff]
    %v2029 = vld [vmem:[#allocation10 + $0xe0] sm:$0xff]
    %v2030 = vld [vmem:[#allocation10 + $0xe8] sm:$0xff]
    %v2031 = vld [vmem:[#allocation10 + $0xf0] sm:$0xff]
    %v2032 = vld [vmem:[#allocation10 + $0xf8] sm:$0xff]
    %s2033 = scalar_lea.vmem [#allocation2], 160
    %v2034 = vld [vmem:[%s2033] sm:$0xff]
    %v2035 = vld [vmem:[%s2033 + $0x8] sm:$0xff]
    %v2036 = vld [vmem:[%s2033 + $0x10] sm:$0xff]
    %v2037 = vld [vmem:[%s2033 + $0x18] sm:$0xff]
    %v2070 = vunpack.c.l.b16 %v2001
    %v2071 = vunpack.c.h.b16 %v2001
    %v2072 = vunpack.c.l.b16 %v2002
    %v2073 = vunpack.c.h.b16 %v2002
    %v2074 = vunpack.c.l.b16 %v2003
    %v2075 = vunpack.c.h.b16 %v2003
    %v2076 = vunpack.c.l.b16 %v2004
    %v2077 = vunpack.c.h.b16 %v2004
    %v2078 = vunpack.c.l.b16 %v2005
    %v2079 = vunpack.c.h.b16 %v2005
    %v2080 = vunpack.c.l.b16 %v2006
    %v2081 = vunpack.c.h.b16 %v2006
    %v2082 = vunpack.c.l.b16 %v2007
    %v2083 = vunpack.c.h.b16 %v2007
    %v2084 = vunpack.c.l.b16 %v2008
    %v2085 = vunpack.c.h.b16 %v2008
    %v2086 = vunpack.c.l.b16 %v2009
    %v2087 = vunpack.c.h.b16 %v2009
    %v2088 = vunpack.c.l.b16 %v2010
    %v2089 = vunpack.c.h.b16 %v2010
    %v2090 = vunpack.c.l.b16 %v2011
    %v2091 = vunpack.c.h.b16 %v2011
    %v2092 = vunpack.c.l.b16 %v2012
    %v2093 = vunpack.c.h.b16 %v2012
    %v2094 = vunpack.c.l.b16 %v2013
    %v2095 = vunpack.c.h.b16 %v2013
    %v2096 = vunpack.c.l.b16 %v2014
    %v2097 = vunpack.c.h.b16 %v2014
    %v2098 = vunpack.c.l.b16 %v2015
    %v2099 = vunpack.c.h.b16 %v2015
    %v2100 = vunpack.c.l.b16 %v2016
    %v2101 = vunpack.c.h.b16 %v2016
    %v2102 = vunpack.c.l.b16 %v2017
    %v2103 = vunpack.c.h.b16 %v2017
    %v2104 = vunpack.c.l.b16 %v2018
    %v2105 = vunpack.c.h.b16 %v2018
    %v2106 = vunpack.c.l.b16 %v2019
    %v2107 = vunpack.c.h.b16 %v2019
    %v2108 = vunpack.c.l.b16 %v2020
    %v2109 = vunpack.c.h.b16 %v2020
    %v2110 = vunpack.c.l.b16 %v2021
    %v2111 = vunpack.c.h.b16 %v2021
    %v2112 = vunpack.c.l.b16 %v2022
    %v2113 = vunpack.c.h.b16 %v2022
    %v2114 = vunpack.c.l.b16 %v2023
    %v2115 = vunpack.c.h.b16 %v2023
    %v2116 = vunpack.c.l.b16 %v2024
    %v2117 = vunpack.c.h.b16 %v2024
    %v2118 = vunpack.c.l.b16 %v2025
    %v2119 = vunpack.c.h.b16 %v2025
    %v2120 = vunpack.c.l.b16 %v2026
    %v2121 = vunpack.c.h.b16 %v2026
    %v2122 = vunpack.c.l.b16 %v2027
    %v2123 = vunpack.c.h.b16 %v2027
    %v2124 = vunpack.c.l.b16 %v2028
    %v2125 = vunpack.c.h.b16 %v2028
    %v2126 = vunpack.c.l.b16 %v2029
    %v2127 = vunpack.c.h.b16 %v2029
    %v2128 = vunpack.c.l.b16 %v2030
    %v2129 = vunpack.c.h.b16 %v2030
    %v2130 = vunpack.c.l.b16 %v2031
    %v2131 = vunpack.c.h.b16 %v2031
    %v2132 = vunpack.c.l.b16 %v2032
    %v2133 = vunpack.c.h.b16 %v2032
    %v2134 = vpack.c.b16 %v2074, %v2070
    %v2135 = vpack.c.b16 %v2075, %v2071
    %v2136 = vpack.c.b16 %v2076, %v2072
    %v2137 = vpack.c.b16 %v2077, %v2073
    %v2138 = vpack.c.b16 %v2082, %v2078
    %v2139 = vpack.c.b16 %v2083, %v2079
    %v2140 = vpack.c.b16 %v2084, %v2080
    %v2141 = vpack.c.b16 %v2085, %v2081
    %v2142 = vpack.c.b16 %v2090, %v2086
    %v2143 = vpack.c.b16 %v2091, %v2087
    %v2144 = vpack.c.b16 %v2092, %v2088
    %v2145 = vpack.c.b16 %v2093, %v2089
    %v2146 = vpack.c.b16 %v2098, %v2094
    %v2147 = vpack.c.b16 %v2099, %v2095
    %v2148 = vpack.c.b16 %v2100, %v2096
    %v2149 = vpack.c.b16 %v2101, %v2097
    %v2150 = vpack.c.b16 %v2106, %v2102
    %v2151 = vpack.c.b16 %v2107, %v2103
    %v2152 = vpack.c.b16 %v2108, %v2104
    %v2153 = vpack.c.b16 %v2109, %v2105
    %v2154 = vpack.c.b16 %v2114, %v2110
    %v2155 = vpack.c.b16 %v2115, %v2111
    %v2156 = vpack.c.b16 %v2116, %v2112
    %v2157 = vpack.c.b16 %v2117, %v2113
    %v2158 = vpack.c.b16 %v2122, %v2118
    %v2159 = vpack.c.b16 %v2123, %v2119
    %v2160 = vpack.c.b16 %v2124, %v2120
    %v2161 = vpack.c.b16 %v2125, %v2121
    %v2162 = vpack.c.b16 %v2130, %v2126
    %v2163 = vpack.c.b16 %v2131, %v2127
    %v2164 = vpack.c.b16 %v2132, %v2128
    %v2165 = vpack.c.b16 %v2133, %v2129
    %2198 = vmatprep.subr.bf16.mxu0 %v2163
    %2199 = vmatpush1.bf16.msra.mxu0 %v2162
    %2200 = vmatprep.subr.bf16.mxu0 %v2159
    %2201 = vmatpush1.bf16.msra.mxu0 %v2158
    %2202 = vmatprep.subr.bf16.mxu0 %v2155
    %2203 = vmatpush1.bf16.msra.mxu0 %v2154
    %2204 = vmatprep.subr.bf16.mxu0 %v2151
    %2205 = vmatpush1.bf16.msra.mxu0 %v2150
    %2206 = vmatprep.subr.bf16.mxu0 %v2147
    %2207 = vmatpush1.bf16.msra.mxu0 %v2146
    %2208 = vmatprep.subr.bf16.mxu0 %v2143
    %2209 = vmatpush1.bf16.msra.mxu0 %v2142
    %2210 = vmatprep.subr.bf16.mxu0 %v2139
    %2211 = vmatpush1.bf16.msra.mxu0 %v2138
    %2212 = vmatprep.subr.bf16.mxu0 %v2135
    %2213 = vmatpush1.bf16.msra.mxu0 %v2134
    %2214 = vmatprep.subr.bf16.mxu0 0
    %2215 = vmatpush2.bf16.msra.mxu0 0
    %2216 = vmatprep.subr.bf16.mxu0 0
    %2217 = vmatpush2.bf16.msra.mxu0 0
    %2218 = vmatprep.subr.bf16.mxu0 0
    %2219 = vmatpush2.bf16.msra.mxu0 0
    %2220 = vmatprep.subr.bf16.mxu0 0
    %2221 = vmatpush2.bf16.msra.mxu0 0
    %2222 = vmatprep.subr.bf16.mxu0 0
    %2223 = vmatpush2.bf16.msra.mxu0 0
    %2224 = vmatprep.subr.bf16.mxu0 0
    %2225 = vmatpush2.bf16.msra.mxu0 0
    %2226 = vmatprep.subr.bf16.mxu0 0
    %2227 = vmatpush2.bf16.msra.mxu0 0
    %2228 = vmatprep.subr.bf16.mxu0 0
    %2229 = vmatpush2.bf16.msra.mxu0 0
    %2230 = vmatprep.mubr.bf16.mxu0 0
    %2231 = vmatmul.mubr.bf16.gmra.mxu0 %v2000
    %v2232 = vpop.f32.mrf.mxu0
    %v2233 = vadd.f32 %v2034, %v2232
    %v2234 = vpop.f32.mrf.mxu0
    %v2235 = vadd.f32 %v2035, %v2234
    %v2236 = vpop.f32.mrf.mxu0
    %v2237 = vpop.f32.mrf.mxu0
    %2238 = vdwg.mxu0
    %2239 = vmatprep.subr.bf16.mxu0 %v2165
    %2240 = vmatpush1.bf16.msra.mxu0 %v2164
    %2241 = vmatprep.subr.bf16.mxu0 %v2161
    %2242 = vmatpush1.bf16.msra.mxu0 %v2160
    %2243 = vmatprep.subr.bf16.mxu0 %v2157
    %2244 = vmatpush1.bf16.msra.mxu0 %v2156
    %2245 = vmatprep.subr.bf16.mxu0 %v2153
    %2246 = vmatpush1.bf16.msra.mxu0 %v2152
    %2247 = vmatprep.subr.bf16.mxu0 %v2149
    %2248 = vmatpush1.bf16.msra.mxu0 %v2148
    %2249 = vmatprep.subr.bf16.mxu0 %v2145
    %2250 = vmatpush1.bf16.msra.mxu0 %v2144
    %2251 = vmatprep.subr.bf16.mxu0 %v2141
    %2252 = vmatpush1.bf16.msra.mxu0 %v2140
    %2253 = vmatprep.subr.bf16.mxu0 %v2137
    %2254 = vmatpush1.bf16.msra.mxu0 %v2136
    %2255 = vmatprep.subr.bf16.mxu0 0
    %2256 = vmatpush2.bf16.msra.mxu0 0
    %2257 = vmatprep.subr.bf16.mxu0 0
    %2258 = vmatpush2.bf16.msra.mxu0 0
    %2259 = vmatprep.subr.bf16.mxu0 0
    %2260 = vmatpush2.bf16.msra.mxu0 0
    %2261 = vmatprep.subr.bf16.mxu0 0
    %2262 = vmatpush2.bf16.msra.mxu0 0
    %2263 = vmatprep.subr.bf16.mxu0 0
    %2264 = vmatpush2.bf16.msra.mxu0 0
    %2265 = vmatprep.subr.bf16.mxu0 0
    %2266 = vmatpush2.bf16.msra.mxu0 0
    %2267 = vmatprep.subr.bf16.mxu0 0
    %2268 = vmatpush2.bf16.msra.mxu0 0
    %2269 = vmatprep.subr.bf16.mxu0 0
    %2270 = vmatpush2.bf16.msra.mxu0 0
    %2271 = vmatprep.mubr.bf16.mxu0 0
    %2272 = vmatmul.mubr.bf16.gmra.mxu0 %v2000
    %v2273 = vpop.f32.mrf.mxu0
    %v2274 = vadd.f32 %v2036, %v2273
    %v2275 = vpop.f32.mrf.mxu0
    %v2276 = vadd.f32 %v2037, %v2275
    %v2277 = vpop.f32.mrf.mxu0
    %v2278 = vpop.f32.mrf.mxu0
    %2279 = vdwg.mxu0
    %v2280 = vxor.u32 %v2233, 2147483648
    %v2281 = vmul.f32 %v2280, 1.442695
    %v2282 = vpow.pop %v2281
    %v2283 = vadd.f32 %v2282, 1.0
    %v2284 = vrcp.pop %v2283
    %v2285 = vmul.f32 1.0, %v2284
    %v2286 = vxor.u32 %v2235, 2147483648
    %v2287 = vmul.f32 %v2286, 1.442695
    %v2288 = vpow.pop %v2287
    %v2289 = vadd.f32 %v2288, 1.0
    %v2290 = vrcp.pop %v2289
    %v2291 = vmul.f32 1.0, %v2290
    %v2292 = vtanh.pop %v2274
    %v2293 = vxor.u32 %v2276, 2147483648
    %v2294 = vmul.f32 %v2293, 1.442695
    %v2295 = vpow.pop %v2294
    %v2296 = vadd.f32 %v2295, 1.0
    %v2297 = vrcp.pop %v2296
    %v2298 = vmul.f32 1.0, %v2297
    %v2299 = vmul.f32 %v2291, %v1995
    %v2300 = vmul.f32 %v2285, %v2292
    %v2301 = vadd.f32 %v2299, %v2300
    %v2302 = vtanh.pop %v2301
    %v2303 = vmul.f32 %v2298, %v2302
    %s2304 = scalar_lea.vmem [#allocation11], 40
    %2305 = vst [vmem:[%s2304] sm:$0xff] %v2303
    %v2306 = vpack.c.bf16 %v2303, %v2303
    %v2307 = vld [vmem:[#allocation10] sm:$0xff]
    %v2308 = vld [vmem:[#allocation10 + $0x8] sm:$0xff]
    %v2309 = vld [vmem:[#allocation10 + $0x10] sm:$0xff]
    %v2310 = vld [vmem:[#allocation10 + $0x18] sm:$0xff]
    %v2311 = vld [vmem:[#allocation10 + $0x20] sm:$0xff]
    %v2312 = vld [vmem:[#allocation10 + $0x28] sm:$0xff]
    %v2313 = vld [vmem:[#allocation10 + $0x30] sm:$0xff]
    %v2314 = vld [vmem:[#allocation10 + $0x38] sm:$0xff]
    %v2315 = vld [vmem:[#allocation10 + $0x40] sm:$0xff]
    %v2316 = vld [vmem:[#allocation10 + $0x48] sm:$0xff]
    %v2317 = vld [vmem:[#allocation10 + $0x50] sm:$0xff]
    %v2318 = vld [vmem:[#allocation10 + $0x58] sm:$0xff]
    %v2319 = vld [vmem:[#allocation10 + $0x60] sm:$0xff]
    %v2320 = vld [vmem:[#allocation10 + $0x68] sm:$0xff]
    %v2321 = vld [vmem:[#allocation10 + $0x70] sm:$0xff]
    %v2322 = vld [vmem:[#allocation10 + $0x78] sm:$0xff]
    %v2323 = vld [vmem:[#allocation10 + $0x80] sm:$0xff]
    %v2324 = vld [vmem:[#allocation10 + $0x88] sm:$0xff]
    %v2325 = vld [vmem:[#allocation10 + $0x90] sm:$0xff]
    %v2326 = vld [vmem:[#allocation10 + $0x98] sm:$0xff]
    %v2327 = vld [vmem:[#allocation10 + $0xa0] sm:$0xff]
    %v2328 = vld [vmem:[#allocation10 + $0xa8] sm:$0xff]
    %v2329 = vld [vmem:[#allocation10 + $0xb0] sm:$0xff]
    %v2330 = vld [vmem:[#allocation10 + $0xb8] sm:$0xff]
    %v2331 = vld [vmem:[#allocation10 + $0xc0] sm:$0xff]
    %v2332 = vld [vmem:[#allocation10 + $0xc8] sm:$0xff]
    %v2333 = vld [vmem:[#allocation10 + $0xd0] sm:$0xff]
    %v2334 = vld [vmem:[#allocation10 + $0xd8] sm:$0xff]
    %v2335 = vld [vmem:[#allocation10 + $0xe0] sm:$0xff]
    %v2336 = vld [vmem:[#allocation10 + $0xe8] sm:$0xff]
    %v2337 = vld [vmem:[#allocation10 + $0xf0] sm:$0xff]
    %v2338 = vld [vmem:[#allocation10 + $0xf8] sm:$0xff]
    %s2339 = scalar_lea.vmem [#allocation2], 192
    %v2340 = vld [vmem:[%s2339] sm:$0xff]
    %v2341 = vld [vmem:[%s2339 + $0x8] sm:$0xff]
    %v2342 = vld [vmem:[%s2339 + $0x10] sm:$0xff]
    %v2343 = vld [vmem:[%s2339 + $0x18] sm:$0xff]
    %v2376 = vunpack.c.l.b16 %v2307
    %v2377 = vunpack.c.h.b16 %v2307
    %v2378 = vunpack.c.l.b16 %v2308
    %v2379 = vunpack.c.h.b16 %v2308
    %v2380 = vunpack.c.l.b16 %v2309
    %v2381 = vunpack.c.h.b16 %v2309
    %v2382 = vunpack.c.l.b16 %v2310
    %v2383 = vunpack.c.h.b16 %v2310
    %v2384 = vunpack.c.l.b16 %v2311
    %v2385 = vunpack.c.h.b16 %v2311
    %v2386 = vunpack.c.l.b16 %v2312
    %v2387 = vunpack.c.h.b16 %v2312
    %v2388 = vunpack.c.l.b16 %v2313
    %v2389 = vunpack.c.h.b16 %v2313
    %v2390 = vunpack.c.l.b16 %v2314
    %v2391 = vunpack.c.h.b16 %v2314
    %v2392 = vunpack.c.l.b16 %v2315
    %v2393 = vunpack.c.h.b16 %v2315
    %v2394 = vunpack.c.l.b16 %v2316
    %v2395 = vunpack.c.h.b16 %v2316
    %v2396 = vunpack.c.l.b16 %v2317
    %v2397 = vunpack.c.h.b16 %v2317
    %v2398 = vunpack.c.l.b16 %v2318
    %v2399 = vunpack.c.h.b16 %v2318
    %v2400 = vunpack.c.l.b16 %v2319
    %v2401 = vunpack.c.h.b16 %v2319
    %v2402 = vunpack.c.l.b16 %v2320
    %v2403 = vunpack.c.h.b16 %v2320
    %v2404 = vunpack.c.l.b16 %v2321
    %v2405 = vunpack.c.h.b16 %v2321
    %v2406 = vunpack.c.l.b16 %v2322
    %v2407 = vunpack.c.h.b16 %v2322
    %v2408 = vunpack.c.l.b16 %v2323
    %v2409 = vunpack.c.h.b16 %v2323
    %v2410 = vunpack.c.l.b16 %v2324
    %v2411 = vunpack.c.h.b16 %v2324
    %v2412 = vunpack.c.l.b16 %v2325
    %v2413 = vunpack.c.h.b16 %v2325
    %v2414 = vunpack.c.l.b16 %v2326
    %v2415 = vunpack.c.h.b16 %v2326
    %v2416 = vunpack.c.l.b16 %v2327
    %v2417 = vunpack.c.h.b16 %v2327
    %v2418 = vunpack.c.l.b16 %v2328
    %v2419 = vunpack.c.h.b16 %v2328
    %v2420 = vunpack.c.l.b16 %v2329
    %v2421 = vunpack.c.h.b16 %v2329
    %v2422 = vunpack.c.l.b16 %v2330
    %v2423 = vunpack.c.h.b16 %v2330
    %v2424 = vunpack.c.l.b16 %v2331
    %v2425 = vunpack.c.h.b16 %v2331
    %v2426 = vunpack.c.l.b16 %v2332
    %v2427 = vunpack.c.h.b16 %v2332
    %v2428 = vunpack.c.l.b16 %v2333
    %v2429 = vunpack.c.h.b16 %v2333
    %v2430 = vunpack.c.l.b16 %v2334
    %v2431 = vunpack.c.h.b16 %v2334
    %v2432 = vunpack.c.l.b16 %v2335
    %v2433 = vunpack.c.h.b16 %v2335
    %v2434 = vunpack.c.l.b16 %v2336
    %v2435 = vunpack.c.h.b16 %v2336
    %v2436 = vunpack.c.l.b16 %v2337
    %v2437 = vunpack.c.h.b16 %v2337
    %v2438 = vunpack.c.l.b16 %v2338
    %v2439 = vunpack.c.h.b16 %v2338
    %v2440 = vpack.c.b16 %v2380, %v2376
    %v2441 = vpack.c.b16 %v2381, %v2377
    %v2442 = vpack.c.b16 %v2382, %v2378
    %v2443 = vpack.c.b16 %v2383, %v2379
    %v2444 = vpack.c.b16 %v2388, %v2384
    %v2445 = vpack.c.b16 %v2389, %v2385
    %v2446 = vpack.c.b16 %v2390, %v2386
    %v2447 = vpack.c.b16 %v2391, %v2387
    %v2448 = vpack.c.b16 %v2396, %v2392
    %v2449 = vpack.c.b16 %v2397, %v2393
    %v2450 = vpack.c.b16 %v2398, %v2394
    %v2451 = vpack.c.b16 %v2399, %v2395
    %v2452 = vpack.c.b16 %v2404, %v2400
    %v2453 = vpack.c.b16 %v2405, %v2401
    %v2454 = vpack.c.b16 %v2406, %v2402
    %v2455 = vpack.c.b16 %v2407, %v2403
    %v2456 = vpack.c.b16 %v2412, %v2408
    %v2457 = vpack.c.b16 %v2413, %v2409
    %v2458 = vpack.c.b16 %v2414, %v2410
    %v2459 = vpack.c.b16 %v2415, %v2411
    %v2460 = vpack.c.b16 %v2420, %v2416
    %v2461 = vpack.c.b16 %v2421, %v2417
    %v2462 = vpack.c.b16 %v2422, %v2418
    %v2463 = vpack.c.b16 %v2423, %v2419
    %v2464 = vpack.c.b16 %v2428, %v2424
    %v2465 = vpack.c.b16 %v2429, %v2425
    %v2466 = vpack.c.b16 %v2430, %v2426
    %v2467 = vpack.c.b16 %v2431, %v2427
    %v2468 = vpack.c.b16 %v2436, %v2432
    %v2469 = vpack.c.b16 %v2437, %v2433
    %v2470 = vpack.c.b16 %v2438, %v2434
    %v2471 = vpack.c.b16 %v2439, %v2435
    %2504 = vmatprep.subr.bf16.mxu0 %v2469
    %2505 = vmatpush1.bf16.msra.mxu0 %v2468
    %2506 = vmatprep.subr.bf16.mxu0 %v2465
    %2507 = vmatpush1.bf16.msra.mxu0 %v2464
    %2508 = vmatprep.subr.bf16.mxu0 %v2461
    %2509 = vmatpush1.bf16.msra.mxu0 %v2460
    %2510 = vmatprep.subr.bf16.mxu0 %v2457
    %2511 = vmatpush1.bf16.msra.mxu0 %v2456
    %2512 = vmatprep.subr.bf16.mxu0 %v2453
    %2513 = vmatpush1.bf16.msra.mxu0 %v2452
    %2514 = vmatprep.subr.bf16.mxu0 %v2449
    %2515 = vmatpush1.bf16.msra.mxu0 %v2448
    %2516 = vmatprep.subr.bf16.mxu0 %v2445
    %2517 = vmatpush1.bf16.msra.mxu0 %v2444
    %2518 = vmatprep.subr.bf16.mxu0 %v2441
    %2519 = vmatpush1.bf16.msra.mxu0 %v2440
    %2520 = vmatprep.subr.bf16.mxu0 0
    %2521 = vmatpush2.bf16.msra.mxu0 0
    %2522 = vmatprep.subr.bf16.mxu0 0
    %2523 = vmatpush2.bf16.msra.mxu0 0
    %2524 = vmatprep.subr.bf16.mxu0 0
    %2525 = vmatpush2.bf16.msra.mxu0 0
    %2526 = vmatprep.subr.bf16.mxu0 0
    %2527 = vmatpush2.bf16.msra.mxu0 0
    %2528 = vmatprep.subr.bf16.mxu0 0
    %2529 = vmatpush2.bf16.msra.mxu0 0
    %2530 = vmatprep.subr.bf16.mxu0 0
    %2531 = vmatpush2.bf16.msra.mxu0 0
    %2532 = vmatprep.subr.bf16.mxu0 0
    %2533 = vmatpush2.bf16.msra.mxu0 0
    %2534 = vmatprep.subr.bf16.mxu0 0
    %2535 = vmatpush2.bf16.msra.mxu0 0
    %2536 = vmatprep.mubr.bf16.mxu0 0
    %2537 = vmatmul.mubr.bf16.gmra.mxu0 %v2306
    %v2538 = vpop.f32.mrf.mxu0
    %v2539 = vadd.f32 %v2340, %v2538
    %v2540 = vpop.f32.mrf.mxu0
    %v2541 = vadd.f32 %v2341, %v2540
    %v2542 = vpop.f32.mrf.mxu0
    %v2543 = vpop.f32.mrf.mxu0
    %2544 = vdwg.mxu0
    %2545 = vmatprep.subr.bf16.mxu0 %v2471
    %2546 = vmatpush1.bf16.msra.mxu0 %v2470
    %2547 = vmatprep.subr.bf16.mxu0 %v2467
    %2548 = vmatpush1.bf16.msra.mxu0 %v2466
    %2549 = vmatprep.subr.bf16.mxu0 %v2463
    %2550 = vmatpush1.bf16.msra.mxu0 %v2462
    %2551 = vmatprep.subr.bf16.mxu0 %v2459
    %2552 = vmatpush1.bf16.msra.mxu0 %v2458
    %2553 = vmatprep.subr.bf16.mxu0 %v2455
    %2554 = vmatpush1.bf16.msra.mxu0 %v2454
    %2555 = vmatprep.subr.bf16.mxu0 %v2451
    %2556 = vmatpush1.bf16.msra.mxu0 %v2450
    %2557 = vmatprep.subr.bf16.mxu0 %v2447
    %2558 = vmatpush1.bf16.msra.mxu0 %v2446
    %2559 = vmatprep.subr.bf16.mxu0 %v2443
    %2560 = vmatpush1.bf16.msra.mxu0 %v2442
    %2561 = vmatprep.subr.bf16.mxu0 0
    %2562 = vmatpush2.bf16.msra.mxu0 0
    %2563 = vmatprep.subr.bf16.mxu0 0
    %2564 = vmatpush2.bf16.msra.mxu0 0
    %2565 = vmatprep.subr.bf16.mxu0 0
    %2566 = vmatpush2.bf16.msra.mxu0 0
    %2567 = vmatprep.subr.bf16.mxu0 0
    %2568 = vmatpush2.bf16.msra.mxu0 0
    %2569 = vmatprep.subr.bf16.mxu0 0
    %2570 = vmatpush2.bf16.msra.mxu0 0
    %2571 = vmatprep.subr.bf16.mxu0 0
    %2572 = vmatpush2.bf16.msra.mxu0 0
    %2573 = vmatprep.subr.bf16.mxu0 0
    %2574 = vmatpush2.bf16.msra.mxu0 0
    %2575 = vmatprep.subr.bf16.mxu0 0
    %2576 = vmatpush2.bf16.msra.mxu0 0
    %2577 = vmatprep.mubr.bf16.mxu0 0
    %2578 = vmatmul.mubr.bf16.gmra.mxu0 %v2306
    %v2579 = vpop.f32.mrf.mxu0
    %v2580 = vadd.f32 %v2342, %v2579
    %v2581 = vpop.f32.mrf.mxu0
    %v2582 = vadd.f32 %v2343, %v2581
    %v2583 = vpop.f32.mrf.mxu0
    %v2584 = vpop.f32.mrf.mxu0
    %2585 = vdwg.mxu0
    %v2586 = vxor.u32 %v2539, 2147483648
    %v2587 = vmul.f32 %v2586, 1.442695
    %v2588 = vpow.pop %v2587
    %v2589 = vadd.f32 %v2588, 1.0
    %v2590 = vrcp.pop %v2589
    %v2591 = vmul.f32 1.0, %v2590
    %v2592 = vxor.u32 %v2541, 2147483648
    %v2593 = vmul.f32 %v2592, 1.442695
    %v2594 = vpow.pop %v2593
    %v2595 = vadd.f32 %v2594, 1.0
    %v2596 = vrcp.pop %v2595
    %v2597 = vmul.f32 1.0, %v2596
    %v2598 = vtanh.pop %v2580
    %v2599 = vxor.u32 %v2582, 2147483648
    %v2600 = vmul.f32 %v2599, 1.442695
    %v2601 = vpow.pop %v2600
    %v2602 = vadd.f32 %v2601, 1.0
    %v2603 = vrcp.pop %v2602
    %v2604 = vmul.f32 1.0, %v2603
    %v2605 = vmul.f32 %v2597, %v2301
    %v2606 = vmul.f32 %v2591, %v2598
    %v2607 = vadd.f32 %v2605, %v2606
    %v2608 = vtanh.pop %v2607
    %v2609 = vmul.f32 %v2604, %v2608
    %s2610 = scalar_lea.vmem [#allocation11], 48
    %2611 = vst [vmem:[%s2610] sm:$0xff] %v2609
    %v2612 = vpack.c.bf16 %v2609, %v2609
    %v2613 = vld [vmem:[#allocation10] sm:$0xff]
    %v2614 = vld [vmem:[#allocation10 + $0x8] sm:$0xff]
    %v2615 = vld [vmem:[#allocation10 + $0x10] sm:$0xff]
    %v2616 = vld [vmem:[#allocation10 + $0x18] sm:$0xff]
    %v2617 = vld [vmem:[#allocation10 + $0x20] sm:$0xff]
    %v2618 = vld [vmem:[#allocation10 + $0x28] sm:$0xff]
    %v2619 = vld [vmem:[#allocation10 + $0x30] sm:$0xff]
    %v2620 = vld [vmem:[#allocation10 + $0x38] sm:$0xff]
    %v2621 = vld [vmem:[#allocation10 + $0x40] sm:$0xff]
    %v2622 = vld [vmem:[#allocation10 + $0x48] sm:$0xff]
    %v2623 = vld [vmem:[#allocation10 + $0x50] sm:$0xff]
    %v2624 = vld [vmem:[#allocation10 + $0x58] sm:$0xff]
    %v2625 = vld [vmem:[#allocation10 + $0x60] sm:$0xff]
    %v2626 = vld [vmem:[#allocation10 + $0x68] sm:$0xff]
    %v2627 = vld [vmem:[#allocation10 + $0x70] sm:$0xff]
    %v2628 = vld [vmem:[#allocation10 + $0x78] sm:$0xff]
    %v2629 = vld [vmem:[#allocation10 + $0x80] sm:$0xff]
    %v2630 = vld [vmem:[#allocation10 + $0x88] sm:$0xff]
    %v2631 = vld [vmem:[#allocation10 + $0x90] sm:$0xff]
    %v2632 = vld [vmem:[#allocation10 + $0x98] sm:$0xff]
    %v2633 = vld [vmem:[#allocation10 + $0xa0] sm:$0xff]
    %v2634 = vld [vmem:[#allocation10 + $0xa8] sm:$0xff]
    %v2635 = vld [vmem:[#allocation10 + $0xb0] sm:$0xff]
    %v2636 = vld [vmem:[#allocation10 + $0xb8] sm:$0xff]
    %v2637 = vld [vmem:[#allocation10 + $0xc0] sm:$0xff]
    %v2638 = vld [vmem:[#allocation10 + $0xc8] sm:$0xff]
    %v2639 = vld [vmem:[#allocation10 + $0xd0] sm:$0xff]
    %v2640 = vld [vmem:[#allocation10 + $0xd8] sm:$0xff]
    %v2641 = vld [vmem:[#allocation10 + $0xe0] sm:$0xff]
    %v2642 = vld [vmem:[#allocation10 + $0xe8] sm:$0xff]
    %v2643 = vld [vmem:[#allocation10 + $0xf0] sm:$0xff]
    %v2644 = vld [vmem:[#allocation10 + $0xf8] sm:$0xff]
    %s2645 = scalar_lea.vmem [#allocation2], 224
    %v2646 = vld [vmem:[%s2645] sm:$0xff]
    %v2647 = vld [vmem:[%s2645 + $0x8] sm:$0xff]
    %v2648 = vld [vmem:[%s2645 + $0x10] sm:$0xff]
    %v2649 = vld [vmem:[%s2645 + $0x18] sm:$0xff]
    %v2682 = vunpack.c.l.b16 %v2613
    %v2683 = vunpack.c.h.b16 %v2613
    %v2684 = vunpack.c.l.b16 %v2614
    %v2685 = vunpack.c.h.b16 %v2614
    %v2686 = vunpack.c.l.b16 %v2615
    %v2687 = vunpack.c.h.b16 %v2615
    %v2688 = vunpack.c.l.b16 %v2616
    %v2689 = vunpack.c.h.b16 %v2616
    %v2690 = vunpack.c.l.b16 %v2617
    %v2691 = vunpack.c.h.b16 %v2617
    %v2692 = vunpack.c.l.b16 %v2618
    %v2693 = vunpack.c.h.b16 %v2618
    %v2694 = vunpack.c.l.b16 %v2619
    %v2695 = vunpack.c.h.b16 %v2619
    %v2696 = vunpack.c.l.b16 %v2620
    %v2697 = vunpack.c.h.b16 %v2620
    %v2698 = vunpack.c.l.b16 %v2621
    %v2699 = vunpack.c.h.b16 %v2621
    %v2700 = vunpack.c.l.b16 %v2622
    %v2701 = vunpack.c.h.b16 %v2622
    %v2702 = vunpack.c.l.b16 %v2623
    %v2703 = vunpack.c.h.b16 %v2623
    %v2704 = vunpack.c.l.b16 %v2624
    %v2705 = vunpack.c.h.b16 %v2624
    %v2706 = vunpack.c.l.b16 %v2625
    %v2707 = vunpack.c.h.b16 %v2625
    %v2708 = vunpack.c.l.b16 %v2626
    %v2709 = vunpack.c.h.b16 %v2626
    %v2710 = vunpack.c.l.b16 %v2627
    %v2711 = vunpack.c.h.b16 %v2627
    %v2712 = vunpack.c.l.b16 %v2628
    %v2713 = vunpack.c.h.b16 %v2628
    %v2714 = vunpack.c.l.b16 %v2629
    %v2715 = vunpack.c.h.b16 %v2629
    %v2716 = vunpack.c.l.b16 %v2630
    %v2717 = vunpack.c.h.b16 %v2630
    %v2718 = vunpack.c.l.b16 %v2631
    %v2719 = vunpack.c.h.b16 %v2631
    %v2720 = vunpack.c.l.b16 %v2632
    %v2721 = vunpack.c.h.b16 %v2632
    %v2722 = vunpack.c.l.b16 %v2633
    %v2723 = vunpack.c.h.b16 %v2633
    %v2724 = vunpack.c.l.b16 %v2634
    %v2725 = vunpack.c.h.b16 %v2634
    %v2726 = vunpack.c.l.b16 %v2635
    %v2727 = vunpack.c.h.b16 %v2635
    %v2728 = vunpack.c.l.b16 %v2636
    %v2729 = vunpack.c.h.b16 %v2636
    %v2730 = vunpack.c.l.b16 %v2637
    %v2731 = vunpack.c.h.b16 %v2637
    %v2732 = vunpack.c.l.b16 %v2638
    %v2733 = vunpack.c.h.b16 %v2638
    %v2734 = vunpack.c.l.b16 %v2639
    %v2735 = vunpack.c.h.b16 %v2639
    %v2736 = vunpack.c.l.b16 %v2640
    %v2737 = vunpack.c.h.b16 %v2640
    %v2738 = vunpack.c.l.b16 %v2641
    %v2739 = vunpack.c.h.b16 %v2641
    %v2740 = vunpack.c.l.b16 %v2642
    %v2741 = vunpack.c.h.b16 %v2642
    %v2742 = vunpack.c.l.b16 %v2643
    %v2743 = vunpack.c.h.b16 %v2643
    %v2744 = vunpack.c.l.b16 %v2644
    %v2745 = vunpack.c.h.b16 %v2644
    %v2746 = vpack.c.b16 %v2686, %v2682
    %v2747 = vpack.c.b16 %v2687, %v2683
    %v2748 = vpack.c.b16 %v2688, %v2684
    %v2749 = vpack.c.b16 %v2689, %v2685
    %v2750 = vpack.c.b16 %v2694, %v2690
    %v2751 = vpack.c.b16 %v2695, %v2691
    %v2752 = vpack.c.b16 %v2696, %v2692
    %v2753 = vpack.c.b16 %v2697, %v2693
    %v2754 = vpack.c.b16 %v2702, %v2698
    %v2755 = vpack.c.b16 %v2703, %v2699
    %v2756 = vpack.c.b16 %v2704, %v2700
    %v2757 = vpack.c.b16 %v2705, %v2701
    %v2758 = vpack.c.b16 %v2710, %v2706
    %v2759 = vpack.c.b16 %v2711, %v2707
    %v2760 = vpack.c.b16 %v2712, %v2708
    %v2761 = vpack.c.b16 %v2713, %v2709
    %v2762 = vpack.c.b16 %v2718, %v2714
    %v2763 = vpack.c.b16 %v2719, %v2715
    %v2764 = vpack.c.b16 %v2720, %v2716
    %v2765 = vpack.c.b16 %v2721, %v2717
    %v2766 = vpack.c.b16 %v2726, %v2722
    %v2767 = vpack.c.b16 %v2727, %v2723
    %v2768 = vpack.c.b16 %v2728, %v2724
    %v2769 = vpack.c.b16 %v2729, %v2725
    %v2770 = vpack.c.b16 %v2734, %v2730
    %v2771 = vpack.c.b16 %v2735, %v2731
    %v2772 = vpack.c.b16 %v2736, %v2732
    %v2773 = vpack.c.b16 %v2737, %v2733
    %v2774 = vpack.c.b16 %v2742, %v2738
    %v2775 = vpack.c.b16 %v2743, %v2739
    %v2776 = vpack.c.b16 %v2744, %v2740
    %v2777 = vpack.c.b16 %v2745, %v2741
    %2810 = vmatprep.subr.bf16.mxu0 %v2775
    %2811 = vmatpush1.bf16.msra.mxu0 %v2774
    %2812 = vmatprep.subr.bf16.mxu0 %v2771
    %2813 = vmatpush1.bf16.msra.mxu0 %v2770
    %2814 = vmatprep.subr.bf16.mxu0 %v2767
    %2815 = vmatpush1.bf16.msra.mxu0 %v2766
    %2816 = vmatprep.subr.bf16.mxu0 %v2763
    %2817 = vmatpush1.bf16.msra.mxu0 %v2762
    %2818 = vmatprep.subr.bf16.mxu0 %v2759
    %2819 = vmatpush1.bf16.msra.mxu0 %v2758
    %2820 = vmatprep.subr.bf16.mxu0 %v2755
    %2821 = vmatpush1.bf16.msra.mxu0 %v2754
    %2822 = vmatprep.subr.bf16.mxu0 %v2751
    %2823 = vmatpush1.bf16.msra.mxu0 %v2750
    %2824 = vmatprep.subr.bf16.mxu0 %v2747
    %2825 = vmatpush1.bf16.msra.mxu0 %v2746
    %2826 = vmatprep.subr.bf16.mxu0 0
    %2827 = vmatpush2.bf16.msra.mxu0 0
    %2828 = vmatprep.subr.bf16.mxu0 0
    %2829 = vmatpush2.bf16.msra.mxu0 0
    %2830 = vmatprep.subr.bf16.mxu0 0
    %2831 = vmatpush2.bf16.msra.mxu0 0
    %2832 = vmatprep.subr.bf16.mxu0 0
    %2833 = vmatpush2.bf16.msra.mxu0 0
    %2834 = vmatprep.subr.bf16.mxu0 0
    %2835 = vmatpush2.bf16.msra.mxu0 0
    %2836 = vmatprep.subr.bf16.mxu0 0
    %2837 = vmatpush2.bf16.msra.mxu0 0
    %2838 = vmatprep.subr.bf16.mxu0 0
    %2839 = vmatpush2.bf16.msra.mxu0 0
    %2840 = vmatprep.subr.bf16.mxu0 0
    %2841 = vmatpush2.bf16.msra.mxu0 0
    %2842 = vmatprep.mubr.bf16.mxu0 0
    %2843 = vmatmul.mubr.bf16.gmra.mxu0 %v2612
    %v2844 = vpop.f32.mrf.mxu0
    %v2845 = vadd.f32 %v2646, %v2844
    %v2846 = vpop.f32.mrf.mxu0
    %v2847 = vadd.f32 %v2647, %v2846
    %v2848 = vpop.f32.mrf.mxu0
    %v2849 = vpop.f32.mrf.mxu0
    %2850 = vdwg.mxu0
    %2851 = vmatprep.subr.bf16.mxu0 %v2777
    %2852 = vmatpush1.bf16.msra.mxu0 %v2776
    %2853 = vmatprep.subr.bf16.mxu0 %v2773
    %2854 = vmatpush1.bf16.msra.mxu0 %v2772
    %2855 = vmatprep.subr.bf16.mxu0 %v2769
    %2856 = vmatpush1.bf16.msra.mxu0 %v2768
    %2857 = vmatprep.subr.bf16.mxu0 %v2765
    %2858 = vmatpush1.bf16.msra.mxu0 %v2764
    %2859 = vmatprep.subr.bf16.mxu0 %v2761
    %2860 = vmatpush1.bf16.msra.mxu0 %v2760
    %2861 = vmatprep.subr.bf16.mxu0 %v2757
    %2862 = vmatpush1.bf16.msra.mxu0 %v2756
    %2863 = vmatprep.subr.bf16.mxu0 %v2753
    %2864 = vmatpush1.bf16.msra.mxu0 %v2752
    %2865 = vmatprep.subr.bf16.mxu0 %v2749
    %2866 = vmatpush1.bf16.msra.mxu0 %v2748
    %2867 = vmatprep.subr.bf16.mxu0 0
    %2868 = vmatpush2.bf16.msra.mxu0 0
    %2869 = vmatprep.subr.bf16.mxu0 0
    %2870 = vmatpush2.bf16.msra.mxu0 0
    %2871 = vmatprep.subr.bf16.mxu0 0
    %2872 = vmatpush2.bf16.msra.mxu0 0
    %2873 = vmatprep.subr.bf16.mxu0 0
    %2874 = vmatpush2.bf16.msra.mxu0 0
    %2875 = vmatprep.subr.bf16.mxu0 0
    %2876 = vmatpush2.bf16.msra.mxu0 0
    %2877 = vmatprep.subr.bf16.mxu0 0
    %2878 = vmatpush2.bf16.msra.mxu0 0
    %2879 = vmatprep.subr.bf16.mxu0 0
    %2880 = vmatpush2.bf16.msra.mxu0 0
    %2881 = vmatprep.subr.bf16.mxu0 0
    %2882 = vmatpush2.bf16.msra.mxu0 0
    %2883 = vmatprep.mubr.bf16.mxu0 0
    %2884 = vmatmul.mubr.bf16.gmra.mxu0 %v2612
    %v2885 = vpop.f32.mrf.mxu0
    %v2886 = vadd.f32 %v2648, %v2885
    %v2887 = vpop.f32.mrf.mxu0
    %v2888 = vadd.f32 %v2649, %v2887
    %v2889 = vpop.f32.mrf.mxu0
    %v2890 = vpop.f32.mrf.mxu0
    %2891 = vdwg.mxu0
    %v2892 = vxor.u32 %v2845, 2147483648
    %v2893 = vmul.f32 %v2892, 1.442695
    %v2894 = vpow.pop %v2893
    %v2895 = vadd.f32 %v2894, 1.0
    %v2896 = vrcp.pop %v2895
    %v2897 = vmul.f32 1.0, %v2896
    %v2898 = vxor.u32 %v2847, 2147483648
    %v2899 = vmul.f32 %v2898, 1.442695
    %v2900 = vpow.pop %v2899
    %v2901 = vadd.f32 %v2900, 1.0
    %v2902 = vrcp.pop %v2901
    %v2903 = vmul.f32 1.0, %v2902
    %v2904 = vtanh.pop %v2886
    %v2905 = vxor.u32 %v2888, 2147483648
    %v2906 = vmul.f32 %v2905, 1.442695
    %v2907 = vpow.pop %v2906
    %v2908 = vadd.f32 %v2907, 1.0
    %v2909 = vrcp.pop %v2908
    %v2910 = vmul.f32 1.0, %v2909
    %v2911 = vmul.f32 %v2903, %v2607
    %v2912 = vmul.f32 %v2897, %v2904
    %v2913 = vadd.f32 %v2911, %v2912
    %v2914 = vtanh.pop %v2913
    %v2915 = vmul.f32 %v2910, %v2914
    %s2916 = scalar_lea.vmem [#allocation11], 56
    %2917 = vst [vmem:[%s2916] sm:$0xff] %v2915
    %2918 = vst [vmem:[#allocation3] sm:$0xff] %v2915
    %2919 = vst [vmem:[#allocation4] sm:$0xff] %v2913
    // Predicated region
    $region34: #{tpu_custom_call.1} parent=1 // pred_check
      _
    $region35: #{tpu_custom_call.1} parent=1 // pred_check_branch
      %2921 = sbr.rel (0) target = $region37
    $region36: #{tpu_custom_call.1} parent=1 // pred_region
      %s2923 = ssub.s32 1024, 1024
      %2924 = vsyncadd [#allocation7], %s2923
      %s2925 = sshll.u32 [#allocation11], 4
      %s2926 = int_to_ptr.vmem [resolvable:$true] %s2925
      %2931 = dma.vmem_to_hbm [thread:$0]  %s2926, 1024, %s4, [#allocation7], 128, 128, 8
    $region37: #{tpu_custom_call.1} parent=1 // pred_fallthru
      _
    // Predicated region
    $region38: #{tpu_custom_call.1} parent=1 // pred_check
      _
    $region39: #{tpu_custom_call.1} parent=1 // pred_check_branch
      %2933 = sbr.rel (0) target = $region41
    $region40: #{tpu_custom_call.1} parent=1 // pred_region
      %2934 = dma.done [#allocation7], 1024
    $region41: #{tpu_custom_call.1} parent=1 // pred_fallthru
      _
    %2935 = vsyncpa [#allocation6], 1
    %2936 = vsyncpa [#allocation9], 1
    %2937 = vsyncpa [#allocation7], 1

</llo_original>
